<compile_context>
chip_gen: v7x
topology: tpu7x:2x2x1
jax: 0.10.0
libtpu: 0.0.40
codegen_flags: <defaults>
</compile_context>

<pallas_src>
import functools

import jax
import jax.numpy as jnp
from jax import lax
from jax.experimental import pallas as pl
from jax.experimental.pallas import tpu as pltpu


def _leaky(x, slope=0.1):
    return jnp.where(x >= 0, x, slope * x)


def _round_up(x, m):
    return (x + m - 1) // m * m


_MY = 8  # sublane-aligned margin for the y1 staging scratch (taps reach +/-1 row)


def _vmem_estimate(TH, Wp, Cp, Chp, Cop):
    """Rough per-grid-step VMEM footprint in bytes for row-tile height TH."""
    P = (TH + 2) * Wp
    return (
        2 * P * Cp * 2                                  # x halo block (bf16), 2-buffered
        + 2 * P * 128 * 2                               # (P,1) mask tiles to 128 lanes
        + 2 * TH * Wp * Cop * 4                         # f32 output block, 2-buffered
        + Cp * Chp * 2 + 9 * Chp * Cop * 2              # weights (single-buffered)
        + (Chp + Cop) * 4                               # biases
        + (P + 2 * _MY) * Chp * 2 + P * 3 * Chp * 2     # y1 / ycat scratch (bf16)
        + TH * Wp * Cop * 4 + P * Chp * 4               # live f32 values (acc, y1)
    )


def _pick_row_tile(H, Wp, Cp, Chp, Cop, budget=40 * 1024 * 1024):
    """Largest row-tile height dividing H that fits the VMEM budget (prefer >=2 tiles)."""
    cands = [t for t in (128, 64, 32, 16, 8, 4, 2, 1) if H % t == 0]
    fit = [t for t in cands if _vmem_estimate(t, Wp, Cp, Chp, Cop) <= budget]
    fit = fit or [cands[-1]]
    multi = [t for t in fit if H // t >= 2]
    return multi[0] if multi else fit[0]


def _const_spec(shape, index_map):
    """BlockSpec for grid-invariant operands: single-buffer when supported."""
    try:
        return pl.BlockSpec(shape, index_map, pipeline_mode=pl.Buffered(1))
    except Exception:  # pipeline_mode / Buffered not available -> default buffering
        return pl.BlockSpec(shape, index_map)


# ---------------------------------------------------------------------------
# Fused kernel.  Grid = (N, R).  Per grid step (one image, one row tile):
#   1. y1 = mask * LeakyReLU(x @ w1_scaled + b1) over the (TH+2)*Wp halo rows,
#   2. stage y1 and its dx = -1/0/+1 shifts lane-concatenated into ycat,
#   3. cv2 = 3 contiguous MXU dots with K = 3*Chp over the TH*Wp interior rows,
#   4. bias + LeakyReLU (+ residual) epilogue, lane-dense f32 store.
# ---------------------------------------------------------------------------
def _fused_bottleneck_kernel(mask_ref, x_ref, w1_ref, b1_ref, w2_ref, b2_ref,
                             o_ref, y1_ref, ycat_ref, *, TH, Wp, add):
    P = (TH + 2) * Wp            # halo-window rows (flat spatial)
    Q = TH * Wp                  # interior / output rows
    Chp = y1_ref.shape[-1]

    x_tile = x_ref[...]                                   # (P, Cp)  bf16
    m_tile = mask_ref[...]                                 # (P, 1)   bf16 (0/1)

    # ---- cv1: 1x1 conv (BN scale folded) + bias + LeakyReLU ----------------
    y1 = jnp.dot(x_tile, w1_ref[...], preferred_element_type=jnp.float32)
    y1 = m_tile * _leaky(y1 + b1_ref[...])                 # exact zeros on pad ring
    y1 = y1.astype(jnp.bfloat16)

    # Stage y1 sublane-aligned; zero the one-row margins exposed to the
    # dx-shifted views (they only ever feed discarded pad-column outputs;
    # zeroing keeps them NaN/Inf free).  Cheap: 2 x 8 x Chp bf16 stores.
    zeros8 = jnp.zeros((_MY, Chp), jnp.bfloat16)
    y1_ref[0:_MY, :] = zeros8
    y1_ref[_MY + P:_MY + P + _MY, :] = zeros8
    y1_ref[_MY:_MY + P, :] = y1

    # ---- lane-concatenate the three dx shifts: ycat[p] = [y1[p-1], y1[p], y1[p+1]]
    ycat_ref[:, 0:Chp] = y1_ref[_MY - 1:_MY - 1 + P, :]
    ycat_ref[:, Chp:2 * Chp] = y1
    ycat_ref[:, 2 * Chp:3 * Chp] = y1_ref[_MY + 1:_MY + 1 + P, :]

    # ---- cv2: 3x3 conv as 3 dots (K = 3*Chp), interior rows only -----------
    # Keep the dot chain free of interleaved VPU work so the MXU result
    # buffer can accumulate in place (v7x MRB).
    acc = jnp.dot(ycat_ref[0:Q, :], w2_ref[0],
                  preferred_element_type=jnp.float32)
    acc = acc + jnp.dot(ycat_ref[Wp:Wp + Q, :], w2_ref[1],
                        preferred_element_type=jnp.float32)
    acc = acc + jnp.dot(ycat_ref[2 * Wp:2 * Wp + Q, :], w2_ref[2],
                        preferred_element_type=jnp.float32)

    # ---- epilogue: bias + LeakyReLU (+ residual) ----------------------------
    y2 = _leaky(acc + b2_ref[...])
    if add:
        y2 = y2 + x_ref[Wp:Wp + Q, :].astype(jnp.float32)   # residual (f32 accumulate)
    o_ref[...] = y2.astype(o_ref.dtype)


# ---------------------------------------------------------------------------
# Wrapper
# ---------------------------------------------------------------------------
def bottleneck_forward(x_nchw, params, *, shortcut=True):
    N, Cin, H, W = x_nchw.shape
    w1, s1, b1 = params["w1"], params["s1"], params["b1"]     # w1: (Cin, Ch)
    w2, s2, b2 = params["w2"], params["s2"], params["b2"]     # w2: (3, 3, Ch, Co)
    Ch = w1.shape[1]
    Co = w2.shape[3]
    add = bool(shortcut and (Cin == Co))

    # Channel dims padded to multiples of 128 (lane-dense matmuls / output).
    Cp = _round_up(Cin, 128)
    Chp = _round_up(Ch, 128)
    Cop = _round_up(Co, 128)
    if add:
        assert Cp == Cop, "shortcut requires c_in == c_out"

    # Width padded so Wp % 8 == 0: dy-tap offsets (k*Wp), interior-slice starts
    # and the output slab are all sublane-aligned.
    Wp = _round_up(W + 2, 8)
    TH = _pick_row_tile(H, Wp, Cp, Chp, Cop)
    R = H // TH
    P = (TH + 2) * Wp

    # ---- fold BN scales into the conv weights, pad, cast to bf16 (host) ----
    w1f = w1 * s1.reshape(1, Ch)
    w2f = w2 * s2.reshape(1, 1, 1, Co)
    w1p = jnp.zeros((Cp, Chp), jnp.float32).at[:Cin, :Ch].set(w1f).astype(jnp.bfloat16)
    w2p = (jnp.zeros((3, 3, Chp, Cop), jnp.float32)
           .at[:, :, :Ch, :Co].set(w2f).astype(jnp.bfloat16))
    w2cat = w2p.reshape(3, 3 * Chp, Cop)                  # rows ordered by dx (K = 3*Chp)
    b1p = jnp.zeros((1, Chp), jnp.float32).at[:, :Ch].set(b1.reshape(1, Ch))
    b2p = jnp.zeros((1, Cop), jnp.float32).at[:, :Co].set(b2.reshape(1, Co))

    # ---- NCHW -> NHWC (bf16), spatial + channel zero-pad, per-tile halo windows
    x_nhwc = jnp.transpose(x_nchw, (0, 2, 3, 1)).astype(jnp.bfloat16)
    x_pad = jnp.pad(x_nhwc, ((0, 0), (1, 1), (1, Wp - W - 1), (0, Cp - Cin)))
    row_idx = jnp.arange(R)[:, None] * TH + jnp.arange(TH + 2)[None, :]   # (R, TH+2)
    x_tiles = x_pad[:, row_idx].reshape(N, R, P, Cp)       # (N, R, (TH+2)*Wp, Cp)

    # Per-tile validity mask (1 inside the HxW image, 0 on the pad ring); makes
    # the zero padding of y1 exact despite the BN bias / LeakyReLU.
    mrow = (row_idx >= 1) & (row_idx <= H)                 # (R, TH+2)
    mcol = (jnp.arange(Wp) >= 1) & (jnp.arange(Wp) <= W)   # (Wp,)
    mask = (mrow[:, :, None] & mcol[None, None, :]).astype(jnp.bfloat16)
    mask = mask.reshape(R, P, 1)

    # VMEM limit from the actual footprint + headroom (stays well under the
    # 64 MiB physical VMEM of v7x; v5e/v6e have 128 MiB).
    footprint = _vmem_estimate(TH, Wp, Cp, Chp, Cop)
    vmem_limit = int(min(96 * 1024 * 1024,
                         max(32 * 1024 * 1024, footprint + 12 * 1024 * 1024)))

    kernel = functools.partial(_fused_bottleneck_kernel, TH=TH, Wp=Wp, add=add)
    out_flat = pl.pallas_call(
        kernel,
        out_shape=jax.ShapeDtypeStruct((N, H * Wp, Cop), jnp.float32),
        grid=(N, R),
        in_specs=[
            pl.BlockSpec((None, P, 1), lambda n, r: (r, 0, 0)),            # mask tile
            pl.BlockSpec((None, None, P, Cp), lambda n, r: (n, r, 0, 0)),  # x halo tile
            _const_spec((Cp, Chp), lambda n, r: (0, 0)),                   # w1 (scaled)
            _const_spec((1, Chp), lambda n, r: (0, 0)),                    # b1
            _const_spec((3, 3 * Chp, Cop), lambda n, r: (0, 0, 0)),        # w2 (scaled, dx-packed)
            _const_spec((1, Cop), lambda n, r: (0, 0)),                    # b2
        ],
        out_specs=pl.BlockSpec((None, TH * Wp, Cop), lambda n, r: (n, r, 0)),
        scratch_shapes=[
            pltpu.VMEM((P + 2 * _MY, Chp), jnp.bfloat16),    # y1 staging (aligned)
            pltpu.VMEM((P, 3 * Chp), jnp.bfloat16),          # dx-concatenated y1
        ],
        compiler_params=pltpu.CompilerParams(
            dimension_semantics=("parallel", "parallel"),
            vmem_limit_bytes=vmem_limit),
    )(mask, x_tiles, w1p, b1p, w2cat, b2p)

    # Drop pad columns / pad channels while doing the NHWC -> NCHW transpose.
    out = out_flat.reshape(N, H, Wp, Cop)[:, :, 1:W + 1, :Co]
    return jnp.transpose(out, (0, 3, 1, 2))


# ---------------------------------------------------------------------------
# Deterministic synthetic parameter init (matches nn.Module shapes)
# ---------------------------------------------------------------------------
def init_params(key, c_in, c_out, expansion=0.5):
    ch = int(c_out * expansion)
    eps = 1e-5
    ks = jax.random.split(key, 10)

    # conv weights (PyTorch OIHW) -> kernel layouts
    w1_oihw = 0.1 * jax.random.normal(ks[0], (ch, c_in, 1, 1), jnp.float32)
    w2_oihw = 0.1 * jax.random.normal(ks[1], (c_out, ch, 3, 3), jnp.float32)
    w1 = w1_oihw[:, :, 0, 0].T                      # [Cin, Ch]
    w2 = jnp.transpose(w2_oihw, (2, 3, 1, 0))       # [3, 3, Ch, Co]

    # BN1 (eval mode, folded)
    g1 = 1.0 + 0.1 * jax.random.normal(ks[2], (ch,), jnp.float32)
    bt1 = 0.1 * jax.random.normal(ks[3], (ch,), jnp.float32)
    m1 = 0.1 * jax.random.normal(ks[4], (ch,), jnp.float32)
    v1 = jnp.abs(jax.random.normal(ks[5], (ch,), jnp.float32)) + 0.5
    s1 = g1 / jnp.sqrt(v1 + eps)
    b1 = bt1 - m1 * s1

    # BN2 (eval mode, folded)
    g2 = 1.0 + 0.1 * jax.random.normal(ks[6], (c_out,), jnp.float32)
    bt2 = 0.1 * jax.random.normal(ks[7], (c_out,), jnp.float32)
    m2 = 0.1 * jax.random.normal(ks[8], (c_out,), jnp.float32)
    v2 = jnp.abs(jax.random.normal(ks[9], (c_out,), jnp.float32)) + 0.5
    s2 = g2 / jnp.sqrt(v2 + eps)
    b2 = bt2 - m2 * s2

    return dict(w1=w1, s1=s1.reshape(1, ch), b1=b1.reshape(1, ch),
                w2=w2, s2=s2.reshape(1, c_out), b2=b2.reshape(1, c_out))


# ---------------------------------------------------------------------------
# Pure-JAX f32 reference (NCHW convs) for a correctness sanity check
# ---------------------------------------------------------------------------
def bottleneck_reference(x_nchw, params, *, shortcut=True):
    w1_oihw = params["w1"].T[:, :, None, None]                  # [Ch, Cin, 1, 1]
    w2_oihw = jnp.transpose(params["w2"], (3, 2, 0, 1))         # [Co, Ch, 3, 3]
    dn = ("NCHW", "OIHW", "NCHW")

    y1 = lax.conv_general_dilated(x_nchw, w1_oihw, (1, 1), ((0, 0), (0, 0)),
                                  dimension_numbers=dn)
    y1 = y1 * params["s1"].reshape(1, -1, 1, 1) + params["b1"].reshape(1, -1, 1, 1)
    y1 = _leaky(y1)

    y2 = lax.conv_general_dilated(y1, w2_oihw, (1, 1), ((1, 1), (1, 1)),
                                  dimension_numbers=dn)
    y2 = y2 * params["s2"].reshape(1, -1, 1, 1) + params["b2"].reshape(1, -1, 1, 1)
    y2 = _leaky(y2)

    if shortcut and x_nchw.shape[1] == y2.shape[1]:
        return x_nchw + y2
    return y2


if __name__ == "__main__":
    key = jax.random.PRNGKey(0)
    k_x, k_p = jax.random.split(key)

    N, C, H, W = 2, 4, 16, 16          # c_in == c_out -> shortcut active
    x = jax.random.normal(k_x, (N, C, H, W), jnp.float32)
    params = init_params(k_p, c_in=C, c_out=C, expansion=0.5)

    # Tolerance sized for bf16 MXU operands (and bf16-cast x in the residual)
    # vs. the f32 reference; bias/activation/accumulation stay in f32.
    out = jax.block_until_ready(bottleneck_forward(x, params, shortcut=True))
    ref = jax.block_until_ready(bottleneck_reference(x, params, shortcut=True))
    assert out.shape == (N, C, H, W)
    assert jnp.allclose(out, ref, atol=5e-2, rtol=5e-2), "mismatch (shortcut=True)"

    out2 = jax.block_until_ready(bottleneck_forward(x, params, shortcut=False))
    ref2 = jax.block_until_ready(bottleneck_reference(x, params, shortcut=False))
    assert jnp.allclose(out2, ref2, atol=5e-2, rtol=5e-2), "mismatch (shortcut=False)"

    print("KERNEL_OK")
</pallas_src>

<mosaic_0001>
module attributes {stable_mosaic.version = 11 : i64} {
  func.func @_fused_bottleneck_kernel(%arg0: i32, %arg1: i32, %arg2: memref<1x240x1xbf16, #tpu.memory_space<vmem>>, %arg3: memref<1x1x240x128xbf16, #tpu.memory_space<vmem>>, %arg4: memref<128x128xbf16, #tpu.memory_space<vmem>>, %arg5: memref<1x128xf32, #tpu.memory_space<vmem>>, %arg6: memref<3x384x128xbf16, #tpu.memory_space<vmem>>, %arg7: memref<1x128xf32, #tpu.memory_space<vmem>>, %arg8: memref<1x192x128xf32, #tpu.memory_space<vmem>>, %arg9: memref<256x128xbf16, #tpu.memory_space<vmem>>, %arg10: memref<240x384xbf16, #tpu.memory_space<vmem>>) attributes {dimension_semantics = [#tpu.dimension_semantics<parallel>, #tpu.dimension_semantics<parallel>], iteration_bounds = array<i64: 2, 2>, scalar_prefetch = 0 : i64, scratch_operands = 2 : i64, tpu.core_type = #tpu.core_type<tc>, window_params = [{transform_indices = @transform_0, window_bounds = array<i64: 1, 240, 1>}, {transform_indices = @transform_1, window_bounds = array<i64: 1, 1, 240, 128>}, {pipeline_mode = #tpu.pipeline_mode<synchronous>, transform_indices = @transform_2, window_bounds = array<i64: 128, 128>}, {pipeline_mode = #tpu.pipeline_mode<synchronous>, transform_indices = @transform_3, window_bounds = array<i64: 1, 128>}, {pipeline_mode = #tpu.pipeline_mode<synchronous>, transform_indices = @transform_4, window_bounds = array<i64: 3, 384, 128>}, {pipeline_mode = #tpu.pipeline_mode<synchronous>, transform_indices = @transform_5, window_bounds = array<i64: 1, 128>}, {transform_indices = @transform_6, window_bounds = array<i64: 1, 192, 128>}]} {
    %c0 = arith.constant 0 : index
    %c0_0 = arith.constant 0 : index
    %c0_1 = arith.constant 0 : index
    %c0_2 = arith.constant 0 : index
    %0 = vector.load %arg3[%c0, %c0_0, %c0_1, %c0_2] : memref<1x1x240x128xbf16, #tpu.memory_space<vmem>>, vector<1x1x240x128xbf16>
    %1 = vector.shape_cast %0 : vector<1x1x240x128xbf16> to vector<240x128xbf16>
    %c0_3 = arith.constant 0 : index
    %c0_4 = arith.constant 0 : index
    %c0_5 = arith.constant 0 : index
    %2 = vector.load %arg2[%c0_3, %c0_4, %c0_5] : memref<1x240x1xbf16, #tpu.memory_space<vmem>>, vector<1x240x1xbf16>
    %3 = vector.shape_cast %2 : vector<1x240x1xbf16> to vector<240x1xbf16>
    %c0_6 = arith.constant 0 : index
    %c0_7 = arith.constant 0 : index
    %4 = vector.load %arg4[%c0_6, %c0_7] : memref<128x128xbf16, #tpu.memory_space<vmem>>, vector<128x128xbf16>
    %cst = arith.constant dense<0.000000e+00> : vector<240x128xf32>
    %5 = tpu.matmul %1, %4, %cst {dimension_numbers = #tpu.dot_dimension_numbers<[1], [0], [0], [1], [0, 0, 1, 1], [], []>} : vector<240x128xbf16>, vector<128x128xbf16>, vector<240x128xf32> -> vector<240x128xf32>
    %c0_8 = arith.constant 0 : index
    %c0_9 = arith.constant 0 : index
    %6 = vector.load %arg5[%c0_8, %c0_9] : memref<1x128xf32, #tpu.memory_space<vmem>>, vector<1x128xf32>
    %7 = vector.broadcast %6 : vector<1x128xf32> to vector<240x128xf32>
    %8 = arith.addf %5, %7 : vector<240x128xf32>
    %cst_10 = arith.constant 0.000000e+00 : f32
    %9 = vector.broadcast %cst_10 : f32 to vector<240x128xf32>
    %10 = arith.cmpf oge, %8, %9 : vector<240x128xf32>
    %cst_11 = arith.constant 1.000000e-01 : f32
    %11 = vector.broadcast %cst_11 : f32 to vector<240x128xf32>
    %12 = arith.mulf %11, %8 : vector<240x128xf32>
    %13 = arith.select %10, %8, %12 : vector<240x128xi1>, vector<240x128xf32>
    %14 = arith.extf %3 : vector<240x1xbf16> to vector<240x1xf32>
    %15 = vector.broadcast %14 : vector<240x1xf32> to vector<240x128xf32>
    %16 = arith.mulf %15, %13 : vector<240x128xf32>
    %17 = arith.truncf %16 : vector<240x128xf32> to vector<240x128xbf16>
    %cst_12 = arith.constant 0.000000e+00 : bf16
    %18 = vector.broadcast %cst_12 : bf16 to vector<8x128xbf16>
    %c0_13 = arith.constant 0 : index
    %c0_14 = arith.constant 0 : index
    %19 = vector.load %arg9[%c0_13, %c0_14] : memref<256x128xbf16, #tpu.memory_space<vmem>>, vector<8x128xbf16>
    tpu.vector_store %arg9[%c0_13, %c0_14], %18 {strides = array<i32>} : memref<256x128xbf16, #tpu.memory_space<vmem>>, vector<8x128xbf16>,
    %c248 = arith.constant 248 : index
    %c0_15 = arith.constant 0 : index
    %20 = vector.load %arg9[%c248, %c0_15] : memref<256x128xbf16, #tpu.memory_space<vmem>>, vector<8x128xbf16>
    tpu.vector_store %arg9[%c248, %c0_15], %18 {strides = array<i32>} : memref<256x128xbf16, #tpu.memory_space<vmem>>, vector<8x128xbf16>,
    %c8 = arith.constant 8 : index
    %c0_16 = arith.constant 0 : index
    %21 = vector.load %arg9[%c8, %c0_16] : memref<256x128xbf16, #tpu.memory_space<vmem>>, vector<240x128xbf16>
    tpu.vector_store %arg9[%c8, %c0_16], %17 {strides = array<i32>} : memref<256x128xbf16, #tpu.memory_space<vmem>>, vector<240x128xbf16>,
    %c7 = arith.constant 7 : index
    %c0_17 = arith.constant 0 : index
    %22 = vector.load %arg9[%c7, %c0_17] : memref<256x128xbf16, #tpu.memory_space<vmem>>, vector<240x128xbf16>
    %c0_18 = arith.constant 0 : index
    %c0_19 = arith.constant 0 : index
    %23 = vector.load %arg10[%c0_18, %c0_19] : memref<240x384xbf16, #tpu.memory_space<vmem>>, vector<240x128xbf16>
    tpu.vector_store %arg10[%c0_18, %c0_19], %22 {strides = array<i32>} : memref<240x384xbf16, #tpu.memory_space<vmem>>, vector<240x128xbf16>,
    %c0_20 = arith.constant 0 : index
    %c128 = arith.constant 128 : index
    %24 = vector.load %arg10[%c0_20, %c128] : memref<240x384xbf16, #tpu.memory_space<vmem>>, vector<240x128xbf16>
    tpu.vector_store %arg10[%c0_20, %c128], %17 {strides = array<i32>} : memref<240x384xbf16, #tpu.memory_space<vmem>>, vector<240x128xbf16>,
    %c9 = arith.constant 9 : index
    %c0_21 = arith.constant 0 : index
    %25 = vector.load %arg9[%c9, %c0_21] : memref<256x128xbf16, #tpu.memory_space<vmem>>, vector<240x128xbf16>
    %c0_22 = arith.constant 0 : index
    %c256 = arith.constant 256 : index
    %26 = vector.load %arg10[%c0_22, %c256] : memref<240x384xbf16, #tpu.memory_space<vmem>>, vector<240x128xbf16>
    tpu.vector_store %arg10[%c0_22, %c256], %25 {strides = array<i32>} : memref<240x384xbf16, #tpu.memory_space<vmem>>, vector<240x128xbf16>,
    %c0_23 = arith.constant 0 : index
    %c0_24 = arith.constant 0 : index
    %27 = vector.load %arg10[%c0_23, %c0_24] : memref<240x384xbf16, #tpu.memory_space<vmem>>, vector<192x384xbf16>
    %c0_25 = arith.constant 0 : index
    %c0_26 = arith.constant 0 : index
    %c0_27 = arith.constant 0 : index
    %28 = vector.load %arg6[%c0_25, %c0_26, %c0_27] : memref<3x384x128xbf16, #tpu.memory_space<vmem>>, vector<1x384x128xbf16>
    %29 = vector.shape_cast %28 : vector<1x384x128xbf16> to vector<384x128xbf16>
    %cst_28 = arith.constant dense<0.000000e+00> : vector<192x128xf32>
    %30 = tpu.matmul %27, %29, %cst_28 {dimension_numbers = #tpu.dot_dimension_numbers<[1], [0], [0], [1], [0, 0, 1, 1], [], []>} : vector<192x384xbf16>, vector<384x128xbf16>, vector<192x128xf32> -> vector<192x128xf32>
    %c24 = arith.constant 24 : index
    %c0_29 = arith.constant 0 : index
    %31 = vector.load %arg10[%c24, %c0_29] : memref<240x384xbf16, #tpu.memory_space<vmem>>, vector<192x384xbf16>
    %c1 = arith.constant 1 : index
    %c0_30 = arith.constant 0 : index
    %c0_31 = arith.constant 0 : index
    %32 = vector.load %arg6[%c1, %c0_30, %c0_31] : memref<3x384x128xbf16, #tpu.memory_space<vmem>>, vector<1x384x128xbf16>
    %33 = vector.shape_cast %32 : vector<1x384x128xbf16> to vector<384x128xbf16>
    %cst_32 = arith.constant dense<0.000000e+00> : vector<192x128xf32>
    %34 = tpu.matmul %31, %33, %cst_32 {dimension_numbers = #tpu.dot_dimension_numbers<[1], [0], [0], [1], [0, 0, 1, 1], [], []>} : vector<192x384xbf16>, vector<384x128xbf16>, vector<192x128xf32> -> vector<192x128xf32>
    %35 = arith.addf %30, %34 : vector<192x128xf32>
    %c48 = arith.constant 48 : index
    %c0_33 = arith.constant 0 : index
    %36 = vector.load %arg10[%c48, %c0_33] : memref<240x384xbf16, #tpu.memory_space<vmem>>, vector<192x384xbf16>
    %c2 = arith.constant 2 : index
    %c0_34 = arith.constant 0 : index
    %c0_35 = arith.constant 0 : index
    %37 = vector.load %arg6[%c2, %c0_34, %c0_35] : memref<3x384x128xbf16, #tpu.memory_space<vmem>>, vector<1x384x128xbf16>
    %38 = vector.shape_cast %37 : vector<1x384x128xbf16> to vector<384x128xbf16>
    %cst_36 = arith.constant dense<0.000000e+00> : vector<192x128xf32>
    %39 = tpu.matmul %36, %38, %cst_36 {dimension_numbers = #tpu.dot_dimension_numbers<[1], [0], [0], [1], [0, 0, 1, 1], [], []>} : vector<192x384xbf16>, vector<384x128xbf16>, vector<192x128xf32> -> vector<192x128xf32>
    %40 = arith.addf %35, %39 : vector<192x128xf32>
    %c0_37 = arith.constant 0 : index
    %c0_38 = arith.constant 0 : index
    %41 = vector.load %arg7[%c0_37, %c0_38] : memref<1x128xf32, #tpu.memory_space<vmem>>, vector<1x128xf32>
    %42 = vector.broadcast %41 : vector<1x128xf32> to vector<192x128xf32>
    %43 = arith.addf %40, %42 : vector<192x128xf32>
    %cst_39 = arith.constant 0.000000e+00 : f32
    %44 = vector.broadcast %cst_39 : f32 to vector<192x128xf32>
    %45 = arith.cmpf oge, %43, %44 : vector<192x128xf32>
    %cst_40 = arith.constant 1.000000e-01 : f32
    %46 = vector.broadcast %cst_40 : f32 to vector<192x128xf32>
    %47 = arith.mulf %46, %43 : vector<192x128xf32>
    %48 = arith.select %45, %43, %47 : vector<192x128xi1>, vector<192x128xf32>
    %c0_41 = arith.constant 0 : index
    %c0_42 = arith.constant 0 : index
    %c24_43 = arith.constant 24 : index
    %c0_44 = arith.constant 0 : index
    %49 = vector.load %arg3[%c0_41, %c0_42, %c24_43, %c0_44] : memref<1x1x240x128xbf16, #tpu.memory_space<vmem>>, vector<1x1x192x128xbf16>
    %50 = vector.shape_cast %49 : vector<1x1x192x128xbf16> to vector<192x128xbf16>
    %51 = arith.extf %50 : vector<192x128xbf16> to vector<192x128xf32>
    %52 = arith.addf %48, %51 : vector<192x128xf32>
    %c0_45 = arith.constant 0 : index
    %c0_46 = arith.constant 0 : index
    %c0_47 = arith.constant 0 : index
    %53 = vector.load %arg8[%c0_45, %c0_46, %c0_47] : memref<1x192x128xf32, #tpu.memory_space<vmem>>, vector<1x192x128xf32>
    %54 = vector.shape_cast %53 : vector<1x192x128xf32> to vector<192x128xf32>
    %55 = vector.shape_cast %52 : vector<192x128xf32> to vector<1x192x128xf32>
    tpu.vector_store %arg8[%c0_45, %c0_46, %c0_47], %55 {strides = array<i32>} : memref<1x192x128xf32, #tpu.memory_space<vmem>>, vector<1x192x128xf32>,
    return
  }
  func.func @transform_0(%arg0: i32, %arg1: i32) -> (i32, i32, i32) {
    %c0_i32 = arith.constant 0 : i32
    %c0_i32_0 = arith.constant 0 : i32
    %c0_i32_1 = arith.constant 0 : i32
    return %arg1, %c0_i32, %c0_i32_0 : i32, i32, i32
  }
  func.func @transform_1(%arg0: i32, %arg1: i32) -> (i32, i32, i32, i32) {
    %c0_i32 = arith.constant 0 : i32
    %c0_i32_0 = arith.constant 0 : i32
    %c0_i32_1 = arith.constant 0 : i32
    return %arg0, %arg1, %c0_i32, %c0_i32_0 : i32, i32, i32, i32
  }
  func.func @transform_2(%arg0: i32, %arg1: i32) -> (i32, i32) {
    %c0_i32 = arith.constant 0 : i32
    %c0_i32_0 = arith.constant 0 : i32
    %c0_i32_1 = arith.constant 0 : i32
    return %c0_i32, %c0_i32_0 : i32, i32
  }
  func.func @transform_3(%arg0: i32, %arg1: i32) -> (i32, i32) {
    %c0_i32 = arith.constant 0 : i32
    %c0_i32_0 = arith.constant 0 : i32
    %c0_i32_1 = arith.constant 0 : i32
    return %c0_i32, %c0_i32_0 : i32, i32
  }
  func.func @transform_4(%arg0: i32, %arg1: i32) -> (i32, i32, i32) {
    %c0_i32 = arith.constant 0 : i32
    %c0_i32_0 = arith.constant 0 : i32
    %c0_i32_1 = arith.constant 0 : i32
    %c0_i32_2 = arith.constant 0 : i32
    return %c0_i32, %c0_i32_0, %c0_i32_1 : i32, i32, i32
  }
  func.func @transform_5(%arg0: i32, %arg1: i32) -> (i32, i32) {
    %c0_i32 = arith.constant 0 : i32
    %c0_i32_0 = arith.constant 0 : i32
    %c0_i32_1 = arith.constant 0 : i32
    return %c0_i32, %c0_i32_0 : i32, i32
  }
  func.func @transform_6(%arg0: i32, %arg1: i32) -> (i32, i32, i32) {
    %c0_i32 = arith.constant 0 : i32
    %c0_i32_0 = arith.constant 0 : i32
    return %arg0, %arg1, %c0_i32 : i32, i32, i32
  }
}

</mosaic_0001>

<llo_original>
// kernel: tpu_custom_call.1
$region0: #{tpu_custom_call.1}
  #allocation0 [shape = 'u32[]', space=smem, size = 0x4, offset = 0x4, fixed_abs, tag = 'smem constant byte address 0x4 - core index']
  #allocation1 [shape = 'u32[144,128]{1,0:T(1,128)}', space=vmem, size = 0x12000, scoped, tag = 'internal scratch']
  #allocation2 [shape = 'bf16[256,128]{1,0:T(16,128)(2,1)}', space=vmem, size = 0x10000, scoped, tag = 'scratch operand']
  #allocation3 [shape = 'bf16[240,384]{1,0:T(16,128)(2,1)}', space=vmem, size = 0x2d000, scoped, tag = 'scratch operand']
  %s0 = inlined_call_operand.vmem [shape: bf16[2,240,1], index: 0, kind: input, shape index: {}]
  %s1 = inlined_call_operand.hbm [shape: bf16[2,2,240,128], index: 1, kind: input, shape index: {}]
  %s2 = inlined_call_operand.vmem [shape: bf16[128,128], index: 2, kind: input, shape index: {}]
  %s3 = inlined_call_operand.vmem [shape: f32[1,128], index: 3, kind: input, shape index: {}]
  %s4 = inlined_call_operand.hbm [shape: bf16[3,384,128], index: 4, kind: input, shape index: {}]
  %s5 = inlined_call_operand.vmem [shape: f32[1,128], index: 5, kind: input, shape index: {}]
  %s6 = inlined_call_operand.hbm [shape: f32[2,384,128], index: 6, kind: output, shape index: {}]
  %s7 = sld [smem:[#allocation0]]
  $region65: #{tpu_custom_call.1} parent=0
    _
  %s9 = ssub.s32 1, %s7
  %s10 = scalar_select 0, %s9, %s7
  $region1: #{tpu_custom_call.1} parent=0
    #allocation4 [shape = 'u8[122880]{0}', space=vmem, size = 0x1e000, scoped, tag = 'input window, operand 1']
    #allocation5 [shape = 's32[2]{0}', space=sflag, size = 0x8, scoped, tag = 'scoped memory for tpu_custom_call.1']
    #allocation6 [shape = 's32[2]{0}', space=sflag, size = 0x8, scoped, tag = 'scoped memory for tpu_custom_call.1']
    #allocation7 [shape = 'u8[294912]{0}', space=vmem, size = 0x48000, scoped, tag = 'input window, operand 4, single buffered']
    #allocation8 [shape = 's32[1]{0}', space=sflag, size = 0x4, scoped, tag = 'scoped memory for tpu_custom_call.1']
    #allocation9 [shape = 'u8[196608]{0}', space=vmem, size = 0x30000, scoped, tag = 'output window, operand 0']
    %11 = vsyncpa [#allocation5], 0
    %s12 = scalar_lea.sflag [#allocation5], 1
    %13 = vsyncpa %s12, 0
    %14 = vsyncpa [#allocation8], 0
    %15 = vsyncpa [#allocation6], 0
    %s16 = scalar_lea.sflag [#allocation6], 1
    %17 = vsyncpa %s16, 0
    loop: start=0, step=1, limit=6
    $region2: #{tpu_custom_call.1} parent=1 // loop_pre_header
      _
    $region3: #{tpu_custom_call.1} parent=1 // loop_header
      %s19 = sphi 0, %s23
      %p20 = scmp.ge.s32.totalorder %s19, 6
      %s26 = sphi 0, %s38
      %s27 = sphi 0, %s34
      %s28 = sphi 0, %s26
      %s29 = sphi 0, %s27
      %s30 = sphi 0, %s28
      %s31 = sphi 0, %s29
      %s41 = sphi 0, %s43
      %s44 = sphi 0, %s41
      %s45 = sphi 0, %s44
      %s61 = sphi 0, %s45
      %s69 = sphi 0, %s71
      %s72 = sphi 0, %s69
      %s73 = sphi 0, %s72
      %s89 = sphi 0, %s73
      %s93 = sphi 0, %s93
      %s95 = sphi 0, %s93
      %s96 = sphi 0, %s95
      %s110 = sphi 0, %s96
      %s114 = sphi 0, %s114
      %s116 = sphi 0, %s114
      %s117 = sphi 0, %s116
      %s131 = sphi 0, %s117
      %s135 = sphi 0, %s135
      %s137 = sphi 0, %s135
      %s138 = sphi 0, %s137
      %s152 = sphi 0, %s138
      %s156 = sphi 0, %s156
      %s158 = sphi 0, %s156
      %s159 = sphi 0, %s158
      %s173 = sphi 0, %s159
      %s181 = sphi 0, %s183
      %s184 = sphi 0, %s181
      %s185 = sphi 0, %s184
      %s201 = sphi 0, %s185
    $region4: #{tpu_custom_call.1} parent=1 // loop_header_branch
      %22 = sbr.rel (%p20) target = $region8
    $region5: #{tpu_custom_call.1} parent=1 // loop_body
      %s24 = ssub.s32 %s19, 1
      %s25 = ssub.s32 %s19, 2
      %s32 = sadd.s32 1, %s27
      %p33 = scmp.ge.s32.totalorder %s32, 2
      %s34 = scalar_select %p33, 0, %s32
      %s35 = sadd.s32 1, %s26
      %s36 = scalar_select %p33, %s35, %s26
      %p37 = scmp.ge.s32.totalorder %s36, 2
      %s38 = scalar_select %p37, 0, %s36
      %s39 = ssub.s32 %s27, %s34
      %p40 = scmp.eq.s32.totalorder %s39, 0
      %s42 = sadd.s32 %s41, 1
      %s43 = scalar_select %p40, %s41, %s42
      %p46 = pneg %p40
      %p47 = scmp.eq.s32.totalorder %s19, 3
      %p48 = por %p46, %p47
      %p49 = scmp.ne.s32.totalorder %s41, %s44
      %p50 = scmp.eq.s32.totalorder %s19, 0
      %p51 = por %p49, %p50
      %p52 = scmp.ne.s32.totalorder %s41, %s44
      %p53 = scmp.eq.s32.totalorder %s24, 3
      %p54 = por %p52, %p53
      %p55 = scmp.ne.s32.totalorder %s44, %s45
      %p56 = scmp.eq.s32.totalorder %s24, 0
      %p57 = por %p55, %p56
      %p58 = scmp.ne.s32.totalorder %s44, %s45
      %p59 = scmp.eq.s32.totalorder %s25, 3
      %p60 = por %p58, %p59
      %p62 = scmp.ne.s32.totalorder %s45, %s61
      %p63 = scmp.eq.s32.totalorder %s25, 0
      %p64 = por %p62, %p63
      %s65 = ssub.s32 %s26, %s38
      %s66 = ssub.s32 %s27, %s34
      %s67 = sor.u32 %s65, %s66
      %p68 = scmp.eq.s32.totalorder %s67, 0
      %s70 = sadd.s32 %s69, 1
      %s71 = scalar_select %p68, %s69, %s70
      %p74 = pneg %p68
      %p75 = scmp.eq.s32.totalorder %s19, 3
      %p76 = por %p74, %p75
      %p77 = scmp.ne.s32.totalorder %s69, %s72
      %p78 = scmp.eq.s32.totalorder %s19, 0
      %p79 = por %p77, %p78
      %p80 = scmp.ne.s32.totalorder %s69, %s72
      %p81 = scmp.eq.s32.totalorder %s24, 3
      %p82 = por %p80, %p81
      %p83 = scmp.ne.s32.totalorder %s72, %s73
      %p84 = scmp.eq.s32.totalorder %s24, 0
      %p85 = por %p83, %p84
      %p86 = scmp.ne.s32.totalorder %s72, %s73
      %p87 = scmp.eq.s32.totalorder %s25, 3
      %p88 = por %p86, %p87
      %p90 = scmp.ne.s32.totalorder %s73, %s89
      %p91 = scmp.eq.s32.totalorder %s25, 0
      %p92 = por %p90, %p91
      %s94 = sadd.s32 %s93, 1
      %p97 = scmp.eq.s32.totalorder %s19, 3
      %p98 = scmp.ne.s32.totalorder %s93, %s95
      %p99 = scmp.eq.s32.totalorder %s19, 0
      %p100 = por %p98, %p99
      %p101 = scmp.ne.s32.totalorder %s93, %s95
      %p102 = scmp.eq.s32.totalorder %s24, 3
      %p103 = por %p101, %p102
      %p104 = scmp.ne.s32.totalorder %s95, %s96
      %p105 = scmp.eq.s32.totalorder %s24, 0
      %p106 = por %p104, %p105
      %p107 = scmp.ne.s32.totalorder %s95, %s96
      %p108 = scmp.eq.s32.totalorder %s25, 3
      %p109 = por %p107, %p108
      %p111 = scmp.ne.s32.totalorder %s96, %s110
      %p112 = scmp.eq.s32.totalorder %s25, 0
      %p113 = por %p111, %p112
      %s115 = sadd.s32 %s114, 1
      %p118 = scmp.eq.s32.totalorder %s19, 3
      %p119 = scmp.ne.s32.totalorder %s114, %s116
      %p120 = scmp.eq.s32.totalorder %s19, 0
      %p121 = por %p119, %p120
      %p122 = scmp.ne.s32.totalorder %s114, %s116
      %p123 = scmp.eq.s32.totalorder %s24, 3
      %p124 = por %p122, %p123
      %p125 = scmp.ne.s32.totalorder %s116, %s117
      %p126 = scmp.eq.s32.totalorder %s24, 0
      %p127 = por %p125, %p126
      %p128 = scmp.ne.s32.totalorder %s116, %s117
      %p129 = scmp.eq.s32.totalorder %s25, 3
      %p130 = por %p128, %p129
      %p132 = scmp.ne.s32.totalorder %s117, %s131
      %p133 = scmp.eq.s32.totalorder %s25, 0
      %p134 = por %p132, %p133
      %s136 = sadd.s32 %s135, 1
      %p139 = scmp.eq.s32.totalorder %s19, 3
      %p140 = scmp.ne.s32.totalorder %s135, %s137
      %p141 = scmp.eq.s32.totalorder %s19, 0
      %p142 = por %p140, %p141
      %p143 = scmp.ne.s32.totalorder %s135, %s137
      %p144 = scmp.eq.s32.totalorder %s24, 3
      %p145 = por %p143, %p144
      %p146 = scmp.ne.s32.totalorder %s137, %s138
      %p147 = scmp.eq.s32.totalorder %s24, 0
      %p148 = por %p146, %p147
      %p149 = scmp.ne.s32.totalorder %s137, %s138
      %p150 = scmp.eq.s32.totalorder %s25, 3
      %p151 = por %p149, %p150
      %p153 = scmp.ne.s32.totalorder %s138, %s152
      %p154 = scmp.eq.s32.totalorder %s25, 0
      %p155 = por %p153, %p154
      %s157 = sadd.s32 %s156, 1
      %p160 = scmp.eq.s32.totalorder %s19, 3
      %p161 = scmp.ne.s32.totalorder %s156, %s158
      %p162 = scmp.eq.s32.totalorder %s19, 0
      %p163 = por %p161, %p162
      %p164 = scmp.ne.s32.totalorder %s156, %s158
      %p165 = scmp.eq.s32.totalorder %s24, 3
      %p166 = por %p164, %p165
      %p167 = scmp.ne.s32.totalorder %s158, %s159
      %p168 = scmp.eq.s32.totalorder %s24, 0
      %p169 = por %p167, %p168
      %p170 = scmp.ne.s32.totalorder %s158, %s159
      %p171 = scmp.eq.s32.totalorder %s25, 3
      %p172 = por %p170, %p171
      %p174 = scmp.ne.s32.totalorder %s159, %s173
      %p175 = scmp.eq.s32.totalorder %s25, 0
      %p176 = por %p174, %p175
      %s177 = ssub.s32 %s26, %s38
      %s178 = ssub.s32 %s27, %s34
      %s179 = sor.u32 %s177, %s178
      %p180 = scmp.eq.s32.totalorder %s179, 0
      %s182 = sadd.s32 %s181, 1
      %s183 = scalar_select %p180, %s181, %s182
      %p186 = pneg %p180
      %p187 = scmp.eq.s32.totalorder %s19, 3
      %p188 = por %p186, %p187
      %p189 = scmp.ne.s32.totalorder %s181, %s184
      %p190 = scmp.eq.s32.totalorder %s19, 0
      %p191 = por %p189, %p190
      %p192 = scmp.ne.s32.totalorder %s181, %s184
      %p193 = scmp.eq.s32.totalorder %s24, 3
      %p194 = por %p192, %p193
      %p195 = scmp.ne.s32.totalorder %s184, %s185
      %p196 = scmp.eq.s32.totalorder %s24, 0
      %p197 = por %p195, %p196
      %p198 = scmp.ne.s32.totalorder %s184, %s185
      %p199 = scmp.eq.s32.totalorder %s25, 3
      %p200 = por %p198, %p199
      %p202 = scmp.ne.s32.totalorder %s185, %s201
      %p203 = scmp.eq.s32.totalorder %s25, 0
      %p204 = por %p202, %p203
      %p205 = scmp.le.s32.totalorder 1, %s19
      %p206 = scmp.lt.s32.totalorder %s19, 5
      %p207 = pnand %p205, %p206
      %p208 = pneg %p207
      // Predicated region
      $region9: #{tpu_custom_call.1} parent=5 // pred_check
        _
      $region10: #{tpu_custom_call.1} parent=5 // pred_check_branch
        %210 = sbr.rel (%p207) target = $region12
      $region11: #{tpu_custom_call.1} parent=5 // pred_region
        %s211 = ssub.s32 %s19, 1
        // Predicated region
        $region13: #{tpu_custom_call.1} parent=11 // pred_check
          %p212 = pneg %p106
        $region14: #{tpu_custom_call.1} parent=11 // pred_check_branch
          %214 = sbr.rel (%p212) target = $region16
        $region15: #{tpu_custom_call.1} parent=11 // pred_region
          _
        $region16: #{tpu_custom_call.1} parent=11 // pred_fallthru
          _
        // Predicated region
        $region17: #{tpu_custom_call.1} parent=11 // pred_check
          %p215 = pneg %p127
        $region18: #{tpu_custom_call.1} parent=11 // pred_check_branch
          %217 = sbr.rel (%p215) target = $region20
        $region19: #{tpu_custom_call.1} parent=11 // pred_region
          _
        $region20: #{tpu_custom_call.1} parent=11 // pred_fallthru
          _
        // Predicated region
        $region21: #{tpu_custom_call.1} parent=11 // pred_check
          %p218 = pneg %p148
        $region22: #{tpu_custom_call.1} parent=11 // pred_check_branch
          %220 = sbr.rel (%p218) target = $region24
        $region23: #{tpu_custom_call.1} parent=11 // pred_region
          %s222 = ssub.s32 9216, 9216
          %223 = vsyncadd [#allocation8], %s222
          %s224 = sshll.u32 [#allocation7], 4
          %s225 = int_to_ptr.vmem [resolvable:$true] %s224
          %230 = dma.hbm_to_vmem [thread:$0]  %s4, 9216, %s225, [#allocation8], 64, 64, 4
        $region24: #{tpu_custom_call.1} parent=11 // pred_fallthru
          _
        // Predicated region
        $region25: #{tpu_custom_call.1} parent=11 // pred_check
          %p231 = pneg %p169
        $region26: #{tpu_custom_call.1} parent=11 // pred_check_branch
          %233 = sbr.rel (%p231) target = $region28
        $region27: #{tpu_custom_call.1} parent=11 // pred_region
          _
        $region28: #{tpu_custom_call.1} parent=11 // pred_fallthru
          _
      $region12: #{tpu_custom_call.1} parent=5 // pred_fallthru
        _
      %p234 = scmp.lt.s32.totalorder %s19, 4
      // Predicated region
      $region29: #{tpu_custom_call.1} parent=5 // pred_check
        %p235 = pneg %p234
      $region30: #{tpu_custom_call.1} parent=5 // pred_check_branch
        %237 = sbr.rel (%p235) target = $region32
      $region31: #{tpu_custom_call.1} parent=5 // pred_region
        // Predicated region
        $region33: #{tpu_custom_call.1} parent=31 // pred_check
          %p238 = pneg %p51
        $region34: #{tpu_custom_call.1} parent=31 // pred_check_branch
          %240 = sbr.rel (%p238) target = $region36
        $region35: #{tpu_custom_call.1} parent=31 // pred_region
          %p241 = scmp.lt.s32.totalorder %s27, 1
          %s242 = scalar_select %p241, %s27, 1
          %s243 = smul.addr %s242, 30
          %s244 = smul.addr %s243, 4
          %s245 = scalar_lea.vmem %s0, %s244
        $region36: #{tpu_custom_call.1} parent=31 // pred_fallthru
          _
        // Predicated region
        $region37: #{tpu_custom_call.1} parent=31 // pred_check
          %p246 = pneg %p79
        $region38: #{tpu_custom_call.1} parent=31 // pred_check_branch
          %248 = sbr.rel (%p246) target = $region40
        $region39: #{tpu_custom_call.1} parent=31 // pred_region
          %s249 = sand.u32 %s69, 1
          %s250 = scalar_lea.sflag [#allocation5], %s249
          %s251 = sand.u32 %s69, 1
          %s252 = smul.addr %s251, 120
          %s253 = scalar_lea.vmem [#allocation4], %s252
          %s255 = ssub.s32 1920, 1920
          %256 = vsyncadd %s250, %s255
          %s257 = smul.addr %s27, 30
          %s258 = smul.addr %s26, 60
          %s259 = sadd.s32 %s257, %s258
          %s260 = smul.addr %s259, 64
          %s261 = scalar_lea.hbm %s1, %s260
          %s262 = sshll.u32 %s253, 4
          %s263 = int_to_ptr.vmem [resolvable:$true] %s262
          %268 = dma.hbm_to_vmem [thread:$0]  %s261, 1920, %s263, %s250, 64, 64, 4
        $region40: #{tpu_custom_call.1} parent=31 // pred_fallthru
          _
      $region32: #{tpu_custom_call.1} parent=5 // pred_fallthru
        _
      %p269 = scmp.le.s32.totalorder 1, %s19
      %p270 = scmp.lt.s32.totalorder %s19, 5
      %p271 = pnand %p269, %p270
      %p272 = pneg %p271
      // Predicated region
      $region41: #{tpu_custom_call.1} parent=5 // pred_check
        _
      $region42: #{tpu_custom_call.1} parent=5 // pred_check_branch
        %274 = sbr.rel (%p271) target = $region44
      $region43: #{tpu_custom_call.1} parent=5 // pred_region
        %s275 = ssub.s32 %s19, 1
        %s276 = sand.u32 %s72, 1
        %s277 = scalar_lea.sflag [#allocation5], %s276
        %s278 = sand.u32 %s72, 1
        %s279 = smul.addr %s278, 120
        %s280 = scalar_lea.vmem [#allocation4], %s279
        // Predicated region
        $region45: #{tpu_custom_call.1} parent=43 // pred_check
          %p281 = pneg %p85
        $region46: #{tpu_custom_call.1} parent=43 // pred_check_branch
          %283 = sbr.rel (%p281) target = $region48
        $region47: #{tpu_custom_call.1} parent=43 // pred_region
          %284 = dma.done %s277, 1920
        $region48: #{tpu_custom_call.1} parent=43 // pred_fallthru
          _
        // Predicated region
        $region49: #{tpu_custom_call.1} parent=43 // pred_check
          %p285 = pneg %p148
        $region50: #{tpu_custom_call.1} parent=43 // pred_check_branch
          %287 = sbr.rel (%p285) target = $region52
        $region51: #{tpu_custom_call.1} parent=43 // pred_region
          %288 = dma.done [#allocation8], 9216
        $region52: #{tpu_custom_call.1} parent=43 // pred_fallthru
          _
        %p289 = scmp.lt.s32.totalorder %s29, 1
        %s290 = scalar_select %p289, %s29, 1
        %s291 = smul.addr %s290, 30
        %s292 = smul.addr %s291, 4
        %s293 = scalar_lea.vmem %s0, %s292
        %p294 = pneg %p57
        %p295 = pneg %p54
        %s296 = sand.u32 %s72, 1
        %s297 = scalar_lea.sflag [#allocation5], %s296
        %s298 = sand.u32 %s72, 1
        %s299 = smul.addr %s298, 120
        %s300 = scalar_lea.vmem [#allocation4], %s299
        %p301 = pneg %p85
        %p302 = pneg %p82
        %p303 = pneg %p106
        %p304 = pneg %p103
        %p305 = pneg %p127
        %p306 = pneg %p124
        %p307 = pneg %p148
        %p308 = pneg %p145
        %p309 = pneg %p169
        %p310 = pneg %p166
        %p311 = pneg %p197
        %p312 = pneg %p194
        %s313 = sand.u32 %s184, 1
        %s314 = scalar_lea.sflag [#allocation6], %s313
        %s315 = sand.u32 %s184, 1
        %s316 = smul.addr %s315, 192
        %s317 = scalar_lea.vmem [#allocation9], %s316
        %p318 = scmp.lt.s32.totalorder %s29, 1
        %s319 = scalar_select %p318, %s29, 1
        %s320 = smul.addr %s319, 30
        %s321 = smul.addr %s320, 4
        %s322 = scalar_lea.vmem %s0, %s321
        %s323 = smul.u32 24, %s29
        %v325 = vld [vmem:[%s280] sm:$0xf]
        %v326 = vld [vmem:[%s280 + $0x4] sm:$0xf]
        %v327 = vld [vmem:[%s280 + $0x8] sm:$0xf]
        %v328 = vld [vmem:[%s280 + $0xc] sm:$0xf]
        %v329 = vld [vmem:[%s280 + $0x10] sm:$0xf]
        %v330 = vld [vmem:[%s280 + $0x14] sm:$0xf]
        %v331 = vld [vmem:[%s280 + $0x18] sm:$0xf]
        %v332 = vld [vmem:[%s280 + $0x1c] sm:$0xf]
        %v333 = vld [vmem:[%s280 + $0x20] sm:$0xf]
        %v334 = vld [vmem:[%s280 + $0x24] sm:$0xf]
        %v335 = vld [vmem:[%s280 + $0x28] sm:$0xf]
        %v336 = vld [vmem:[%s280 + $0x2c] sm:$0xf]
        %v337 = vld [vmem:[%s280 + $0x30] sm:$0xf]
        %v338 = vld [vmem:[%s280 + $0x34] sm:$0xf]
        %v339 = vld [vmem:[%s280 + $0x38] sm:$0xf]
        %v340 = vld [vmem:[%s280 + $0x3c] sm:$0xf]
        %v341 = vld [vmem:[%s280 + $0x40] sm:$0xf]
        %v342 = vld [vmem:[%s280 + $0x44] sm:$0xf]
        %v343 = vld [vmem:[%s280 + $0x48] sm:$0xf]
        %v344 = vld [vmem:[%s280 + $0x4c] sm:$0xf]
        %v345 = vld [vmem:[%s280 + $0x50] sm:$0xf]
        %v346 = vld [vmem:[%s280 + $0x54] sm:$0xf]
        %v347 = vld [vmem:[%s280 + $0x58] sm:$0xf]
        %v348 = vld [vmem:[%s280 + $0x5c] sm:$0xf]
        %v349 = vld [vmem:[%s280 + $0x60] sm:$0xf]
        %v350 = vld [vmem:[%s280 + $0x64] sm:$0xf]
        %v351 = vld [vmem:[%s280 + $0x68] sm:$0xf]
        %v352 = vld [vmem:[%s280 + $0x6c] sm:$0xf]
        %v353 = vld [vmem:[%s280 + $0x70] sm:$0xf]
        %v354 = vld [vmem:[%s280 + $0x74] sm:$0xf]
        %v355 = vld [vmem:[%s322] sm:$0xf]
        %v356 = vld [vmem:[%s322 + $0x4] sm:$0xf]
        %v357 = vld [vmem:[%s322 + $0x8] sm:$0xf]
        %v358 = vld [vmem:[%s322 + $0xc] sm:$0xf]
        %v359 = vld [vmem:[%s322 + $0x10] sm:$0xf]
        %v360 = vld [vmem:[%s322 + $0x14] sm:$0xf]
        %v361 = vld [vmem:[%s322 + $0x18] sm:$0xf]
        %v362 = vld [vmem:[%s322 + $0x1c] sm:$0xf]
        %v363 = vld [vmem:[%s322 + $0x20] sm:$0xf]
        %v364 = vld [vmem:[%s322 + $0x24] sm:$0xf]
        %v365 = vld [vmem:[%s322 + $0x28] sm:$0xf]
        %v366 = vld [vmem:[%s322 + $0x2c] sm:$0xf]
        %v367 = vld [vmem:[%s322 + $0x30] sm:$0xf]
        %v368 = vld [vmem:[%s322 + $0x34] sm:$0xf]
        %v369 = vld [vmem:[%s322 + $0x38] sm:$0xf]
        %v370 = vld [vmem:[%s322 + $0x3c] sm:$0xf]
        %v371 = vld [vmem:[%s322 + $0x40] sm:$0xf]
        %v372 = vld [vmem:[%s322 + $0x44] sm:$0xf]
        %v373 = vld [vmem:[%s322 + $0x48] sm:$0xf]
        %v374 = vld [vmem:[%s322 + $0x4c] sm:$0xf]
        %v375 = vld [vmem:[%s322 + $0x50] sm:$0xf]
        %v376 = vld [vmem:[%s322 + $0x54] sm:$0xf]
        %v377 = vld [vmem:[%s322 + $0x58] sm:$0xf]
        %v378 = vld [vmem:[%s322 + $0x5c] sm:$0xf]
        %v379 = vld [vmem:[%s322 + $0x60] sm:$0xf]
        %v380 = vld [vmem:[%s322 + $0x64] sm:$0xf]
        %v381 = vld [vmem:[%s322 + $0x68] sm:$0xf]
        %v382 = vld [vmem:[%s322 + $0x6c] sm:$0xf]
        %v383 = vld [vmem:[%s322 + $0x70] sm:$0xf]
        %v384 = vld [vmem:[%s322 + $0x74] sm:$0xf]
        %v385 = vld [vmem:[%s2] sm:$0xf]
        %v386 = vld [vmem:[%s2 + $0x4] sm:$0xf]
        %v387 = vld [vmem:[%s2 + $0x8] sm:$0xf]
        %v388 = vld [vmem:[%s2 + $0xc] sm:$0xf]
        %v389 = vld [vmem:[%s2 + $0x10] sm:$0xf]
        %v390 = vld [vmem:[%s2 + $0x14] sm:$0xf]
        %v391 = vld [vmem:[%s2 + $0x18] sm:$0xf]
        %v392 = vld [vmem:[%s2 + $0x1c] sm:$0xf]
        %v393 = vld [vmem:[%s2 + $0x20] sm:$0xf]
        %v394 = vld [vmem:[%s2 + $0x24] sm:$0xf]
        %v395 = vld [vmem:[%s2 + $0x28] sm:$0xf]
        %v396 = vld [vmem:[%s2 + $0x2c] sm:$0xf]
        %v397 = vld [vmem:[%s2 + $0x30] sm:$0xf]
        %v398 = vld [vmem:[%s2 + $0x34] sm:$0xf]
        %v399 = vld [vmem:[%s2 + $0x38] sm:$0xf]
        %v400 = vld [vmem:[%s2 + $0x3c] sm:$0xf]
        %v401 = vld [vmem:[%s3] sm:$0x1]
        %v403 = vlaneseq
        %v404 = vshrl.u32 %v403, 7
        %v405 = vsub.s32 0, %v404
        %v406 = vrot.slane %v401, %v405
        %v438 = vunpack.c.l.b16 %v325
        %v439 = vunpack.c.l.b16 %v326
        %v440 = vunpack.c.l.b16 %v327
        %v441 = vunpack.c.l.b16 %v328
        %v442 = vunpack.c.l.b16 %v329
        %v443 = vunpack.c.l.b16 %v330
        %v444 = vunpack.c.l.b16 %v331
        %v445 = vunpack.c.l.b16 %v332
        %v446 = vunpack.c.l.b16 %v333
        %v447 = vunpack.c.l.b16 %v334
        %v448 = vunpack.c.l.b16 %v335
        %v449 = vunpack.c.l.b16 %v336
        %v450 = vunpack.c.l.b16 %v337
        %v451 = vunpack.c.l.b16 %v338
        %v452 = vunpack.c.l.b16 %v339
        %v453 = vunpack.c.l.b16 %v340
        %v454 = vunpack.c.l.b16 %v341
        %v455 = vunpack.c.l.b16 %v342
        %v456 = vunpack.c.l.b16 %v343
        %v457 = vunpack.c.l.b16 %v344
        %v458 = vunpack.c.l.b16 %v345
        %v459 = vunpack.c.l.b16 %v346
        %v460 = vunpack.c.l.b16 %v347
        %v461 = vunpack.c.l.b16 %v348
        %v462 = vunpack.c.l.b16 %v349
        %v463 = vunpack.c.l.b16 %v350
        %v464 = vunpack.c.l.b16 %v351
        %v465 = vunpack.c.l.b16 %v352
        %v466 = vunpack.c.l.b16 %v353
        %v467 = vunpack.c.l.b16 %v354
        %v468 = vpack.c.b16 %v439, %v438
        %v469 = vpack.c.b16 %v441, %v440
        %v470 = vpack.c.b16 %v443, %v442
        %v471 = vpack.c.b16 %v445, %v444
        %v472 = vpack.c.b16 %v447, %v446
        %v473 = vpack.c.b16 %v449, %v448
        %v474 = vpack.c.b16 %v451, %v450
        %v475 = vpack.c.b16 %v453, %v452
        %v476 = vpack.c.b16 %v455, %v454
        %v477 = vpack.c.b16 %v457, %v456
        %v478 = vpack.c.b16 %v459, %v458
        %v479 = vpack.c.b16 %v461, %v460
        %v480 = vpack.c.b16 %v463, %v462
        %v481 = vpack.c.b16 %v465, %v464
        %v482 = vpack.c.b16 %v467, %v466
        %v514 = vunpack.c.l.b16 %v385
        %v515 = vunpack.c.l.b16 %v386
        %v516 = vunpack.c.l.b16 %v387
        %v517 = vunpack.c.l.b16 %v388
        %v518 = vunpack.c.l.b16 %v389
        %v519 = vunpack.c.l.b16 %v390
        %v520 = vunpack.c.l.b16 %v391
        %v521 = vunpack.c.l.b16 %v392
        %v522 = vunpack.c.l.b16 %v393
        %v523 = vunpack.c.l.b16 %v394
        %v524 = vunpack.c.l.b16 %v395
        %v525 = vunpack.c.l.b16 %v396
        %v526 = vunpack.c.l.b16 %v397
        %v527 = vunpack.c.l.b16 %v398
        %v528 = vunpack.c.l.b16 %v399
        %v529 = vunpack.c.l.b16 %v400
        %v530 = vpack.c.b16 %v515, %v514
        %v531 = vpack.c.b16 %v517, %v516
        %v532 = vpack.c.b16 %v519, %v518
        %v533 = vpack.c.b16 %v521, %v520
        %v534 = vpack.c.b16 %v523, %v522
        %v535 = vpack.c.b16 %v525, %v524
        %v536 = vpack.c.b16 %v527, %v526
        %v537 = vpack.c.b16 %v529, %v528
        %546 = vmatprep.subr.bf16.mxu0 0
        %547 = vmatpush1.bf16.msra.mxu0 %v530
        %548 = vmatprep.subr.bf16.mxu0 0
        %549 = vmatpush1.bf16.msra.mxu0 %v531
        %550 = vmatprep.subr.bf16.mxu0 0
        %551 = vmatpush1.bf16.msra.mxu0 %v532
        %552 = vmatprep.subr.bf16.mxu0 0
        %553 = vmatpush1.bf16.msra.mxu0 %v533
        %554 = vmatprep.subr.bf16.mxu0 0
        %555 = vmatpush1.bf16.msra.mxu0 %v534
        %556 = vmatprep.subr.bf16.mxu0 0
        %557 = vmatpush1.bf16.msra.mxu0 %v535
        %558 = vmatprep.subr.bf16.mxu0 0
        %559 = vmatpush1.bf16.msra.mxu0 %v536
        %560 = vmatprep.subr.bf16.mxu0 0
        %561 = vmatpush1.bf16.msra.mxu0 %v537
        %562 = vmatprep.subr.bf16.mxu0 0
        %563 = vmatpush1.bf16.msra.mxu0 0
        %564 = vmatprep.subr.bf16.mxu0 0
        %565 = vmatpush1.bf16.msra.mxu0 0
        %566 = vmatprep.subr.bf16.mxu0 0
        %567 = vmatpush1.bf16.msra.mxu0 0
        %568 = vmatprep.subr.bf16.mxu0 0
        %569 = vmatpush1.bf16.msra.mxu0 0
        %570 = vmatprep.subr.bf16.mxu0 0
        %571 = vmatpush1.bf16.msra.mxu0 0
        %572 = vmatprep.subr.bf16.mxu0 0
        %573 = vmatpush1.bf16.msra.mxu0 0
        %574 = vmatprep.subr.bf16.mxu0 0
        %575 = vmatpush1.bf16.msra.mxu0 0
        %576 = vmatprep.subr.bf16.mxu0 0
        %577 = vmatpush1.bf16.msra.mxu0 0
        %578 = vmatprep.mubr.bf16.mxu0 0
        %579 = vmatmul.mubr.bf16.gmra.mrb[0].mxu0 %v468
        %v580 = vpop.f32.mrb[0].mxu0
        %v581 = vadd.f32 %v406, %v580
        %v582 = vpop.f32.mrb[0].mxu0
        %v583 = vpop.f32.mrb[0].mxu0
        %v584 = vadd.f32 %v406, %v583
        %v585 = vpop.f32.mrb[0].mxu0
        %586 = vmatprep.mubr.bf16.mxu0 0
        %587 = vmatmul.mubr.bf16.gmra.mrb[0].mxu0 %v469
        %v588 = vpop.f32.mrb[0].mxu0
        %v589 = vadd.f32 %v406, %v588
        %v590 = vpop.f32.mrb[0].mxu0
        %v591 = vpop.f32.mrb[0].mxu0
        %v592 = vadd.f32 %v406, %v591
        %v593 = vpop.f32.mrb[0].mxu0
        %594 = vmatprep.mubr.bf16.mxu0 0
        %595 = vmatmul.mubr.bf16.gmra.mrb[0].mxu0 %v470
        %v596 = vpop.f32.mrb[0].mxu0
        %v597 = vadd.f32 %v406, %v596
        %v598 = vpop.f32.mrb[0].mxu0
        %v599 = vpop.f32.mrb[0].mxu0
        %v600 = vadd.f32 %v406, %v599
        %v601 = vpop.f32.mrb[0].mxu0
        %602 = vmatprep.mubr.bf16.mxu0 0
        %603 = vmatmul.mubr.bf16.gmra.mrb[0].mxu0 %v471
        %v604 = vpop.f32.mrb[0].mxu0
        %v605 = vadd.f32 %v406, %v604
        %v606 = vpop.f32.mrb[0].mxu0
        %v607 = vpop.f32.mrb[0].mxu0
        %v608 = vadd.f32 %v406, %v607
        %v609 = vpop.f32.mrb[0].mxu0
        %610 = vmatprep.mubr.bf16.mxu0 0
        %611 = vmatmul.mubr.bf16.gmra.mrb[0].mxu0 %v472
        %v612 = vpop.f32.mrb[0].mxu0
        %v613 = vadd.f32 %v406, %v612
        %v614 = vpop.f32.mrb[0].mxu0
        %v615 = vpop.f32.mrb[0].mxu0
        %v616 = vadd.f32 %v406, %v615
        %v617 = vpop.f32.mrb[0].mxu0
        %618 = vmatprep.mubr.bf16.mxu0 0
        %619 = vmatmul.mubr.bf16.gmra.mrb[0].mxu0 %v473
        %v620 = vpop.f32.mrb[0].mxu0
        %v621 = vadd.f32 %v406, %v620
        %v622 = vpop.f32.mrb[0].mxu0
        %v623 = vpop.f32.mrb[0].mxu0
        %v624 = vadd.f32 %v406, %v623
        %v625 = vpop.f32.mrb[0].mxu0
        %626 = vmatprep.mubr.bf16.mxu0 0
        %627 = vmatmul.mubr.bf16.gmra.mrb[0].mxu0 %v474
        %v628 = vpop.f32.mrb[0].mxu0
        %v629 = vadd.f32 %v406, %v628
        %v630 = vpop.f32.mrb[0].mxu0
        %v631 = vpop.f32.mrb[0].mxu0
        %v632 = vadd.f32 %v406, %v631
        %v633 = vpop.f32.mrb[0].mxu0
        %634 = vmatprep.mubr.bf16.mxu0 0
        %635 = vmatmul.mubr.bf16.gmra.mrb[0].mxu0 %v475
        %v636 = vpop.f32.mrb[0].mxu0
        %v637 = vadd.f32 %v406, %v636
        %v638 = vpop.f32.mrb[0].mxu0
        %v639 = vpop.f32.mrb[0].mxu0
        %v640 = vadd.f32 %v406, %v639
        %v641 = vpop.f32.mrb[0].mxu0
        %642 = vmatprep.mubr.bf16.mxu0 0
        %643 = vmatmul.mubr.bf16.gmra.mrb[0].mxu0 %v476
        %v644 = vpop.f32.mrb[0].mxu0
        %v645 = vadd.f32 %v406, %v644
        %v646 = vpop.f32.mrb[0].mxu0
        %v647 = vpop.f32.mrb[0].mxu0
        %v648 = vadd.f32 %v406, %v647
        %v649 = vpop.f32.mrb[0].mxu0
        %650 = vmatprep.mubr.bf16.mxu0 0
        %651 = vmatmul.mubr.bf16.gmra.mrb[0].mxu0 %v477
        %v652 = vpop.f32.mrb[0].mxu0
        %v653 = vadd.f32 %v406, %v652
        %v654 = vpop.f32.mrb[0].mxu0
        %v655 = vpop.f32.mrb[0].mxu0
        %v656 = vadd.f32 %v406, %v655
        %v657 = vpop.f32.mrb[0].mxu0
        %658 = vmatprep.mubr.bf16.mxu0 0
        %659 = vmatmul.mubr.bf16.gmra.mrb[0].mxu0 %v478
        %v660 = vpop.f32.mrb[0].mxu0
        %v661 = vadd.f32 %v406, %v660
        %v662 = vpop.f32.mrb[0].mxu0
        %v663 = vpop.f32.mrb[0].mxu0
        %v664 = vadd.f32 %v406, %v663
        %v665 = vpop.f32.mrb[0].mxu0
        %666 = vmatprep.mubr.bf16.mxu0 0
        %667 = vmatmul.mubr.bf16.gmra.mrb[0].mxu0 %v479
        %v668 = vpop.f32.mrb[0].mxu0
        %v669 = vadd.f32 %v406, %v668
        %v670 = vpop.f32.mrb[0].mxu0
        %v671 = vpop.f32.mrb[0].mxu0
        %v672 = vadd.f32 %v406, %v671
        %v673 = vpop.f32.mrb[0].mxu0
        %674 = vmatprep.mubr.bf16.mxu0 0
        %675 = vmatmul.mubr.bf16.gmra.mrb[0].mxu0 %v480
        %v676 = vpop.f32.mrb[0].mxu0
        %v677 = vadd.f32 %v406, %v676
        %v678 = vpop.f32.mrb[0].mxu0
        %v679 = vpop.f32.mrb[0].mxu0
        %v680 = vadd.f32 %v406, %v679
        %v681 = vpop.f32.mrb[0].mxu0
        %682 = vmatprep.mubr.bf16.mxu0 0
        %683 = vmatmul.mubr.bf16.gmra.mrb[0].mxu0 %v481
        %v684 = vpop.f32.mrb[0].mxu0
        %v685 = vadd.f32 %v406, %v684
        %v686 = vpop.f32.mrb[0].mxu0
        %v687 = vpop.f32.mrb[0].mxu0
        %v688 = vadd.f32 %v406, %v687
        %v689 = vpop.f32.mrb[0].mxu0
        %690 = vmatprep.mubr.bf16.mxu0 0
        %691 = vmatmul.mubr.bf16.gmra.mrb[0].mxu0 %v482
        %v692 = vpop.f32.mrb[0].mxu0
        %v693 = vadd.f32 %v406, %v692
        %v694 = vpop.f32.mrb[0].mxu0
        %v695 = vpop.f32.mrb[0].mxu0
        %v696 = vadd.f32 %v406, %v695
        %v697 = vpop.f32.mrb[0].mxu0
        %698 = vdwg.mxu0
        %vm699 = vcmp.ge.f32.partialorder %v581, 0.0
        %vm700 = vcmp.ge.f32.partialorder %v584, 0.0
        %vm701 = vcmp.ge.f32.partialorder %v589, 0.0
        %vm702 = vcmp.ge.f32.partialorder %v592, 0.0
        %vm703 = vcmp.ge.f32.partialorder %v597, 0.0
        %vm704 = vcmp.ge.f32.partialorder %v600, 0.0
        %vm705 = vcmp.ge.f32.partialorder %v605, 0.0
        %vm706 = vcmp.ge.f32.partialorder %v608, 0.0
        %vm707 = vcmp.ge.f32.partialorder %v613, 0.0
        %vm708 = vcmp.ge.f32.partialorder %v616, 0.0
        %vm709 = vcmp.ge.f32.partialorder %v621, 0.0
        %vm710 = vcmp.ge.f32.partialorder %v624, 0.0
        %vm711 = vcmp.ge.f32.partialorder %v629, 0.0
        %vm712 = vcmp.ge.f32.partialorder %v632, 0.0
        %vm713 = vcmp.ge.f32.partialorder %v637, 0.0
        %vm714 = vcmp.ge.f32.partialorder %v640, 0.0
        %vm715 = vcmp.ge.f32.partialorder %v645, 0.0
        %vm716 = vcmp.ge.f32.partialorder %v648, 0.0
        %vm717 = vcmp.ge.f32.partialorder %v653, 0.0
        %vm718 = vcmp.ge.f32.partialorder %v656, 0.0
        %vm719 = vcmp.ge.f32.partialorder %v661, 0.0
        %vm720 = vcmp.ge.f32.partialorder %v664, 0.0
        %vm721 = vcmp.ge.f32.partialorder %v669, 0.0
        %vm722 = vcmp.ge.f32.partialorder %v672, 0.0
        %vm723 = vcmp.ge.f32.partialorder %v677, 0.0
        %vm724 = vcmp.ge.f32.partialorder %v680, 0.0
        %vm725 = vcmp.ge.f32.partialorder %v685, 0.0
        %vm726 = vcmp.ge.f32.partialorder %v688, 0.0
        %vm727 = vcmp.ge.f32.partialorder %v693, 0.0
        %vm728 = vcmp.ge.f32.partialorder %v696, 0.0
        %v729 = vmul.f32 %v581, 0.1
        %v730 = vmul.f32 %v584, 0.1
        %v731 = vmul.f32 %v589, 0.1
        %v732 = vmul.f32 %v592, 0.1
        %v733 = vmul.f32 %v597, 0.1
        %v734 = vmul.f32 %v600, 0.1
        %v735 = vmul.f32 %v605, 0.1
        %v736 = vmul.f32 %v608, 0.1
        %v737 = vmul.f32 %v613, 0.1
        %v738 = vmul.f32 %v616, 0.1
        %v739 = vmul.f32 %v621, 0.1
        %v740 = vmul.f32 %v624, 0.1
        %v741 = vmul.f32 %v629, 0.1
        %v742 = vmul.f32 %v632, 0.1
        %v743 = vmul.f32 %v637, 0.1
        %v744 = vmul.f32 %v640, 0.1
        %v745 = vmul.f32 %v645, 0.1
        %v746 = vmul.f32 %v648, 0.1
        %v747 = vmul.f32 %v653, 0.1
        %v748 = vmul.f32 %v656, 0.1
        %v749 = vmul.f32 %v661, 0.1
        %v750 = vmul.f32 %v664, 0.1
        %v751 = vmul.f32 %v669, 0.1
        %v752 = vmul.f32 %v672, 0.1
        %v753 = vmul.f32 %v677, 0.1
        %v754 = vmul.f32 %v680, 0.1
        %v755 = vmul.f32 %v685, 0.1
        %v756 = vmul.f32 %v688, 0.1
        %v757 = vmul.f32 %v693, 0.1
        %v758 = vmul.f32 %v696, 0.1
        %v759 = vsel %vm699, %v581, %v729
        %v760 = vsel %vm700, %v584, %v730
        %v761 = vsel %vm701, %v589, %v731
        %v762 = vsel %vm702, %v592, %v732
        %v763 = vsel %vm703, %v597, %v733
        %v764 = vsel %vm704, %v600, %v734
        %v765 = vsel %vm705, %v605, %v735
        %v766 = vsel %vm706, %v608, %v736
        %v767 = vsel %vm707, %v613, %v737
        %v768 = vsel %vm708, %v616, %v738
        %v769 = vsel %vm709, %v621, %v739
        %v770 = vsel %vm710, %v624, %v740
        %v771 = vsel %vm711, %v629, %v741
        %v772 = vsel %vm712, %v632, %v742
        %v773 = vsel %vm713, %v637, %v743
        %v774 = vsel %vm714, %v640, %v744
        %v775 = vsel %vm715, %v645, %v745
        %v776 = vsel %vm716, %v648, %v746
        %v777 = vsel %vm717, %v653, %v747
        %v778 = vsel %vm718, %v656, %v748
        %v779 = vsel %vm719, %v661, %v749
        %v780 = vsel %vm720, %v664, %v750
        %v781 = vsel %vm721, %v669, %v751
        %v782 = vsel %vm722, %v672, %v752
        %v783 = vsel %vm723, %v677, %v753
        %v784 = vsel %vm724, %v680, %v754
        %v785 = vsel %vm725, %v685, %v755
        %v786 = vsel %vm726, %v688, %v756
        %v787 = vsel %vm727, %v693, %v757
        %v788 = vsel %vm728, %v696, %v758
        %v789 = vunpack.c.l.bf16 %v355
        %v790 = vunpack.c.l.bf16 %v356
        %v791 = vunpack.c.l.bf16 %v357
        %v792 = vunpack.c.l.bf16 %v358
        %v793 = vunpack.c.l.bf16 %v359
        %v794 = vunpack.c.l.bf16 %v360
        %v795 = vunpack.c.l.bf16 %v361
        %v796 = vunpack.c.l.bf16 %v362
        %v797 = vunpack.c.l.bf16 %v363
        %v798 = vunpack.c.l.bf16 %v364
        %v799 = vunpack.c.l.bf16 %v365
        %v800 = vunpack.c.l.bf16 %v366
        %v801 = vunpack.c.l.bf16 %v367
        %v802 = vunpack.c.l.bf16 %v368
        %v803 = vunpack.c.l.bf16 %v369
        %v804 = vunpack.c.l.bf16 %v370
        %v805 = vunpack.c.l.bf16 %v371
        %v806 = vunpack.c.l.bf16 %v372
        %v807 = vunpack.c.l.bf16 %v373
        %v808 = vunpack.c.l.bf16 %v374
        %v809 = vunpack.c.l.bf16 %v375
        %v810 = vunpack.c.l.bf16 %v376
        %v811 = vunpack.c.l.bf16 %v377
        %v812 = vunpack.c.l.bf16 %v378
        %v813 = vunpack.c.l.bf16 %v379
        %v814 = vunpack.c.l.bf16 %v380
        %v815 = vunpack.c.l.bf16 %v381
        %v816 = vunpack.c.l.bf16 %v382
        %v817 = vunpack.c.l.bf16 %v383
        %v818 = vunpack.c.l.bf16 %v384
        %820 = vset.pattern.permute.xlu0 0
        %821 = vperm.xlu0 %820, %v789
        %v822 = vpop.permute.xlu0 %821
        %825 = vset.pattern.permute.xlu0 0
        %826 = vperm.xlu0 %825, %v790
        %v827 = vpop.permute.xlu0 %826
        %830 = vset.pattern.permute.xlu0 0
        %831 = vperm.xlu0 %830, %v791
        %v832 = vpop.permute.xlu0 %831
        %835 = vset.pattern.permute.xlu0 0
        %836 = vperm.xlu0 %835, %v792
        %v837 = vpop.permute.xlu0 %836
        %840 = vset.pattern.permute.xlu0 0
        %841 = vperm.xlu0 %840, %v793
        %v842 = vpop.permute.xlu0 %841
        %845 = vset.pattern.permute.xlu0 0
        %846 = vperm.xlu0 %845, %v794
        %v847 = vpop.permute.xlu0 %846
        %850 = vset.pattern.permute.xlu0 0
        %851 = vperm.xlu0 %850, %v795
        %v852 = vpop.permute.xlu0 %851
        %855 = vset.pattern.permute.xlu0 0
        %856 = vperm.xlu0 %855, %v796
        %v857 = vpop.permute.xlu0 %856
        %860 = vset.pattern.permute.xlu0 0
        %861 = vperm.xlu0 %860, %v797
        %v862 = vpop.permute.xlu0 %861
        %865 = vset.pattern.permute.xlu0 0
        %866 = vperm.xlu0 %865, %v798
        %v867 = vpop.permute.xlu0 %866
        %870 = vset.pattern.permute.xlu0 0
        %871 = vperm.xlu0 %870, %v799
        %v872 = vpop.permute.xlu0 %871
        %875 = vset.pattern.permute.xlu0 0
        %876 = vperm.xlu0 %875, %v800
        %v877 = vpop.permute.xlu0 %876
        %880 = vset.pattern.permute.xlu0 0
        %881 = vperm.xlu0 %880, %v801
        %v882 = vpop.permute.xlu0 %881
        %885 = vset.pattern.permute.xlu0 0
        %886 = vperm.xlu0 %885, %v802
        %v887 = vpop.permute.xlu0 %886
        %890 = vset.pattern.permute.xlu0 0
        %891 = vperm.xlu0 %890, %v803
        %v892 = vpop.permute.xlu0 %891
        %895 = vset.pattern.permute.xlu0 0
        %896 = vperm.xlu0 %895, %v804
        %v897 = vpop.permute.xlu0 %896
        %900 = vset.pattern.permute.xlu0 0
        %901 = vperm.xlu0 %900, %v805
        %v902 = vpop.permute.xlu0 %901
        %905 = vset.pattern.permute.xlu0 0
        %906 = vperm.xlu0 %905, %v806
        %v907 = vpop.permute.xlu0 %906
        %910 = vset.pattern.permute.xlu0 0
        %911 = vperm.xlu0 %910, %v807
        %v912 = vpop.permute.xlu0 %911
        %915 = vset.pattern.permute.xlu0 0
        %916 = vperm.xlu0 %915, %v808
        %v917 = vpop.permute.xlu0 %916
        %920 = vset.pattern.permute.xlu0 0
        %921 = vperm.xlu0 %920, %v809
        %v922 = vpop.permute.xlu0 %921
        %925 = vset.pattern.permute.xlu0 0
        %926 = vperm.xlu0 %925, %v810
        %v927 = vpop.permute.xlu0 %926
        %930 = vset.pattern.permute.xlu0 0
        %931 = vperm.xlu0 %930, %v811
        %v932 = vpop.permute.xlu0 %931
        %935 = vset.pattern.permute.xlu0 0
        %936 = vperm.xlu0 %935, %v812
        %v937 = vpop.permute.xlu0 %936
        %940 = vset.pattern.permute.xlu0 0
        %941 = vperm.xlu0 %940, %v813
        %v942 = vpop.permute.xlu0 %941
        %945 = vset.pattern.permute.xlu0 0
        %946 = vperm.xlu0 %945, %v814
        %v947 = vpop.permute.xlu0 %946
        %950 = vset.pattern.permute.xlu0 0
        %951 = vperm.xlu0 %950, %v815
        %v952 = vpop.permute.xlu0 %951
        %955 = vset.pattern.permute.xlu0 0
        %956 = vperm.xlu0 %955, %v816
        %v957 = vpop.permute.xlu0 %956
        %960 = vset.pattern.permute.xlu0 0
        %961 = vperm.xlu0 %960, %v817
        %v962 = vpop.permute.xlu0 %961
        %965 = vset.pattern.permute.xlu0 0
        %966 = vperm.xlu0 %965, %v818
        %v967 = vpop.permute.xlu0 %966
        %v969 = vmul.f32 %v822, %v759
        %v970 = vmul.f32 %v827, %v760
        %v971 = vmul.f32 %v832, %v761
        %v972 = vmul.f32 %v837, %v762
        %v973 = vmul.f32 %v842, %v763
        %v974 = vmul.f32 %v847, %v764
        %v975 = vmul.f32 %v852, %v765
        %v976 = vmul.f32 %v857, %v766
        %v977 = vmul.f32 %v862, %v767
        %v978 = vmul.f32 %v867, %v768
        %v979 = vmul.f32 %v872, %v769
        %v980 = vmul.f32 %v877, %v770
        %v981 = vmul.f32 %v882, %v771
        %v982 = vmul.f32 %v887, %v772
        %v983 = vmul.f32 %v892, %v773
        %v984 = vmul.f32 %v897, %v774
        %v985 = vmul.f32 %v902, %v775
        %v986 = vmul.f32 %v907, %v776
        %v987 = vmul.f32 %v912, %v777
        %v988 = vmul.f32 %v917, %v778
        %v989 = vmul.f32 %v922, %v779
        %v990 = vmul.f32 %v927, %v780
        %v991 = vmul.f32 %v932, %v781
        %v992 = vmul.f32 %v937, %v782
        %v993 = vmul.f32 %v942, %v783
        %v994 = vmul.f32 %v947, %v784
        %v995 = vmul.f32 %v952, %v785
        %v996 = vmul.f32 %v957, %v786
        %v997 = vmul.f32 %v962, %v787
        %v998 = vmul.f32 %v967, %v788
        %v999 = vpack.c.bf16 %v970, %v969
        %v1000 = vpack.c.bf16 %v972, %v971
        %v1001 = vpack.c.bf16 %v974, %v973
        %v1002 = vpack.c.bf16 %v976, %v975
        %v1003 = vpack.c.bf16 %v978, %v977
        %v1004 = vpack.c.bf16 %v980, %v979
        %v1005 = vpack.c.bf16 %v982, %v981
        %v1006 = vpack.c.bf16 %v984, %v983
        %v1007 = vpack.c.bf16 %v986, %v985
        %v1008 = vpack.c.bf16 %v988, %v987
        %v1009 = vpack.c.bf16 %v990, %v989
        %v1010 = vpack.c.bf16 %v992, %v991
        %v1011 = vpack.c.bf16 %v994, %v993
        %v1012 = vpack.c.bf16 %v996, %v995
        %v1013 = vpack.c.bf16 %v998, %v997
        %1014 = vst [vmem:[#allocation2] sm:$0xf] 0
        %1015 = vst [vmem:[#allocation2 + $0x78] sm:$0xf0] 0
        %vm1031 = vcmask 1043456
        %v1032 = vrot.slane %v999, 4
        %v1033 = vrot.slane %v1000, 4
        %v1034 = vsel %vm1031, %v1032, %v1033
        %v1035 = vrot.slane %v1001, 4
        %v1036 = vsel %vm1031, %v1033, %v1035
        %v1037 = vrot.slane %v1002, 4
        %v1038 = vsel %vm1031, %v1035, %v1037
        %v1039 = vrot.slane %v1003, 4
        %v1040 = vsel %vm1031, %v1037, %v1039
        %v1041 = vrot.slane %v1004, 4
        %v1042 = vsel %vm1031, %v1039, %v1041
        %v1043 = vrot.slane %v1005, 4
        %v1044 = vsel %vm1031, %v1041, %v1043
        %v1045 = vrot.slane %v1006, 4
        %v1046 = vsel %vm1031, %v1043, %v1045
        %v1047 = vrot.slane %v1007, 4
        %v1048 = vsel %vm1031, %v1045, %v1047
        %v1049 = vrot.slane %v1008, 4
        %v1050 = vsel %vm1031, %v1047, %v1049
        %v1051 = vrot.slane %v1009, 4
        %v1052 = vsel %vm1031, %v1049, %v1051
        %v1053 = vrot.slane %v1010, 4
        %v1054 = vsel %vm1031, %v1051, %v1053
        %v1055 = vrot.slane %v1011, 4
        %v1056 = vsel %vm1031, %v1053, %v1055
        %v1057 = vrot.slane %v1012, 4
        %v1058 = vsel %vm1031, %v1055, %v1057
        %v1059 = vrot.slane %v1013, 4
        %v1060 = vsel %vm1031, %v1057, %v1059
        %1077 = vst [vmem:[#allocation2] sm:$0xf0] %v1032
        %1078 = vst [vmem:[#allocation2 + $0x8] sm:$0xff] %v1034
        %1079 = vst [vmem:[#allocation2 + $0x10] sm:$0xff] %v1036
        %1080 = vst [vmem:[#allocation2 + $0x18] sm:$0xff] %v1038
        %1081 = vst [vmem:[#allocation2 + $0x20] sm:$0xff] %v1040
        %1082 = vst [vmem:[#allocation2 + $0x28] sm:$0xff] %v1042
        %1083 = vst [vmem:[#allocation2 + $0x30] sm:$0xff] %v1044
        %1084 = vst [vmem:[#allocation2 + $0x38] sm:$0xff] %v1046
        %1085 = vst [vmem:[#allocation2 + $0x40] sm:$0xff] %v1048
        %1086 = vst [vmem:[#allocation2 + $0x48] sm:$0xff] %v1050
        %1087 = vst [vmem:[#allocation2 + $0x50] sm:$0xff] %v1052
        %1088 = vst [vmem:[#allocation2 + $0x58] sm:$0xff] %v1054
        %1089 = vst [vmem:[#allocation2 + $0x60] sm:$0xff] %v1056
        %1090 = vst [vmem:[#allocation2 + $0x68] sm:$0xff] %v1058
        %1091 = vst [vmem:[#allocation2 + $0x70] sm:$0xff] %v1060
        %1092 = vst [vmem:[#allocation2 + $0x78] sm:$0xf] %v1059
        %v1093 = vld [vmem:[#allocation2] sm:$0xf8]
        %v1094 = vld [vmem:[#allocation2 + $0x8] sm:$0xff]
        %v1095 = vld [vmem:[#allocation2 + $0x10] sm:$0xff]
        %v1096 = vld [vmem:[#allocation2 + $0x18] sm:$0xff]
        %v1097 = vld [vmem:[#allocation2 + $0x20] sm:$0xff]
        %v1098 = vld [vmem:[#allocation2 + $0x28] sm:$0xff]
        %v1099 = vld [vmem:[#allocation2 + $0x30] sm:$0xff]
        %v1100 = vld [vmem:[#allocation2 + $0x38] sm:$0xff]
        %v1101 = vld [vmem:[#allocation2 + $0x40] sm:$0xff]
        %v1102 = vld [vmem:[#allocation2 + $0x48] sm:$0xff]
        %v1103 = vld [vmem:[#allocation2 + $0x50] sm:$0xff]
        %v1104 = vld [vmem:[#allocation2 + $0x58] sm:$0xff]
        %v1105 = vld [vmem:[#allocation2 + $0x60] sm:$0xff]
        %v1106 = vld [vmem:[#allocation2 + $0x68] sm:$0xff]
        %v1107 = vld [vmem:[#allocation2 + $0x70] sm:$0xff]
        %v1108 = vld [vmem:[#allocation2 + $0x78] sm:$0xf]
        %vm1109 = vsmask.f32 4352
        %v1111 = vshrl.u32 %v1093, 16
        %v1113 = vrot.slane %v1111, 3
        %v1114 = vshll.u32 %v1093, 16
        %v1116 = vrot.slane %v1114, 4
        %v1117 = vor.u32 %v1113, %v1116
        %v1119 = vshrl.u32 %v1094, 16
        %v1121 = vrot.slane %v1119, 3
        %v1122 = vshll.u32 %v1094, 16
        %v1124 = vrot.slane %v1122, 4
        %v1125 = vor.u32 %v1121, %v1124
        %v1126 = vsel %vm1109, %v1117, %v1125
        %v1128 = vshrl.u32 %v1095, 16
        %v1130 = vrot.slane %v1128, 3
        %v1131 = vshll.u32 %v1095, 16
        %v1133 = vrot.slane %v1131, 4
        %v1134 = vor.u32 %v1130, %v1133
        %v1135 = vsel %vm1109, %v1125, %v1134
        %v1137 = vshrl.u32 %v1096, 16
        %v1139 = vrot.slane %v1137, 3
        %v1140 = vshll.u32 %v1096, 16
        %v1142 = vrot.slane %v1140, 4
        %v1143 = vor.u32 %v1139, %v1142
        %v1144 = vsel %vm1109, %v1134, %v1143
        %v1146 = vshrl.u32 %v1097, 16
        %v1148 = vrot.slane %v1146, 3
        %v1149 = vshll.u32 %v1097, 16
        %v1151 = vrot.slane %v1149, 4
        %v1152 = vor.u32 %v1148, %v1151
        %v1153 = vsel %vm1109, %v1143, %v1152
        %v1155 = vshrl.u32 %v1098, 16
        %v1157 = vrot.slane %v1155, 3
        %v1158 = vshll.u32 %v1098, 16
        %v1160 = vrot.slane %v1158, 4
        %v1161 = vor.u32 %v1157, %v1160
        %v1162 = vsel %vm1109, %v1152, %v1161
        %v1164 = vshrl.u32 %v1099, 16
        %v1166 = vrot.slane %v1164, 3
        %v1167 = vshll.u32 %v1099, 16
        %v1169 = vrot.slane %v1167, 4
        %v1170 = vor.u32 %v1166, %v1169
        %v1171 = vsel %vm1109, %v1161, %v1170
        %v1173 = vshrl.u32 %v1100, 16
        %v1175 = vrot.slane %v1173, 3
        %v1176 = vshll.u32 %v1100, 16
        %v1178 = vrot.slane %v1176, 4
        %v1179 = vor.u32 %v1175, %v1178
        %v1180 = vsel %vm1109, %v1170, %v1179
        %v1182 = vshrl.u32 %v1101, 16
        %v1184 = vrot.slane %v1182, 3
        %v1185 = vshll.u32 %v1101, 16
        %v1187 = vrot.slane %v1185, 4
        %v1188 = vor.u32 %v1184, %v1187
        %v1189 = vsel %vm1109, %v1179, %v1188
        %v1191 = vshrl.u32 %v1102, 16
        %v1193 = vrot.slane %v1191, 3
        %v1194 = vshll.u32 %v1102, 16
        %v1196 = vrot.slane %v1194, 4
        %v1197 = vor.u32 %v1193, %v1196
        %v1198 = vsel %vm1109, %v1188, %v1197
        %v1200 = vshrl.u32 %v1103, 16
        %v1202 = vrot.slane %v1200, 3
        %v1203 = vshll.u32 %v1103, 16
        %v1205 = vrot.slane %v1203, 4
        %v1206 = vor.u32 %v1202, %v1205
        %v1207 = vsel %vm1109, %v1197, %v1206
        %v1209 = vshrl.u32 %v1104, 16
        %v1211 = vrot.slane %v1209, 3
        %v1212 = vshll.u32 %v1104, 16
        %v1214 = vrot.slane %v1212, 4
        %v1215 = vor.u32 %v1211, %v1214
        %v1216 = vsel %vm1109, %v1206, %v1215
        %v1218 = vshrl.u32 %v1105, 16
        %v1220 = vrot.slane %v1218, 3
        %v1221 = vshll.u32 %v1105, 16
        %v1223 = vrot.slane %v1221, 4
        %v1224 = vor.u32 %v1220, %v1223
        %v1225 = vsel %vm1109, %v1215, %v1224
        %v1227 = vshrl.u32 %v1106, 16
        %v1229 = vrot.slane %v1227, 3
        %v1230 = vshll.u32 %v1106, 16
        %v1232 = vrot.slane %v1230, 4
        %v1233 = vor.u32 %v1229, %v1232
        %v1234 = vsel %vm1109, %v1224, %v1233
        %v1236 = vshrl.u32 %v1107, 16
        %v1238 = vrot.slane %v1236, 3
        %v1239 = vshll.u32 %v1107, 16
        %v1241 = vrot.slane %v1239, 4
        %v1242 = vor.u32 %v1238, %v1241
        %v1243 = vsel %vm1109, %v1233, %v1242
        %v1245 = vshrl.u32 %v1108, 16
        %v1247 = vrot.slane %v1245, 3
        %v1248 = vshll.u32 %v1108, 16
        %v1250 = vrot.slane %v1248, 4
        %v1251 = vor.u32 %v1247, %v1250
        %v1252 = vsel %vm1109, %v1242, %v1251
        %1268 = vst [vmem:[#allocation3] sm:$0xff] %v1126
        %1269 = vst [vmem:[#allocation3 + $0x18] sm:$0xff] %v1135
        %1270 = vst [vmem:[#allocation3 + $0x30] sm:$0xff] %v1144
        %1271 = vst [vmem:[#allocation3 + $0x48] sm:$0xff] %v1153
        %1272 = vst [vmem:[#allocation3 + $0x60] sm:$0xff] %v1162
        %1273 = vst [vmem:[#allocation3 + $0x78] sm:$0xff] %v1171
        %1274 = vst [vmem:[#allocation3 + $0x90] sm:$0xff] %v1180
        %1275 = vst [vmem:[#allocation3 + $0xa8] sm:$0xff] %v1189
        %1276 = vst [vmem:[#allocation3 + $0xc0] sm:$0xff] %v1198
        %1277 = vst [vmem:[#allocation3 + $0xd8] sm:$0xff] %v1207
        %1278 = vst [vmem:[#allocation3 + $0xf0] sm:$0xff] %v1216
        %1279 = vst [vmem:[#allocation3 + $0x108] sm:$0xff] %v1225
        %1280 = vst [vmem:[#allocation3 + $0x120] sm:$0xff] %v1234
        %1281 = vst [vmem:[#allocation3 + $0x138] sm:$0xff] %v1243
        %1282 = vst [vmem:[#allocation3 + $0x150] sm:$0xff] %v1252
        %1283 = vst [vmem:[#allocation3 + $0x8] sm:$0xff] %v999
        %1284 = vst [vmem:[#allocation3 + $0x20] sm:$0xff] %v1000
        %1285 = vst [vmem:[#allocation3 + $0x38] sm:$0xff] %v1001
        %1286 = vst [vmem:[#allocation3 + $0x50] sm:$0xff] %v1002
        %1287 = vst [vmem:[#allocation3 + $0x68] sm:$0xff] %v1003
        %1288 = vst [vmem:[#allocation3 + $0x80] sm:$0xff] %v1004
        %1289 = vst [vmem:[#allocation3 + $0x98] sm:$0xff] %v1005
        %1290 = vst [vmem:[#allocation3 + $0xb0] sm:$0xff] %v1006
        %1291 = vst [vmem:[#allocation3 + $0xc8] sm:$0xff] %v1007
        %1292 = vst [vmem:[#allocation3 + $0xe0] sm:$0xff] %v1008
        %1293 = vst [vmem:[#allocation3 + $0xf8] sm:$0xff] %v1009
        %1294 = vst [vmem:[#allocation3 + $0x110] sm:$0xff] %v1010
        %1295 = vst [vmem:[#allocation3 + $0x128] sm:$0xff] %v1011
        %1296 = vst [vmem:[#allocation3 + $0x140] sm:$0xff] %v1012
        %1297 = vst [vmem:[#allocation3 + $0x158] sm:$0xff] %v1013
        %v1298 = vld [vmem:[#allocation2] sm:$0xf0]
        %v1299 = vld [vmem:[#allocation2 + $0x8] sm:$0xff]
        %v1300 = vld [vmem:[#allocation2 + $0x10] sm:$0xff]
        %v1301 = vld [vmem:[#allocation2 + $0x18] sm:$0xff]
        %v1302 = vld [vmem:[#allocation2 + $0x20] sm:$0xff]
        %v1303 = vld [vmem:[#allocation2 + $0x28] sm:$0xff]
        %v1304 = vld [vmem:[#allocation2 + $0x30] sm:$0xff]
        %v1305 = vld [vmem:[#allocation2 + $0x38] sm:$0xff]
        %v1306 = vld [vmem:[#allocation2 + $0x40] sm:$0xff]
        %v1307 = vld [vmem:[#allocation2 + $0x48] sm:$0xff]
        %v1308 = vld [vmem:[#allocation2 + $0x50] sm:$0xff]
        %v1309 = vld [vmem:[#allocation2 + $0x58] sm:$0xff]
        %v1310 = vld [vmem:[#allocation2 + $0x60] sm:$0xff]
        %v1311 = vld [vmem:[#allocation2 + $0x68] sm:$0xff]
        %v1312 = vld [vmem:[#allocation2 + $0x70] sm:$0xff]
        %v1313 = vld [vmem:[#allocation2 + $0x78] sm:$0x1f]
        %vm1314 = vsmask.f32 3328
        %v1316 = vshrl.u32 %v1298, 16
        %v1318 = vrot.slane %v1316, 4
        %v1319 = vshll.u32 %v1298, 16
        %v1321 = vrot.slane %v1319, 5
        %v1322 = vor.u32 %v1318, %v1321
        %v1324 = vshrl.u32 %v1299, 16
        %v1326 = vrot.slane %v1324, 4
        %v1327 = vshll.u32 %v1299, 16
        %v1329 = vrot.slane %v1327, 5
        %v1330 = vor.u32 %v1326, %v1329
        %v1331 = vsel %vm1314, %v1322, %v1330
        %v1333 = vshrl.u32 %v1300, 16
        %v1335 = vrot.slane %v1333, 4
        %v1336 = vshll.u32 %v1300, 16
        %v1338 = vrot.slane %v1336, 5
        %v1339 = vor.u32 %v1335, %v1338
        %v1340 = vsel %vm1314, %v1330, %v1339
        %v1342 = vshrl.u32 %v1301, 16
        %v1344 = vrot.slane %v1342, 4
        %v1345 = vshll.u32 %v1301, 16
        %v1347 = vrot.slane %v1345, 5
        %v1348 = vor.u32 %v1344, %v1347
        %v1349 = vsel %vm1314, %v1339, %v1348
        %v1351 = vshrl.u32 %v1302, 16
        %v1353 = vrot.slane %v1351, 4
        %v1354 = vshll.u32 %v1302, 16
        %v1356 = vrot.slane %v1354, 5
        %v1357 = vor.u32 %v1353, %v1356
        %v1358 = vsel %vm1314, %v1348, %v1357
        %v1360 = vshrl.u32 %v1303, 16
        %v1362 = vrot.slane %v1360, 4
        %v1363 = vshll.u32 %v1303, 16
        %v1365 = vrot.slane %v1363, 5
        %v1366 = vor.u32 %v1362, %v1365
        %v1367 = vsel %vm1314, %v1357, %v1366
        %v1369 = vshrl.u32 %v1304, 16
        %v1371 = vrot.slane %v1369, 4
        %v1372 = vshll.u32 %v1304, 16
        %v1374 = vrot.slane %v1372, 5
        %v1375 = vor.u32 %v1371, %v1374
        %v1376 = vsel %vm1314, %v1366, %v1375
        %v1378 = vshrl.u32 %v1305, 16
        %v1380 = vrot.slane %v1378, 4
        %v1381 = vshll.u32 %v1305, 16
        %v1383 = vrot.slane %v1381, 5
        %v1384 = vor.u32 %v1380, %v1383
        %v1385 = vsel %vm1314, %v1375, %v1384
        %v1387 = vshrl.u32 %v1306, 16
        %v1389 = vrot.slane %v1387, 4
        %v1390 = vshll.u32 %v1306, 16
        %v1392 = vrot.slane %v1390, 5
        %v1393 = vor.u32 %v1389, %v1392
        %v1394 = vsel %vm1314, %v1384, %v1393
        %v1396 = vshrl.u32 %v1307, 16
        %v1398 = vrot.slane %v1396, 4
        %v1399 = vshll.u32 %v1307, 16
        %v1401 = vrot.slane %v1399, 5
        %v1402 = vor.u32 %v1398, %v1401
        %v1403 = vsel %vm1314, %v1393, %v1402
        %v1405 = vshrl.u32 %v1308, 16
        %v1407 = vrot.slane %v1405, 4
        %v1408 = vshll.u32 %v1308, 16
        %v1410 = vrot.slane %v1408, 5
        %v1411 = vor.u32 %v1407, %v1410
        %v1412 = vsel %vm1314, %v1402, %v1411
        %v1414 = vshrl.u32 %v1309, 16
        %v1416 = vrot.slane %v1414, 4
        %v1417 = vshll.u32 %v1309, 16
        %v1419 = vrot.slane %v1417, 5
        %v1420 = vor.u32 %v1416, %v1419
        %v1421 = vsel %vm1314, %v1411, %v1420
        %v1423 = vshrl.u32 %v1310, 16
        %v1425 = vrot.slane %v1423, 4
        %v1426 = vshll.u32 %v1310, 16
        %v1428 = vrot.slane %v1426, 5
        %v1429 = vor.u32 %v1425, %v1428
        %v1430 = vsel %vm1314, %v1420, %v1429
        %v1432 = vshrl.u32 %v1311, 16
        %v1434 = vrot.slane %v1432, 4
        %v1435 = vshll.u32 %v1311, 16
        %v1437 = vrot.slane %v1435, 5
        %v1438 = vor.u32 %v1434, %v1437
        %v1439 = vsel %vm1314, %v1429, %v1438
        %v1441 = vshrl.u32 %v1312, 16
        %v1443 = vrot.slane %v1441, 4
        %v1444 = vshll.u32 %v1312, 16
        %v1446 = vrot.slane %v1444, 5
        %v1447 = vor.u32 %v1443, %v1446
        %v1448 = vsel %vm1314, %v1438, %v1447
        %v1450 = vshrl.u32 %v1313, 16
        %v1452 = vrot.slane %v1450, 4
        %v1453 = vshll.u32 %v1313, 16
        %v1455 = vrot.slane %v1453, 5
        %v1456 = vor.u32 %v1452, %v1455
        %v1457 = vsel %vm1314, %v1447, %v1456
        %1473 = vst [vmem:[#allocation3 + $0x10] sm:$0xff] %v1331
        %1474 = vst [vmem:[#allocation3 + $0x28] sm:$0xff] %v1340
        %1475 = vst [vmem:[#allocation3 + $0x40] sm:$0xff] %v1349
        %1476 = vst [vmem:[#allocation3 + $0x58] sm:$0xff] %v1358
        %1477 = vst [vmem:[#allocation3 + $0x70] sm:$0xff] %v1367
        %1478 = vst [vmem:[#allocation3 + $0x88] sm:$0xff] %v1376
        %1479 = vst [vmem:[#allocation3 + $0xa0] sm:$0xff] %v1385
        %1480 = vst [vmem:[#allocation3 + $0xb8] sm:$0xff] %v1394
        %1481 = vst [vmem:[#allocation3 + $0xd0] sm:$0xff] %v1403
        %1482 = vst [vmem:[#allocation3 + $0xe8] sm:$0xff] %v1412
        %1483 = vst [vmem:[#allocation3 + $0x100] sm:$0xff] %v1421
        %1484 = vst [vmem:[#allocation3 + $0x118] sm:$0xff] %v1430
        %1485 = vst [vmem:[#allocation3 + $0x130] sm:$0xff] %v1439
        %1486 = vst [vmem:[#allocation3 + $0x148] sm:$0xff] %v1448
        %1487 = vst [vmem:[#allocation3 + $0x160] sm:$0xff] %v1457
        %v1488 = vld [vmem:[#allocation3] sm:$0xff]
        %v1489 = vld [vmem:[#allocation3 + $0x8] sm:$0xff]
        %v1490 = vld [vmem:[#allocation3 + $0x10] sm:$0xff]
        %v1491 = vld [vmem:[#allocation3 + $0x18] sm:$0xff]
        %v1492 = vld [vmem:[#allocation3 + $0x20] sm:$0xff]
        %v1493 = vld [vmem:[#allocation3 + $0x28] sm:$0xff]
        %v1494 = vld [vmem:[#allocation3 + $0x30] sm:$0xff]
        %v1495 = vld [vmem:[#allocation3 + $0x38] sm:$0xff]
        %v1496 = vld [vmem:[#allocation3 + $0x40] sm:$0xff]
        %v1497 = vld [vmem:[#allocation3 + $0x48] sm:$0xff]
        %v1498 = vld [vmem:[#allocation3 + $0x50] sm:$0xff]
        %v1499 = vld [vmem:[#allocation3 + $0x58] sm:$0xff]
        %v1500 = vld [vmem:[#allocation3 + $0x60] sm:$0xff]
        %v1501 = vld [vmem:[#allocation3 + $0x68] sm:$0xff]
        %v1502 = vld [vmem:[#allocation3 + $0x70] sm:$0xff]
        %v1503 = vld [vmem:[#allocation3 + $0x78] sm:$0xff]
        %v1504 = vld [vmem:[#allocation3 + $0x80] sm:$0xff]
        %v1505 = vld [vmem:[#allocation3 + $0x88] sm:$0xff]
        %v1506 = vld [vmem:[#allocation3 + $0x90] sm:$0xff]
        %v1507 = vld [vmem:[#allocation3 + $0x98] sm:$0xff]
        %v1508 = vld [vmem:[#allocation3 + $0xa0] sm:$0xff]
        %v1509 = vld [vmem:[#allocation3 + $0xa8] sm:$0xff]
        %v1510 = vld [vmem:[#allocation3 + $0xb0] sm:$0xff]
        %v1511 = vld [vmem:[#allocation3 + $0xb8] sm:$0xff]
        %v1512 = vld [vmem:[#allocation3 + $0xc0] sm:$0xff]
        %v1513 = vld [vmem:[#allocation3 + $0xc8] sm:$0xff]
        %v1514 = vld [vmem:[#allocation3 + $0xd0] sm:$0xff]
        %v1515 = vld [vmem:[#allocation3 + $0xd8] sm:$0xff]
        %v1516 = vld [vmem:[#allocation3 + $0xe0] sm:$0xff]
        %v1517 = vld [vmem:[#allocation3 + $0xe8] sm:$0xff]
        %v1518 = vld [vmem:[#allocation3 + $0xf0] sm:$0xff]
        %v1519 = vld [vmem:[#allocation3 + $0xf8] sm:$0xff]
        %v1520 = vld [vmem:[#allocation3 + $0x100] sm:$0xff]
        %v1521 = vld [vmem:[#allocation3 + $0x108] sm:$0xff]
        %v1522 = vld [vmem:[#allocation3 + $0x110] sm:$0xff]
        %v1523 = vld [vmem:[#allocation3 + $0x118] sm:$0xff]
        %v1524 = vld [vmem:[#allocation7] sm:$0xf]
        %v1525 = vld [vmem:[#allocation7 + $0x4] sm:$0xf]
        %v1526 = vld [vmem:[#allocation7 + $0x8] sm:$0xf]
        %v1527 = vld [vmem:[#allocation7 + $0xc] sm:$0xf]
        %v1528 = vld [vmem:[#allocation7 + $0x10] sm:$0xf]
        %v1529 = vld [vmem:[#allocation7 + $0x14] sm:$0xf]
        %v1530 = vld [vmem:[#allocation7 + $0x18] sm:$0xf]
        %v1531 = vld [vmem:[#allocation7 + $0x1c] sm:$0xf]
        %v1532 = vld [vmem:[#allocation7 + $0x20] sm:$0xf]
        %v1533 = vld [vmem:[#allocation7 + $0x24] sm:$0xf]
        %v1534 = vld [vmem:[#allocation7 + $0x28] sm:$0xf]
        %v1535 = vld [vmem:[#allocation7 + $0x2c] sm:$0xf]
        %v1536 = vld [vmem:[#allocation7 + $0x30] sm:$0xf]
        %v1537 = vld [vmem:[#allocation7 + $0x34] sm:$0xf]
        %v1538 = vld [vmem:[#allocation7 + $0x38] sm:$0xf]
        %v1539 = vld [vmem:[#allocation7 + $0x3c] sm:$0xf]
        %v1540 = vld [vmem:[#allocation7 + $0x40] sm:$0xf]
        %v1541 = vld [vmem:[#allocation7 + $0x44] sm:$0xf]
        %v1542 = vld [vmem:[#allocation7 + $0x48] sm:$0xf]
        %v1543 = vld [vmem:[#allocation7 + $0x4c] sm:$0xf]
        %v1544 = vld [vmem:[#allocation7 + $0x50] sm:$0xf]
        %v1545 = vld [vmem:[#allocation7 + $0x54] sm:$0xf]
        %v1546 = vld [vmem:[#allocation7 + $0x58] sm:$0xf]
        %v1547 = vld [vmem:[#allocation7 + $0x5c] sm:$0xf]
        %v1548 = vld [vmem:[#allocation7 + $0x60] sm:$0xf]
        %v1549 = vld [vmem:[#allocation7 + $0x64] sm:$0xf]
        %v1550 = vld [vmem:[#allocation7 + $0x68] sm:$0xf]
        %v1551 = vld [vmem:[#allocation7 + $0x6c] sm:$0xf]
        %v1552 = vld [vmem:[#allocation7 + $0x70] sm:$0xf]
        %v1553 = vld [vmem:[#allocation7 + $0x74] sm:$0xf]
        %v1554 = vld [vmem:[#allocation7 + $0x78] sm:$0xf]
        %v1555 = vld [vmem:[#allocation7 + $0x7c] sm:$0xf]
        %v1556 = vld [vmem:[#allocation7 + $0x80] sm:$0xf]
        %v1557 = vld [vmem:[#allocation7 + $0x84] sm:$0xf]
        %v1558 = vld [vmem:[#allocation7 + $0x88] sm:$0xf]
        %v1559 = vld [vmem:[#allocation7 + $0x8c] sm:$0xf]
        %v1560 = vld [vmem:[#allocation7 + $0x90] sm:$0xf]
        %v1561 = vld [vmem:[#allocation7 + $0x94] sm:$0xf]
        %v1562 = vld [vmem:[#allocation7 + $0x98] sm:$0xf]
        %v1563 = vld [vmem:[#allocation7 + $0x9c] sm:$0xf]
        %v1564 = vld [vmem:[#allocation7 + $0xa0] sm:$0xf]
        %v1565 = vld [vmem:[#allocation7 + $0xa4] sm:$0xf]
        %v1566 = vld [vmem:[#allocation7 + $0xa8] sm:$0xf]
        %v1567 = vld [vmem:[#allocation7 + $0xac] sm:$0xf]
        %v1568 = vld [vmem:[#allocation7 + $0xb0] sm:$0xf]
        %v1569 = vld [vmem:[#allocation7 + $0xb4] sm:$0xf]
        %v1570 = vld [vmem:[#allocation7 + $0xb8] sm:$0xf]
        %v1571 = vld [vmem:[#allocation7 + $0xbc] sm:$0xf]
        %v1572 = vld [vmem:[#allocation3 + $0x18] sm:$0xf0]
        %v1573 = vld [vmem:[#allocation3 + $0x20] sm:$0xf0]
        %v1574 = vld [vmem:[#allocation3 + $0x28] sm:$0xf0]
        %v1575 = vld [vmem:[#allocation3 + $0x120] sm:$0xff]
        %v1576 = vld [vmem:[#allocation3 + $0x128] sm:$0xff]
        %v1577 = vld [vmem:[#allocation3 + $0x130] sm:$0xff]
        %v1578 = vld [vmem:[#allocation3 + $0x138] sm:$0xf]
        %v1579 = vld [vmem:[#allocation3 + $0x140] sm:$0xf]
        %v1580 = vld [vmem:[#allocation3 + $0x148] sm:$0xf]
        %s1581 = scalar_lea.vmem [#allocation7], 192
        %v1582 = vld [vmem:[%s1581] sm:$0xf]
        %v1583 = vld [vmem:[%s1581 + $0x4] sm:$0xf]
        %v1584 = vld [vmem:[%s1581 + $0x8] sm:$0xf]
        %v1585 = vld [vmem:[%s1581 + $0xc] sm:$0xf]
        %v1586 = vld [vmem:[%s1581 + $0x10] sm:$0xf]
        %v1587 = vld [vmem:[%s1581 + $0x14] sm:$0xf]
        %v1588 = vld [vmem:[%s1581 + $0x18] sm:$0xf]
        %v1589 = vld [vmem:[%s1581 + $0x1c] sm:$0xf]
        %v1590 = vld [vmem:[%s1581 + $0x20] sm:$0xf]
        %v1591 = vld [vmem:[%s1581 + $0x24] sm:$0xf]
        %v1592 = vld [vmem:[%s1581 + $0x28] sm:$0xf]
        %v1593 = vld [vmem:[%s1581 + $0x2c] sm:$0xf]
        %v1594 = vld [vmem:[%s1581 + $0x30] sm:$0xf]
        %v1595 = vld [vmem:[%s1581 + $0x34] sm:$0xf]
        %v1596 = vld [vmem:[%s1581 + $0x38] sm:$0xf]
        %v1597 = vld [vmem:[%s1581 + $0x3c] sm:$0xf]
        %v1598 = vld [vmem:[%s1581 + $0x40] sm:$0xf]
        %v1599 = vld [vmem:[%s1581 + $0x44] sm:$0xf]
        %v1600 = vld [vmem:[%s1581 + $0x48] sm:$0xf]
        %v1601 = vld [vmem:[%s1581 + $0x4c] sm:$0xf]
        %v1602 = vld [vmem:[%s1581 + $0x50] sm:$0xf]
        %v1603 = vld [vmem:[%s1581 + $0x54] sm:$0xf]
        %v1604 = vld [vmem:[%s1581 + $0x58] sm:$0xf]
        %v1605 = vld [vmem:[%s1581 + $0x5c] sm:$0xf]
        %v1606 = vld [vmem:[%s1581 + $0x60] sm:$0xf]
        %v1607 = vld [vmem:[%s1581 + $0x64] sm:$0xf]
        %v1608 = vld [vmem:[%s1581 + $0x68] sm:$0xf]
        %v1609 = vld [vmem:[%s1581 + $0x6c] sm:$0xf]
        %v1610 = vld [vmem:[%s1581 + $0x70] sm:$0xf]
        %v1611 = vld [vmem:[%s1581 + $0x74] sm:$0xf]
        %v1612 = vld [vmem:[%s1581 + $0x78] sm:$0xf]
        %v1613 = vld [vmem:[%s1581 + $0x7c] sm:$0xf]
        %v1614 = vld [vmem:[%s1581 + $0x80] sm:$0xf]
        %v1615 = vld [vmem:[%s1581 + $0x84] sm:$0xf]
        %v1616 = vld [vmem:[%s1581 + $0x88] sm:$0xf]
        %v1617 = vld [vmem:[%s1581 + $0x8c] sm:$0xf]
        %v1618 = vld [vmem:[%s1581 + $0x90] sm:$0xf]
        %v1619 = vld [vmem:[%s1581 + $0x94] sm:$0xf]
        %v1620 = vld [vmem:[%s1581 + $0x98] sm:$0xf]
        %v1621 = vld [vmem:[%s1581 + $0x9c] sm:$0xf]
        %v1622 = vld [vmem:[%s1581 + $0xa0] sm:$0xf]
        %v1623 = vld [vmem:[%s1581 + $0xa4] sm:$0xf]
        %v1624 = vld [vmem:[%s1581 + $0xa8] sm:$0xf]
        %v1625 = vld [vmem:[%s1581 + $0xac] sm:$0xf]
        %v1626 = vld [vmem:[%s1581 + $0xb0] sm:$0xf]
        %v1627 = vld [vmem:[%s1581 + $0xb4] sm:$0xf]
        %v1628 = vld [vmem:[%s1581 + $0xb8] sm:$0xf]
        %v1629 = vld [vmem:[%s1581 + $0xbc] sm:$0xf]
        %v1669 = vrot.slane %v1572, 4
        %v1670 = vrot.slane %v1494, 4
        %v1671 = vsel %vm1031, %v1669, %v1670
        %v1672 = vrot.slane %v1573, 4
        %v1673 = vrot.slane %v1495, 4
        %v1674 = vsel %vm1031, %v1672, %v1673
        %v1675 = vrot.slane %v1574, 4
        %v1676 = vrot.slane %v1496, 4
        %v1677 = vsel %vm1031, %v1675, %v1676
        %v1678 = vrot.slane %v1497, 4
        %v1679 = vsel %vm1031, %v1670, %v1678
        %v1680 = vrot.slane %v1498, 4
        %v1681 = vsel %vm1031, %v1673, %v1680
        %v1682 = vrot.slane %v1499, 4
        %v1683 = vsel %vm1031, %v1676, %v1682
        %v1684 = vrot.slane %v1500, 4
        %v1685 = vsel %vm1031, %v1678, %v1684
        %v1686 = vrot.slane %v1501, 4
        %v1687 = vsel %vm1031, %v1680, %v1686
        %v1688 = vrot.slane %v1502, 4
        %v1689 = vsel %vm1031, %v1682, %v1688
        %v1690 = vrot.slane %v1503, 4
        %v1691 = vsel %vm1031, %v1684, %v1690
        %v1692 = vrot.slane %v1504, 4
        %v1693 = vsel %vm1031, %v1686, %v1692
        %v1694 = vrot.slane %v1505, 4
        %v1695 = vsel %vm1031, %v1688, %v1694
        %v1696 = vrot.slane %v1506, 4
        %v1697 = vsel %vm1031, %v1690, %v1696
        %v1698 = vrot.slane %v1507, 4
        %v1699 = vsel %vm1031, %v1692, %v1698
        %v1700 = vrot.slane %v1508, 4
        %v1701 = vsel %vm1031, %v1694, %v1700
        %v1702 = vrot.slane %v1509, 4
        %v1703 = vsel %vm1031, %v1696, %v1702
        %v1704 = vrot.slane %v1510, 4
        %v1705 = vsel %vm1031, %v1698, %v1704
        %v1706 = vrot.slane %v1511, 4
        %v1707 = vsel %vm1031, %v1700, %v1706
        %v1708 = vrot.slane %v1512, 4
        %v1709 = vsel %vm1031, %v1702, %v1708
        %v1710 = vrot.slane %v1513, 4
        %v1711 = vsel %vm1031, %v1704, %v1710
        %v1712 = vrot.slane %v1514, 4
        %v1713 = vsel %vm1031, %v1706, %v1712
        %v1714 = vrot.slane %v1515, 4
        %v1715 = vsel %vm1031, %v1708, %v1714
        %v1716 = vrot.slane %v1516, 4
        %v1717 = vsel %vm1031, %v1710, %v1716
        %v1718 = vrot.slane %v1517, 4
        %v1719 = vsel %vm1031, %v1712, %v1718
        %v1720 = vrot.slane %v1518, 4
        %v1721 = vsel %vm1031, %v1714, %v1720
        %v1722 = vrot.slane %v1519, 4
        %v1723 = vsel %vm1031, %v1716, %v1722
        %v1724 = vrot.slane %v1520, 4
        %v1725 = vsel %vm1031, %v1718, %v1724
        %v1726 = vrot.slane %v1521, 4
        %v1727 = vsel %vm1031, %v1720, %v1726
        %v1728 = vrot.slane %v1522, 4
        %v1729 = vsel %vm1031, %v1722, %v1728
        %v1730 = vrot.slane %v1523, 4
        %v1731 = vsel %vm1031, %v1724, %v1730
        %v1732 = vrot.slane %v1575, 4
        %v1733 = vsel %vm1031, %v1726, %v1732
        %v1734 = vrot.slane %v1576, 4
        %v1735 = vsel %vm1031, %v1728, %v1734
        %v1736 = vrot.slane %v1577, 4
        %v1737 = vsel %vm1031, %v1730, %v1736
        %v1738 = vrot.slane %v1578, 4
        %v1739 = vsel %vm1031, %v1732, %v1738
        %v1740 = vrot.slane %v1579, 4
        %v1741 = vsel %vm1031, %v1734, %v1740
        %v1742 = vrot.slane %v1580, 4
        %v1743 = vsel %vm1031, %v1736, %v1742
        %v1828 = vunpack.c.l.b16 %v1582
        %v1829 = vunpack.c.l.b16 %v1583
        %v1830 = vunpack.c.l.b16 %v1584
        %v1831 = vunpack.c.l.b16 %v1585
        %v1832 = vunpack.c.l.b16 %v1586
        %v1833 = vunpack.c.l.b16 %v1587
        %v1834 = vunpack.c.l.b16 %v1588
        %v1835 = vunpack.c.l.b16 %v1589
        %v1836 = vunpack.c.l.b16 %v1590
        %v1837 = vunpack.c.l.b16 %v1591
        %v1838 = vunpack.c.l.b16 %v1592
        %v1839 = vunpack.c.l.b16 %v1593
        %v1840 = vunpack.c.l.b16 %v1594
        %v1841 = vunpack.c.l.b16 %v1595
        %v1842 = vunpack.c.l.b16 %v1596
        %v1843 = vunpack.c.l.b16 %v1597
        %v1844 = vunpack.c.l.b16 %v1598
        %v1845 = vunpack.c.l.b16 %v1599
        %v1846 = vunpack.c.l.b16 %v1600
        %v1847 = vunpack.c.l.b16 %v1601
        %v1848 = vunpack.c.l.b16 %v1602
        %v1849 = vunpack.c.l.b16 %v1603
        %v1850 = vunpack.c.l.b16 %v1604
        %v1851 = vunpack.c.l.b16 %v1605
        %v1852 = vunpack.c.l.b16 %v1606
        %v1853 = vunpack.c.l.b16 %v1607
        %v1854 = vunpack.c.l.b16 %v1608
        %v1855 = vunpack.c.l.b16 %v1609
        %v1856 = vunpack.c.l.b16 %v1610
        %v1857 = vunpack.c.l.b16 %v1611
        %v1858 = vunpack.c.l.b16 %v1612
        %v1859 = vunpack.c.l.b16 %v1613
        %v1860 = vunpack.c.l.b16 %v1614
        %v1861 = vunpack.c.l.b16 %v1615
        %v1862 = vunpack.c.l.b16 %v1616
        %v1863 = vunpack.c.l.b16 %v1617
        %v1864 = vunpack.c.l.b16 %v1618
        %v1865 = vunpack.c.l.b16 %v1619
        %v1866 = vunpack.c.l.b16 %v1620
        %v1867 = vunpack.c.l.b16 %v1621
        %v1868 = vunpack.c.l.b16 %v1622
        %v1869 = vunpack.c.l.b16 %v1623
        %v1870 = vunpack.c.l.b16 %v1624
        %v1871 = vunpack.c.l.b16 %v1625
        %v1872 = vunpack.c.l.b16 %v1626
        %v1873 = vunpack.c.l.b16 %v1627
        %v1874 = vunpack.c.l.b16 %v1628
        %v1875 = vunpack.c.l.b16 %v1629
        %v1876 = vpack.c.b16 %v1829, %v1828
        %v1877 = vpack.c.b16 %v1831, %v1830
        %v1878 = vpack.c.b16 %v1833, %v1832
        %v1879 = vpack.c.b16 %v1835, %v1834
        %v1880 = vpack.c.b16 %v1837, %v1836
        %v1881 = vpack.c.b16 %v1839, %v1838
        %v1882 = vpack.c.b16 %v1841, %v1840
        %v1883 = vpack.c.b16 %v1843, %v1842
        %v1884 = vpack.c.b16 %v1845, %v1844
        %v1885 = vpack.c.b16 %v1847, %v1846
        %v1886 = vpack.c.b16 %v1849, %v1848
        %v1887 = vpack.c.b16 %v1851, %v1850
        %v1888 = vpack.c.b16 %v1853, %v1852
        %v1889 = vpack.c.b16 %v1855, %v1854
        %v1890 = vpack.c.b16 %v1857, %v1856
        %v1891 = vpack.c.b16 %v1859, %v1858
        %v1892 = vpack.c.b16 %v1861, %v1860
        %v1893 = vpack.c.b16 %v1863, %v1862
        %v1894 = vpack.c.b16 %v1865, %v1864
        %v1895 = vpack.c.b16 %v1867, %v1866
        %v1896 = vpack.c.b16 %v1869, %v1868
        %v1897 = vpack.c.b16 %v1871, %v1870
        %v1898 = vpack.c.b16 %v1873, %v1872
        %v1899 = vpack.c.b16 %v1875, %v1874
        %1924 = vmatprep.subr.bf16.mxu0 0
        %1925 = vmatpush1.bf16.msra.mxu0 %v1876
        %1926 = vmatprep.subr.bf16.mxu0 0
        %1927 = vmatpush1.bf16.msra.mxu0 %v1877
        %1928 = vmatprep.subr.bf16.mxu0 0
        %1929 = vmatpush1.bf16.msra.mxu0 %v1878
        %1930 = vmatprep.subr.bf16.mxu0 0
        %1931 = vmatpush1.bf16.msra.mxu0 %v1879
        %1932 = vmatprep.subr.bf16.mxu0 0
        %1933 = vmatpush1.bf16.msra.mxu0 %v1880
        %1934 = vmatprep.subr.bf16.mxu0 0
        %1935 = vmatpush1.bf16.msra.mxu0 %v1881
        %1936 = vmatprep.subr.bf16.mxu0 0
        %1937 = vmatpush1.bf16.msra.mxu0 %v1882
        %1938 = vmatprep.subr.bf16.mxu0 0
        %1939 = vmatpush1.bf16.msra.mxu0 %v1883
        %1940 = vmatprep.subr.bf16.mxu0 0
        %1941 = vmatpush1.bf16.msra.mxu0 %v1884
        %1942 = vmatprep.subr.bf16.mxu0 0
        %1943 = vmatpush1.bf16.msra.mxu0 %v1885
        %1944 = vmatprep.subr.bf16.mxu0 0
        %1945 = vmatpush1.bf16.msra.mxu0 %v1886
        %1946 = vmatprep.subr.bf16.mxu0 0
        %1947 = vmatpush1.bf16.msra.mxu0 %v1887
        %1948 = vmatprep.subr.bf16.mxu0 0
        %1949 = vmatpush1.bf16.msra.mxu0 %v1888
        %1950 = vmatprep.subr.bf16.mxu0 0
        %1951 = vmatpush1.bf16.msra.mxu0 %v1889
        %1952 = vmatprep.subr.bf16.mxu0 0
        %1953 = vmatpush1.bf16.msra.mxu0 %v1890
        %1954 = vmatprep.subr.bf16.mxu0 0
        %1955 = vmatpush1.bf16.msra.mxu0 %v1891
        %1956 = vmatprep.mubr.bf16.mxu0 %v1674
        %1957 = vmatmul.mubr.bf16.gmra.mrb[0].mxu0 %v1671
        %v1958 = vpop.f32.mrb[0].mxu0
        %v1959 = vadd.f32 0.0, %v1958
        %v1960 = vpop.f32.mrb[0].mxu0
        %v1961 = vpop.f32.mrb[0].mxu0
        %v1962 = vadd.f32 0.0, %v1961
        %v1963 = vpop.f32.mrb[0].mxu0
        %1964 = vmatprep.mubr.bf16.mxu0 %v1681
        %1965 = vmatmul.mubr.bf16.gmra.mrb[0].mxu0 %v1679
        %v1966 = vpop.f32.mrb[0].mxu0
        %v1967 = vadd.f32 0.0, %v1966
        %v1968 = vpop.f32.mrb[0].mxu0
        %v1969 = vpop.f32.mrb[0].mxu0
        %v1970 = vadd.f32 0.0, %v1969
        %v1971 = vpop.f32.mrb[0].mxu0
        %1972 = vmatprep.mubr.bf16.mxu0 %v1687
        %1973 = vmatmul.mubr.bf16.gmra.mrb[0].mxu0 %v1685
        %v1974 = vpop.f32.mrb[0].mxu0
        %v1975 = vadd.f32 0.0, %v1974
        %v1976 = vpop.f32.mrb[0].mxu0
        %v1977 = vpop.f32.mrb[0].mxu0
        %v1978 = vadd.f32 0.0, %v1977
        %v1979 = vpop.f32.mrb[0].mxu0
        %1980 = vmatprep.mubr.bf16.mxu0 %v1693
        %1981 = vmatmul.mubr.bf16.gmra.mrb[0].mxu0 %v1691
        %v1982 = vpop.f32.mrb[0].mxu0
        %v1983 = vadd.f32 0.0, %v1982
        %v1984 = vpop.f32.mrb[0].mxu0
        %v1985 = vpop.f32.mrb[0].mxu0
        %v1986 = vadd.f32 0.0, %v1985
        %v1987 = vpop.f32.mrb[0].mxu0
        %1988 = vmatprep.mubr.bf16.mxu0 %v1699
        %1989 = vmatmul.mubr.bf16.gmra.mrb[0].mxu0 %v1697
        %v1990 = vpop.f32.mrb[0].mxu0
        %v1991 = vadd.f32 0.0, %v1990
        %v1992 = vpop.f32.mrb[0].mxu0
        %v1993 = vpop.f32.mrb[0].mxu0
        %v1994 = vadd.f32 0.0, %v1993
        %v1995 = vpop.f32.mrb[0].mxu0
        %1996 = vmatprep.mubr.bf16.mxu0 %v1705
        %1997 = vmatmul.mubr.bf16.gmra.mrb[0].mxu0 %v1703
        %v1998 = vpop.f32.mrb[0].mxu0
        %v1999 = vadd.f32 0.0, %v1998
        %v2000 = vpop.f32.mrb[0].mxu0
        %v2001 = vpop.f32.mrb[0].mxu0
        %v2002 = vadd.f32 0.0, %v2001
        %v2003 = vpop.f32.mrb[0].mxu0
        %2004 = vmatprep.mubr.bf16.mxu0 %v1711
        %2005 = vmatmul.mubr.bf16.gmra.mrb[0].mxu0 %v1709
        %v2006 = vpop.f32.mrb[0].mxu0
        %v2007 = vadd.f32 0.0, %v2006
        %v2008 = vpop.f32.mrb[0].mxu0
        %v2009 = vpop.f32.mrb[0].mxu0
        %v2010 = vadd.f32 0.0, %v2009
        %v2011 = vpop.f32.mrb[0].mxu0
        %2012 = vmatprep.mubr.bf16.mxu0 %v1717
        %2013 = vmatmul.mubr.bf16.gmra.mrb[0].mxu0 %v1715
        %v2014 = vpop.f32.mrb[0].mxu0
        %v2015 = vadd.f32 0.0, %v2014
        %v2016 = vpop.f32.mrb[0].mxu0
        %v2017 = vpop.f32.mrb[0].mxu0
        %v2018 = vadd.f32 0.0, %v2017
        %v2019 = vpop.f32.mrb[0].mxu0
        %2020 = vmatprep.mubr.bf16.mxu0 %v1723
        %2021 = vmatmul.mubr.bf16.gmra.mrb[0].mxu0 %v1721
        %v2022 = vpop.f32.mrb[0].mxu0
        %v2023 = vadd.f32 0.0, %v2022
        %v2024 = vpop.f32.mrb[0].mxu0
        %v2025 = vpop.f32.mrb[0].mxu0
        %v2026 = vadd.f32 0.0, %v2025
        %v2027 = vpop.f32.mrb[0].mxu0
        %2028 = vmatprep.mubr.bf16.mxu0 %v1729
        %2029 = vmatmul.mubr.bf16.gmra.mrb[0].mxu0 %v1727
        %v2030 = vpop.f32.mrb[0].mxu0
        %v2031 = vadd.f32 0.0, %v2030
        %v2032 = vpop.f32.mrb[0].mxu0
        %v2033 = vpop.f32.mrb[0].mxu0
        %v2034 = vadd.f32 0.0, %v2033
        %v2035 = vpop.f32.mrb[0].mxu0
        %2036 = vmatprep.mubr.bf16.mxu0 %v1735
        %2037 = vmatmul.mubr.bf16.gmra.mrb[0].mxu0 %v1733
        %v2038 = vpop.f32.mrb[0].mxu0
        %v2039 = vadd.f32 0.0, %v2038
        %v2040 = vpop.f32.mrb[0].mxu0
        %v2041 = vpop.f32.mrb[0].mxu0
        %v2042 = vadd.f32 0.0, %v2041
        %v2043 = vpop.f32.mrb[0].mxu0
        %2044 = vmatprep.mubr.bf16.mxu0 %v1741
        %2045 = vmatmul.mubr.bf16.gmra.mrb[0].mxu0 %v1739
        %v2046 = vpop.f32.mrb[0].mxu0
        %v2047 = vadd.f32 0.0, %v2046
        %v2048 = vpop.f32.mrb[0].mxu0
        %v2049 = vpop.f32.mrb[0].mxu0
        %v2050 = vadd.f32 0.0, %v2049
        %v2051 = vpop.f32.mrb[0].mxu0
        %2052 = vdwg.mxu0
        %2053 = vmatprep.subr.bf16.mxu0 0
        %2054 = vmatpush1.bf16.msra.mxu0 %v1892
        %2055 = vmatprep.subr.bf16.mxu0 0
        %2056 = vmatpush1.bf16.msra.mxu0 %v1893
        %2057 = vmatprep.subr.bf16.mxu0 0
        %2058 = vmatpush1.bf16.msra.mxu0 %v1894
        %2059 = vmatprep.subr.bf16.mxu0 0
        %2060 = vmatpush1.bf16.msra.mxu0 %v1895
        %2061 = vmatprep.subr.bf16.mxu0 0
        %2062 = vmatpush1.bf16.msra.mxu0 %v1896
        %2063 = vmatprep.subr.bf16.mxu0 0
        %2064 = vmatpush1.bf16.msra.mxu0 %v1897
        %2065 = vmatprep.subr.bf16.mxu0 0
        %2066 = vmatpush1.bf16.msra.mxu0 %v1898
        %2067 = vmatprep.subr.bf16.mxu0 0
        %2068 = vmatpush1.bf16.msra.mxu0 %v1899
        %2069 = vmatprep.subr.bf16.mxu0 0
        %2070 = vmatpush1.bf16.msra.mxu0 0
        %2071 = vmatprep.subr.bf16.mxu0 0
        %2072 = vmatpush1.bf16.msra.mxu0 0
        %2073 = vmatprep.subr.bf16.mxu0 0
        %2074 = vmatpush1.bf16.msra.mxu0 0
        %2075 = vmatprep.subr.bf16.mxu0 0
        %2076 = vmatpush1.bf16.msra.mxu0 0
        %2077 = vmatprep.subr.bf16.mxu0 0
        %2078 = vmatpush1.bf16.msra.mxu0 0
        %2079 = vmatprep.subr.bf16.mxu0 0
        %2080 = vmatpush1.bf16.msra.mxu0 0
        %2081 = vmatprep.subr.bf16.mxu0 0
        %2082 = vmatpush1.bf16.msra.mxu0 0
        %2083 = vmatprep.subr.bf16.mxu0 0
        %2084 = vmatpush1.bf16.msra.mxu0 0
        %2085 = vmatprep.mubr.bf16.mxu0 0
        %2086 = vmatmul.mubr.bf16.gmra.mrb[0].mxu0 %v1677
        %v2087 = vpop.f32.mrb[0].mxu0
        %v2088 = vadd.f32 %v1959, %v2087
        %v2089 = vpop.f32.mrb[0].mxu0
        %v2090 = vpop.f32.mrb[0].mxu0
        %v2091 = vadd.f32 %v1962, %v2090
        %v2092 = vpop.f32.mrb[0].mxu0
        %2093 = vmatprep.mubr.bf16.mxu0 0
        %2094 = vmatmul.mubr.bf16.gmra.mrb[0].mxu0 %v1683
        %v2095 = vpop.f32.mrb[0].mxu0
        %v2096 = vadd.f32 %v1967, %v2095
        %v2097 = vpop.f32.mrb[0].mxu0
        %v2098 = vpop.f32.mrb[0].mxu0
        %v2099 = vadd.f32 %v1970, %v2098
        %v2100 = vpop.f32.mrb[0].mxu0
        %2101 = vmatprep.mubr.bf16.mxu0 0
        %2102 = vmatmul.mubr.bf16.gmra.mrb[0].mxu0 %v1689
        %v2103 = vpop.f32.mrb[0].mxu0
        %v2104 = vadd.f32 %v1975, %v2103
        %v2105 = vpop.f32.mrb[0].mxu0
        %v2106 = vpop.f32.mrb[0].mxu0
        %v2107 = vadd.f32 %v1978, %v2106
        %v2108 = vpop.f32.mrb[0].mxu0
        %2109 = vmatprep.mubr.bf16.mxu0 0
        %2110 = vmatmul.mubr.bf16.gmra.mrb[0].mxu0 %v1695
        %v2111 = vpop.f32.mrb[0].mxu0
        %v2112 = vadd.f32 %v1983, %v2111
        %v2113 = vpop.f32.mrb[0].mxu0
        %v2114 = vpop.f32.mrb[0].mxu0
        %v2115 = vadd.f32 %v1986, %v2114
        %v2116 = vpop.f32.mrb[0].mxu0
        %2117 = vmatprep.mubr.bf16.mxu0 0
        %2118 = vmatmul.mubr.bf16.gmra.mrb[0].mxu0 %v1701
        %v2119 = vpop.f32.mrb[0].mxu0
        %v2120 = vadd.f32 %v1991, %v2119
        %v2121 = vpop.f32.mrb[0].mxu0
        %v2122 = vpop.f32.mrb[0].mxu0
        %v2123 = vadd.f32 %v1994, %v2122
        %v2124 = vpop.f32.mrb[0].mxu0
        %2125 = vmatprep.mubr.bf16.mxu0 0
        %2126 = vmatmul.mubr.bf16.gmra.mrb[0].mxu0 %v1707
        %v2127 = vpop.f32.mrb[0].mxu0
        %v2128 = vadd.f32 %v1999, %v2127
        %v2129 = vpop.f32.mrb[0].mxu0
        %v2130 = vpop.f32.mrb[0].mxu0
        %v2131 = vadd.f32 %v2002, %v2130
        %v2132 = vpop.f32.mrb[0].mxu0
        %2133 = vmatprep.mubr.bf16.mxu0 0
        %2134 = vmatmul.mubr.bf16.gmra.mrb[0].mxu0 %v1713
        %v2135 = vpop.f32.mrb[0].mxu0
        %v2136 = vadd.f32 %v2007, %v2135
        %v2137 = vpop.f32.mrb[0].mxu0
        %v2138 = vpop.f32.mrb[0].mxu0
        %v2139 = vadd.f32 %v2010, %v2138
        %v2140 = vpop.f32.mrb[0].mxu0
        %2141 = vmatprep.mubr.bf16.mxu0 0
        %2142 = vmatmul.mubr.bf16.gmra.mrb[0].mxu0 %v1719
        %v2143 = vpop.f32.mrb[0].mxu0
        %v2144 = vadd.f32 %v2015, %v2143
        %v2145 = vpop.f32.mrb[0].mxu0
        %v2146 = vpop.f32.mrb[0].mxu0
        %v2147 = vadd.f32 %v2018, %v2146
        %v2148 = vpop.f32.mrb[0].mxu0
        %2149 = vmatprep.mubr.bf16.mxu0 0
        %2150 = vmatmul.mubr.bf16.gmra.mrb[0].mxu0 %v1725
        %v2151 = vpop.f32.mrb[0].mxu0
        %v2152 = vadd.f32 %v2023, %v2151
        %v2153 = vpop.f32.mrb[0].mxu0
        %v2154 = vpop.f32.mrb[0].mxu0
        %v2155 = vadd.f32 %v2026, %v2154
        %v2156 = vpop.f32.mrb[0].mxu0
        %2157 = vmatprep.mubr.bf16.mxu0 0
        %2158 = vmatmul.mubr.bf16.gmra.mrb[0].mxu0 %v1731
        %v2159 = vpop.f32.mrb[0].mxu0
        %v2160 = vadd.f32 %v2031, %v2159
        %v2161 = vpop.f32.mrb[0].mxu0
        %v2162 = vpop.f32.mrb[0].mxu0
        %v2163 = vadd.f32 %v2034, %v2162
        %v2164 = vpop.f32.mrb[0].mxu0
        %2165 = vmatprep.mubr.bf16.mxu0 0
        %2166 = vmatmul.mubr.bf16.gmra.mrb[0].mxu0 %v1737
        %v2167 = vpop.f32.mrb[0].mxu0
        %v2168 = vadd.f32 %v2039, %v2167
        %v2169 = vpop.f32.mrb[0].mxu0
        %v2170 = vpop.f32.mrb[0].mxu0
        %v2171 = vadd.f32 %v2042, %v2170
        %v2172 = vpop.f32.mrb[0].mxu0
        %2173 = vmatprep.mubr.bf16.mxu0 0
        %2174 = vmatmul.mubr.bf16.gmra.mrb[0].mxu0 %v1743
        %v2175 = vpop.f32.mrb[0].mxu0
        %v2176 = vadd.f32 %v2047, %v2175
        %v2177 = vpop.f32.mrb[0].mxu0
        %v2178 = vpop.f32.mrb[0].mxu0
        %v2179 = vadd.f32 %v2050, %v2178
        %v2180 = vpop.f32.mrb[0].mxu0
        %2181 = vdwg.mxu0
        %v2230 = vunpack.c.l.b16 %v1524
        %v2231 = vunpack.c.l.b16 %v1525
        %v2232 = vunpack.c.l.b16 %v1526
        %v2233 = vunpack.c.l.b16 %v1527
        %v2234 = vunpack.c.l.b16 %v1528
        %v2235 = vunpack.c.l.b16 %v1529
        %v2236 = vunpack.c.l.b16 %v1530
        %v2237 = vunpack.c.l.b16 %v1531
        %v2238 = vunpack.c.l.b16 %v1532
        %v2239 = vunpack.c.l.b16 %v1533
        %v2240 = vunpack.c.l.b16 %v1534
        %v2241 = vunpack.c.l.b16 %v1535
        %v2242 = vunpack.c.l.b16 %v1536
        %v2243 = vunpack.c.l.b16 %v1537
        %v2244 = vunpack.c.l.b16 %v1538
        %v2245 = vunpack.c.l.b16 %v1539
        %v2246 = vunpack.c.l.b16 %v1540
        %v2247 = vunpack.c.l.b16 %v1541
        %v2248 = vunpack.c.l.b16 %v1542
        %v2249 = vunpack.c.l.b16 %v1543
        %v2250 = vunpack.c.l.b16 %v1544
        %v2251 = vunpack.c.l.b16 %v1545
        %v2252 = vunpack.c.l.b16 %v1546
        %v2253 = vunpack.c.l.b16 %v1547
        %v2254 = vunpack.c.l.b16 %v1548
        %v2255 = vunpack.c.l.b16 %v1549
        %v2256 = vunpack.c.l.b16 %v1550
        %v2257 = vunpack.c.l.b16 %v1551
        %v2258 = vunpack.c.l.b16 %v1552
        %v2259 = vunpack.c.l.b16 %v1553
        %v2260 = vunpack.c.l.b16 %v1554
        %v2261 = vunpack.c.l.b16 %v1555
        %v2262 = vunpack.c.l.b16 %v1556
        %v2263 = vunpack.c.l.b16 %v1557
        %v2264 = vunpack.c.l.b16 %v1558
        %v2265 = vunpack.c.l.b16 %v1559
        %v2266 = vunpack.c.l.b16 %v1560
        %v2267 = vunpack.c.l.b16 %v1561
        %v2268 = vunpack.c.l.b16 %v1562
        %v2269 = vunpack.c.l.b16 %v1563
        %v2270 = vunpack.c.l.b16 %v1564
        %v2271 = vunpack.c.l.b16 %v1565
        %v2272 = vunpack.c.l.b16 %v1566
        %v2273 = vunpack.c.l.b16 %v1567
        %v2274 = vunpack.c.l.b16 %v1568
        %v2275 = vunpack.c.l.b16 %v1569
        %v2276 = vunpack.c.l.b16 %v1570
        %v2277 = vunpack.c.l.b16 %v1571
        %v2278 = vpack.c.b16 %v2231, %v2230
        %v2279 = vpack.c.b16 %v2233, %v2232
        %v2280 = vpack.c.b16 %v2235, %v2234
        %v2281 = vpack.c.b16 %v2237, %v2236
        %v2282 = vpack.c.b16 %v2239, %v2238
        %v2283 = vpack.c.b16 %v2241, %v2240
        %v2284 = vpack.c.b16 %v2243, %v2242
        %v2285 = vpack.c.b16 %v2245, %v2244
        %v2286 = vpack.c.b16 %v2247, %v2246
        %v2287 = vpack.c.b16 %v2249, %v2248
        %v2288 = vpack.c.b16 %v2251, %v2250
        %v2289 = vpack.c.b16 %v2253, %v2252
        %v2290 = vpack.c.b16 %v2255, %v2254
        %v2291 = vpack.c.b16 %v2257, %v2256
        %v2292 = vpack.c.b16 %v2259, %v2258
        %v2293 = vpack.c.b16 %v2261, %v2260
        %v2294 = vpack.c.b16 %v2263, %v2262
        %v2295 = vpack.c.b16 %v2265, %v2264
        %v2296 = vpack.c.b16 %v2267, %v2266
        %v2297 = vpack.c.b16 %v2269, %v2268
        %v2298 = vpack.c.b16 %v2271, %v2270
        %v2299 = vpack.c.b16 %v2273, %v2272
        %v2300 = vpack.c.b16 %v2275, %v2274
        %v2301 = vpack.c.b16 %v2277, %v2276
        %2326 = vmatprep.subr.bf16.mxu0 0
        %2327 = vmatpush1.bf16.msra.mxu0 %v2278
        %2328 = vmatprep.subr.bf16.mxu0 0
        %2329 = vmatpush1.bf16.msra.mxu0 %v2279
        %2330 = vmatprep.subr.bf16.mxu0 0
        %2331 = vmatpush1.bf16.msra.mxu0 %v2280
        %2332 = vmatprep.subr.bf16.mxu0 0
        %2333 = vmatpush1.bf16.msra.mxu0 %v2281
        %2334 = vmatprep.subr.bf16.mxu0 0
        %2335 = vmatpush1.bf16.msra.mxu0 %v2282
        %2336 = vmatprep.subr.bf16.mxu0 0
        %2337 = vmatpush1.bf16.msra.mxu0 %v2283
        %2338 = vmatprep.subr.bf16.mxu0 0
        %2339 = vmatpush1.bf16.msra.mxu0 %v2284
        %2340 = vmatprep.subr.bf16.mxu0 0
        %2341 = vmatpush1.bf16.msra.mxu0 %v2285
        %2342 = vmatprep.subr.bf16.mxu0 0
        %2343 = vmatpush1.bf16.msra.mxu0 %v2286
        %2344 = vmatprep.subr.bf16.mxu0 0
        %2345 = vmatpush1.bf16.msra.mxu0 %v2287
        %2346 = vmatprep.subr.bf16.mxu0 0
        %2347 = vmatpush1.bf16.msra.mxu0 %v2288
        %2348 = vmatprep.subr.bf16.mxu0 0
        %2349 = vmatpush1.bf16.msra.mxu0 %v2289
        %2350 = vmatprep.subr.bf16.mxu0 0
        %2351 = vmatpush1.bf16.msra.mxu0 %v2290
        %2352 = vmatprep.subr.bf16.mxu0 0
        %2353 = vmatpush1.bf16.msra.mxu0 %v2291
        %2354 = vmatprep.subr.bf16.mxu0 0
        %2355 = vmatpush1.bf16.msra.mxu0 %v2292
        %2356 = vmatprep.subr.bf16.mxu0 0
        %2357 = vmatpush1.bf16.msra.mxu0 %v2293
        %2358 = vmatprep.mubr.bf16.mxu0 %v1489
        %2359 = vmatmul.mubr.bf16.gmra.mrb[0].mxu0 %v1488
        %v2360 = vpop.f32.mrb[0].mxu0
        %v2361 = vadd.f32 %v2088, %v2360
        %v2362 = vpop.f32.mrb[0].mxu0
        %v2363 = vpop.f32.mrb[0].mxu0
        %v2364 = vadd.f32 %v2091, %v2363
        %v2365 = vpop.f32.mrb[0].mxu0
        %2366 = vmatprep.mubr.bf16.mxu0 %v1492
        %2367 = vmatmul.mubr.bf16.gmra.mrb[0].mxu0 %v1491
        %v2368 = vpop.f32.mrb[0].mxu0
        %v2369 = vadd.f32 %v2096, %v2368
        %v2370 = vpop.f32.mrb[0].mxu0
        %v2371 = vpop.f32.mrb[0].mxu0
        %v2372 = vadd.f32 %v2099, %v2371
        %v2373 = vpop.f32.mrb[0].mxu0
        %2374 = vmatprep.mubr.bf16.mxu0 %v1495
        %2375 = vmatmul.mubr.bf16.gmra.mrb[0].mxu0 %v1494
        %v2376 = vpop.f32.mrb[0].mxu0
        %v2377 = vadd.f32 %v2104, %v2376
        %v2378 = vpop.f32.mrb[0].mxu0
        %v2379 = vpop.f32.mrb[0].mxu0
        %v2380 = vadd.f32 %v2107, %v2379
        %v2381 = vpop.f32.mrb[0].mxu0
        %2382 = vmatprep.mubr.bf16.mxu0 %v1498
        %2383 = vmatmul.mubr.bf16.gmra.mrb[0].mxu0 %v1497
        %v2384 = vpop.f32.mrb[0].mxu0
        %v2385 = vadd.f32 %v2112, %v2384
        %v2386 = vpop.f32.mrb[0].mxu0
        %v2387 = vpop.f32.mrb[0].mxu0
        %v2388 = vadd.f32 %v2115, %v2387
        %v2389 = vpop.f32.mrb[0].mxu0
        %2390 = vmatprep.mubr.bf16.mxu0 %v1501
        %2391 = vmatmul.mubr.bf16.gmra.mrb[0].mxu0 %v1500
        %v2392 = vpop.f32.mrb[0].mxu0
        %v2393 = vadd.f32 %v2120, %v2392
        %v2394 = vpop.f32.mrb[0].mxu0
        %v2395 = vpop.f32.mrb[0].mxu0
        %v2396 = vadd.f32 %v2123, %v2395
        %v2397 = vpop.f32.mrb[0].mxu0
        %2398 = vmatprep.mubr.bf16.mxu0 %v1504
        %2399 = vmatmul.mubr.bf16.gmra.mrb[0].mxu0 %v1503
        %v2400 = vpop.f32.mrb[0].mxu0
        %v2401 = vadd.f32 %v2128, %v2400
        %v2402 = vpop.f32.mrb[0].mxu0
        %v2403 = vpop.f32.mrb[0].mxu0
        %v2404 = vadd.f32 %v2131, %v2403
        %v2405 = vpop.f32.mrb[0].mxu0
        %2406 = vmatprep.mubr.bf16.mxu0 %v1507
        %2407 = vmatmul.mubr.bf16.gmra.mrb[0].mxu0 %v1506
        %v2408 = vpop.f32.mrb[0].mxu0
        %v2409 = vadd.f32 %v2136, %v2408
        %v2410 = vpop.f32.mrb[0].mxu0
        %v2411 = vpop.f32.mrb[0].mxu0
        %v2412 = vadd.f32 %v2139, %v2411
        %v2413 = vpop.f32.mrb[0].mxu0
        %2414 = vmatprep.mubr.bf16.mxu0 %v1510
        %2415 = vmatmul.mubr.bf16.gmra.mrb[0].mxu0 %v1509
        %v2416 = vpop.f32.mrb[0].mxu0
        %v2417 = vadd.f32 %v2144, %v2416
        %v2418 = vpop.f32.mrb[0].mxu0
        %v2419 = vpop.f32.mrb[0].mxu0
        %v2420 = vadd.f32 %v2147, %v2419
        %v2421 = vpop.f32.mrb[0].mxu0
        %2422 = vmatprep.mubr.bf16.mxu0 %v1513
        %2423 = vmatmul.mubr.bf16.gmra.mrb[0].mxu0 %v1512
        %v2424 = vpop.f32.mrb[0].mxu0
        %v2425 = vadd.f32 %v2152, %v2424
        %v2426 = vpop.f32.mrb[0].mxu0
        %v2427 = vpop.f32.mrb[0].mxu0
        %v2428 = vadd.f32 %v2155, %v2427
        %v2429 = vpop.f32.mrb[0].mxu0
        %2430 = vmatprep.mubr.bf16.mxu0 %v1516
        %2431 = vmatmul.mubr.bf16.gmra.mrb[0].mxu0 %v1515
        %v2432 = vpop.f32.mrb[0].mxu0
        %v2433 = vadd.f32 %v2160, %v2432
        %v2434 = vpop.f32.mrb[0].mxu0
        %v2435 = vpop.f32.mrb[0].mxu0
        %v2436 = vadd.f32 %v2163, %v2435
        %v2437 = vpop.f32.mrb[0].mxu0
        %2438 = vmatprep.mubr.bf16.mxu0 %v1519
        %2439 = vmatmul.mubr.bf16.gmra.mrb[0].mxu0 %v1518
        %v2440 = vpop.f32.mrb[0].mxu0
        %v2441 = vadd.f32 %v2168, %v2440
        %v2442 = vpop.f32.mrb[0].mxu0
        %v2443 = vpop.f32.mrb[0].mxu0
        %v2444 = vadd.f32 %v2171, %v2443
        %v2445 = vpop.f32.mrb[0].mxu0
        %2446 = vmatprep.mubr.bf16.mxu0 %v1522
        %2447 = vmatmul.mubr.bf16.gmra.mrb[0].mxu0 %v1521
        %v2448 = vpop.f32.mrb[0].mxu0
        %v2449 = vadd.f32 %v2176, %v2448
        %v2450 = vpop.f32.mrb[0].mxu0
        %v2451 = vpop.f32.mrb[0].mxu0
        %v2452 = vadd.f32 %v2179, %v2451
        %v2453 = vpop.f32.mrb[0].mxu0
        %2454 = vdwg.mxu0
        %2455 = vmatprep.subr.bf16.mxu0 0
        %2456 = vmatpush1.bf16.msra.mxu0 %v2294
        %2457 = vmatprep.subr.bf16.mxu0 0
        %2458 = vmatpush1.bf16.msra.mxu0 %v2295
        %2459 = vmatprep.subr.bf16.mxu0 0
        %2460 = vmatpush1.bf16.msra.mxu0 %v2296
        %2461 = vmatprep.subr.bf16.mxu0 0
        %2462 = vmatpush1.bf16.msra.mxu0 %v2297
        %2463 = vmatprep.subr.bf16.mxu0 0
        %2464 = vmatpush1.bf16.msra.mxu0 %v2298
        %2465 = vmatprep.subr.bf16.mxu0 0
        %2466 = vmatpush1.bf16.msra.mxu0 %v2299
        %2467 = vmatprep.subr.bf16.mxu0 0
        %2468 = vmatpush1.bf16.msra.mxu0 %v2300
        %2469 = vmatprep.subr.bf16.mxu0 0
        %2470 = vmatpush1.bf16.msra.mxu0 %v2301
        %2471 = vmatprep.subr.bf16.mxu0 0
        %2472 = vmatpush1.bf16.msra.mxu0 0
        %2473 = vmatprep.subr.bf16.mxu0 0
        %2474 = vmatpush1.bf16.msra.mxu0 0
        %2475 = vmatprep.subr.bf16.mxu0 0
        %2476 = vmatpush1.bf16.msra.mxu0 0
        %2477 = vmatprep.subr.bf16.mxu0 0
        %2478 = vmatpush1.bf16.msra.mxu0 0
        %2479 = vmatprep.subr.bf16.mxu0 0
        %2480 = vmatpush1.bf16.msra.mxu0 0
        %2481 = vmatprep.subr.bf16.mxu0 0
        %2482 = vmatpush1.bf16.msra.mxu0 0
        %2483 = vmatprep.subr.bf16.mxu0 0
        %2484 = vmatpush1.bf16.msra.mxu0 0
        %2485 = vmatprep.subr.bf16.mxu0 0
        %2486 = vmatpush1.bf16.msra.mxu0 0
        %2487 = vmatprep.mubr.bf16.mxu0 0
        %2488 = vmatmul.mubr.bf16.gmra.mrb[0].mxu0 %v1490
        %v2489 = vpop.f32.mrb[0].mxu0
        %v2490 = vadd.f32 %v2361, %v2489
        %v2491 = vpop.f32.mrb[0].mxu0
        %v2492 = vpop.f32.mrb[0].mxu0
        %v2493 = vadd.f32 %v2364, %v2492
        %v2494 = vpop.f32.mrb[0].mxu0
        %2495 = vmatprep.mubr.bf16.mxu0 0
        %2496 = vmatmul.mubr.bf16.gmra.mrb[0].mxu0 %v1493
        %v2497 = vpop.f32.mrb[0].mxu0
        %v2498 = vadd.f32 %v2369, %v2497
        %v2499 = vpop.f32.mrb[0].mxu0
        %v2500 = vpop.f32.mrb[0].mxu0
        %v2501 = vadd.f32 %v2372, %v2500
        %v2502 = vpop.f32.mrb[0].mxu0
        %2503 = vmatprep.mubr.bf16.mxu0 0
        %2504 = vmatmul.mubr.bf16.gmra.mrb[0].mxu0 %v1496
        %v2505 = vpop.f32.mrb[0].mxu0
        %v2506 = vadd.f32 %v2377, %v2505
        %v2507 = vpop.f32.mrb[0].mxu0
        %v2508 = vpop.f32.mrb[0].mxu0
        %v2509 = vadd.f32 %v2380, %v2508
        %v2510 = vpop.f32.mrb[0].mxu0
        %2511 = vmatprep.mubr.bf16.mxu0 0
        %2512 = vmatmul.mubr.bf16.gmra.mrb[0].mxu0 %v1499
        %v2513 = vpop.f32.mrb[0].mxu0
        %v2514 = vadd.f32 %v2385, %v2513
        %v2515 = vpop.f32.mrb[0].mxu0
        %v2516 = vpop.f32.mrb[0].mxu0
        %v2517 = vadd.f32 %v2388, %v2516
        %v2518 = vpop.f32.mrb[0].mxu0
        %2519 = vmatprep.mubr.bf16.mxu0 0
        %2520 = vmatmul.mubr.bf16.gmra.mrb[0].mxu0 %v1502
        %v2521 = vpop.f32.mrb[0].mxu0
        %v2522 = vadd.f32 %v2393, %v2521
        %v2523 = vpop.f32.mrb[0].mxu0
        %v2524 = vpop.f32.mrb[0].mxu0
        %v2525 = vadd.f32 %v2396, %v2524
        %v2526 = vpop.f32.mrb[0].mxu0
        %2527 = vmatprep.mubr.bf16.mxu0 0
        %2528 = vmatmul.mubr.bf16.gmra.mrb[0].mxu0 %v1505
        %v2529 = vpop.f32.mrb[0].mxu0
        %v2530 = vadd.f32 %v2401, %v2529
        %v2531 = vpop.f32.mrb[0].mxu0
        %v2532 = vpop.f32.mrb[0].mxu0
        %v2533 = vadd.f32 %v2404, %v2532
        %v2534 = vpop.f32.mrb[0].mxu0
        %2535 = vmatprep.mubr.bf16.mxu0 0
        %2536 = vmatmul.mubr.bf16.gmra.mrb[0].mxu0 %v1508
        %v2537 = vpop.f32.mrb[0].mxu0
        %v2538 = vadd.f32 %v2409, %v2537
        %v2539 = vpop.f32.mrb[0].mxu0
        %v2540 = vpop.f32.mrb[0].mxu0
        %v2541 = vadd.f32 %v2412, %v2540
        %v2542 = vpop.f32.mrb[0].mxu0
        %2543 = vmatprep.mubr.bf16.mxu0 0
        %2544 = vmatmul.mubr.bf16.gmra.mrb[0].mxu0 %v1511
        %v2545 = vpop.f32.mrb[0].mxu0
        %v2546 = vadd.f32 %v2417, %v2545
        %v2547 = vpop.f32.mrb[0].mxu0
        %v2548 = vpop.f32.mrb[0].mxu0
        %v2549 = vadd.f32 %v2420, %v2548
        %v2550 = vpop.f32.mrb[0].mxu0
        %2551 = vmatprep.mubr.bf16.mxu0 0
        %2552 = vmatmul.mubr.bf16.gmra.mrb[0].mxu0 %v1514
        %v2553 = vpop.f32.mrb[0].mxu0
        %v2554 = vadd.f32 %v2425, %v2553
        %v2555 = vpop.f32.mrb[0].mxu0
        %v2556 = vpop.f32.mrb[0].mxu0
        %v2557 = vadd.f32 %v2428, %v2556
        %v2558 = vpop.f32.mrb[0].mxu0
        %2559 = vmatprep.mubr.bf16.mxu0 0
        %2560 = vmatmul.mubr.bf16.gmra.mrb[0].mxu0 %v1517
        %v2561 = vpop.f32.mrb[0].mxu0
        %v2562 = vadd.f32 %v2433, %v2561
        %v2563 = vpop.f32.mrb[0].mxu0
        %v2564 = vpop.f32.mrb[0].mxu0
        %v2565 = vadd.f32 %v2436, %v2564
        %v2566 = vpop.f32.mrb[0].mxu0
        %2567 = vmatprep.mubr.bf16.mxu0 0
        %2568 = vmatmul.mubr.bf16.gmra.mrb[0].mxu0 %v1520
        %v2569 = vpop.f32.mrb[0].mxu0
        %v2570 = vadd.f32 %v2441, %v2569
        %v2571 = vpop.f32.mrb[0].mxu0
        %v2572 = vpop.f32.mrb[0].mxu0
        %v2573 = vadd.f32 %v2444, %v2572
        %v2574 = vpop.f32.mrb[0].mxu0
        %2575 = vmatprep.mubr.bf16.mxu0 0
        %2576 = vmatmul.mubr.bf16.gmra.mrb[0].mxu0 %v1523
        %v2577 = vpop.f32.mrb[0].mxu0
        %v2578 = vadd.f32 %v2449, %v2577
        %v2579 = vpop.f32.mrb[0].mxu0
        %v2580 = vpop.f32.mrb[0].mxu0
        %v2581 = vadd.f32 %v2452, %v2580
        %v2582 = vpop.f32.mrb[0].mxu0
        %2583 = vdwg.mxu0
        %v2584 = vld [vmem:[#allocation3 + $0x48] sm:$0xff]
        %v2585 = vld [vmem:[#allocation3 + $0x50] sm:$0xff]
        %v2586 = vld [vmem:[#allocation3 + $0x58] sm:$0xff]
        %v2587 = vld [vmem:[#allocation3 + $0x60] sm:$0xff]
        %v2588 = vld [vmem:[#allocation3 + $0x68] sm:$0xff]
        %v2589 = vld [vmem:[#allocation3 + $0x70] sm:$0xff]
        %v2590 = vld [vmem:[#allocation3 + $0x78] sm:$0xff]
        %v2591 = vld [vmem:[#allocation3 + $0x80] sm:$0xff]
        %v2592 = vld [vmem:[#allocation3 + $0x88] sm:$0xff]
        %v2593 = vld [vmem:[#allocation3 + $0x90] sm:$0xff]
        %v2594 = vld [vmem:[#allocation3 + $0x98] sm:$0xff]
        %v2595 = vld [vmem:[#allocation3 + $0xa0] sm:$0xff]
        %v2596 = vld [vmem:[#allocation3 + $0xa8] sm:$0xff]
        %v2597 = vld [vmem:[#allocation3 + $0xb0] sm:$0xff]
        %v2598 = vld [vmem:[#allocation3 + $0xb8] sm:$0xff]
        %v2599 = vld [vmem:[#allocation3 + $0xc0] sm:$0xff]
        %v2600 = vld [vmem:[#allocation3 + $0xc8] sm:$0xff]
        %v2601 = vld [vmem:[#allocation3 + $0xd0] sm:$0xff]
        %v2602 = vld [vmem:[#allocation3 + $0xd8] sm:$0xff]
        %v2603 = vld [vmem:[#allocation3 + $0xe0] sm:$0xff]
        %v2604 = vld [vmem:[#allocation3 + $0xe8] sm:$0xff]
        %v2605 = vld [vmem:[#allocation3 + $0xf0] sm:$0xff]
        %v2606 = vld [vmem:[#allocation3 + $0xf8] sm:$0xff]
        %v2607 = vld [vmem:[#allocation3 + $0x100] sm:$0xff]
        %v2608 = vld [vmem:[#allocation3 + $0x108] sm:$0xff]
        %v2609 = vld [vmem:[#allocation3 + $0x110] sm:$0xff]
        %v2610 = vld [vmem:[#allocation3 + $0x118] sm:$0xff]
        %v2611 = vld [vmem:[#allocation3 + $0x120] sm:$0xff]
        %v2612 = vld [vmem:[#allocation3 + $0x128] sm:$0xff]
        %v2613 = vld [vmem:[#allocation3 + $0x130] sm:$0xff]
        %v2614 = vld [vmem:[#allocation3 + $0x138] sm:$0xff]
        %v2615 = vld [vmem:[#allocation3 + $0x140] sm:$0xff]
        %v2616 = vld [vmem:[#allocation3 + $0x148] sm:$0xff]
        %v2617 = vld [vmem:[#allocation3 + $0x150] sm:$0xff]
        %v2618 = vld [vmem:[#allocation3 + $0x158] sm:$0xff]
        %v2619 = vld [vmem:[#allocation3 + $0x160] sm:$0xff]
        %s2620 = scalar_lea.vmem [#allocation7], 384
        %v2621 = vld [vmem:[%s2620] sm:$0xf]
        %v2622 = vld [vmem:[%s2620 + $0x4] sm:$0xf]
        %v2623 = vld [vmem:[%s2620 + $0x8] sm:$0xf]
        %v2624 = vld [vmem:[%s2620 + $0xc] sm:$0xf]
        %v2625 = vld [vmem:[%s2620 + $0x10] sm:$0xf]
        %v2626 = vld [vmem:[%s2620 + $0x14] sm:$0xf]
        %v2627 = vld [vmem:[%s2620 + $0x18] sm:$0xf]
        %v2628 = vld [vmem:[%s2620 + $0x1c] sm:$0xf]
        %v2629 = vld [vmem:[%s2620 + $0x20] sm:$0xf]
        %v2630 = vld [vmem:[%s2620 + $0x24] sm:$0xf]
        %v2631 = vld [vmem:[%s2620 + $0x28] sm:$0xf]
        %v2632 = vld [vmem:[%s2620 + $0x2c] sm:$0xf]
        %v2633 = vld [vmem:[%s2620 + $0x30] sm:$0xf]
        %v2634 = vld [vmem:[%s2620 + $0x34] sm:$0xf]
        %v2635 = vld [vmem:[%s2620 + $0x38] sm:$0xf]
        %v2636 = vld [vmem:[%s2620 + $0x3c] sm:$0xf]
        %v2637 = vld [vmem:[%s2620 + $0x40] sm:$0xf]
        %v2638 = vld [vmem:[%s2620 + $0x44] sm:$0xf]
        %v2639 = vld [vmem:[%s2620 + $0x48] sm:$0xf]
        %v2640 = vld [vmem:[%s2620 + $0x4c] sm:$0xf]
        %v2641 = vld [vmem:[%s2620 + $0x50] sm:$0xf]
        %v2642 = vld [vmem:[%s2620 + $0x54] sm:$0xf]
        %v2643 = vld [vmem:[%s2620 + $0x58] sm:$0xf]
        %v2644 = vld [vmem:[%s2620 + $0x5c] sm:$0xf]
        %v2645 = vld [vmem:[%s2620 + $0x60] sm:$0xf]
        %v2646 = vld [vmem:[%s2620 + $0x64] sm:$0xf]
        %v2647 = vld [vmem:[%s2620 + $0x68] sm:$0xf]
        %v2648 = vld [vmem:[%s2620 + $0x6c] sm:$0xf]
        %v2649 = vld [vmem:[%s2620 + $0x70] sm:$0xf]
        %v2650 = vld [vmem:[%s2620 + $0x74] sm:$0xf]
        %v2651 = vld [vmem:[%s2620 + $0x78] sm:$0xf]
        %v2652 = vld [vmem:[%s2620 + $0x7c] sm:$0xf]
        %v2653 = vld [vmem:[%s2620 + $0x80] sm:$0xf]
        %v2654 = vld [vmem:[%s2620 + $0x84] sm:$0xf]
        %v2655 = vld [vmem:[%s2620 + $0x88] sm:$0xf]
        %v2656 = vld [vmem:[%s2620 + $0x8c] sm:$0xf]
        %v2657 = vld [vmem:[%s2620 + $0x90] sm:$0xf]
        %v2658 = vld [vmem:[%s2620 + $0x94] sm:$0xf]
        %v2659 = vld [vmem:[%s2620 + $0x98] sm:$0xf]
        %v2660 = vld [vmem:[%s2620 + $0x9c] sm:$0xf]
        %v2661 = vld [vmem:[%s2620 + $0xa0] sm:$0xf]
        %v2662 = vld [vmem:[%s2620 + $0xa4] sm:$0xf]
        %v2663 = vld [vmem:[%s2620 + $0xa8] sm:$0xf]
        %v2664 = vld [vmem:[%s2620 + $0xac] sm:$0xf]
        %v2665 = vld [vmem:[%s2620 + $0xb0] sm:$0xf]
        %v2666 = vld [vmem:[%s2620 + $0xb4] sm:$0xf]
        %v2667 = vld [vmem:[%s2620 + $0xb8] sm:$0xf]
        %v2668 = vld [vmem:[%s2620 + $0xbc] sm:$0xf]
        %v2717 = vunpack.c.l.b16 %v2621
        %v2718 = vunpack.c.l.b16 %v2622
        %v2719 = vunpack.c.l.b16 %v2623
        %v2720 = vunpack.c.l.b16 %v2624
        %v2721 = vunpack.c.l.b16 %v2625
        %v2722 = vunpack.c.l.b16 %v2626
        %v2723 = vunpack.c.l.b16 %v2627
        %v2724 = vunpack.c.l.b16 %v2628
        %v2725 = vunpack.c.l.b16 %v2629
        %v2726 = vunpack.c.l.b16 %v2630
        %v2727 = vunpack.c.l.b16 %v2631
        %v2728 = vunpack.c.l.b16 %v2632
        %v2729 = vunpack.c.l.b16 %v2633
        %v2730 = vunpack.c.l.b16 %v2634
        %v2731 = vunpack.c.l.b16 %v2635
        %v2732 = vunpack.c.l.b16 %v2636
        %v2733 = vunpack.c.l.b16 %v2637
        %v2734 = vunpack.c.l.b16 %v2638
        %v2735 = vunpack.c.l.b16 %v2639
        %v2736 = vunpack.c.l.b16 %v2640
        %v2737 = vunpack.c.l.b16 %v2641
        %v2738 = vunpack.c.l.b16 %v2642
        %v2739 = vunpack.c.l.b16 %v2643
        %v2740 = vunpack.c.l.b16 %v2644
        %v2741 = vunpack.c.l.b16 %v2645
        %v2742 = vunpack.c.l.b16 %v2646
        %v2743 = vunpack.c.l.b16 %v2647
        %v2744 = vunpack.c.l.b16 %v2648
        %v2745 = vunpack.c.l.b16 %v2649
        %v2746 = vunpack.c.l.b16 %v2650
        %v2747 = vunpack.c.l.b16 %v2651
        %v2748 = vunpack.c.l.b16 %v2652
        %v2749 = vunpack.c.l.b16 %v2653
        %v2750 = vunpack.c.l.b16 %v2654
        %v2751 = vunpack.c.l.b16 %v2655
        %v2752 = vunpack.c.l.b16 %v2656
        %v2753 = vunpack.c.l.b16 %v2657
        %v2754 = vunpack.c.l.b16 %v2658
        %v2755 = vunpack.c.l.b16 %v2659
        %v2756 = vunpack.c.l.b16 %v2660
        %v2757 = vunpack.c.l.b16 %v2661
        %v2758 = vunpack.c.l.b16 %v2662
        %v2759 = vunpack.c.l.b16 %v2663
        %v2760 = vunpack.c.l.b16 %v2664
        %v2761 = vunpack.c.l.b16 %v2665
        %v2762 = vunpack.c.l.b16 %v2666
        %v2763 = vunpack.c.l.b16 %v2667
        %v2764 = vunpack.c.l.b16 %v2668
        %v2765 = vpack.c.b16 %v2718, %v2717
        %v2766 = vpack.c.b16 %v2720, %v2719
        %v2767 = vpack.c.b16 %v2722, %v2721
        %v2768 = vpack.c.b16 %v2724, %v2723
        %v2769 = vpack.c.b16 %v2726, %v2725
        %v2770 = vpack.c.b16 %v2728, %v2727
        %v2771 = vpack.c.b16 %v2730, %v2729
        %v2772 = vpack.c.b16 %v2732, %v2731
        %v2773 = vpack.c.b16 %v2734, %v2733
        %v2774 = vpack.c.b16 %v2736, %v2735
        %v2775 = vpack.c.b16 %v2738, %v2737
        %v2776 = vpack.c.b16 %v2740, %v2739
        %v2777 = vpack.c.b16 %v2742, %v2741
        %v2778 = vpack.c.b16 %v2744, %v2743
        %v2779 = vpack.c.b16 %v2746, %v2745
        %v2780 = vpack.c.b16 %v2748, %v2747
        %v2781 = vpack.c.b16 %v2750, %v2749
        %v2782 = vpack.c.b16 %v2752, %v2751
        %v2783 = vpack.c.b16 %v2754, %v2753
        %v2784 = vpack.c.b16 %v2756, %v2755
        %v2785 = vpack.c.b16 %v2758, %v2757
        %v2786 = vpack.c.b16 %v2760, %v2759
        %v2787 = vpack.c.b16 %v2762, %v2761
        %v2788 = vpack.c.b16 %v2764, %v2763
        %2813 = vmatprep.subr.bf16.mxu0 0
        %2814 = vmatpush1.bf16.msra.mxu0 %v2765
        %2815 = vmatprep.subr.bf16.mxu0 0
        %2816 = vmatpush1.bf16.msra.mxu0 %v2766
        %2817 = vmatprep.subr.bf16.mxu0 0
        %2818 = vmatpush1.bf16.msra.mxu0 %v2767
        %2819 = vmatprep.subr.bf16.mxu0 0
        %2820 = vmatpush1.bf16.msra.mxu0 %v2768
        %2821 = vmatprep.subr.bf16.mxu0 0
        %2822 = vmatpush1.bf16.msra.mxu0 %v2769
        %2823 = vmatprep.subr.bf16.mxu0 0
        %2824 = vmatpush1.bf16.msra.mxu0 %v2770
        %2825 = vmatprep.subr.bf16.mxu0 0
        %2826 = vmatpush1.bf16.msra.mxu0 %v2771
        %2827 = vmatprep.subr.bf16.mxu0 0
        %2828 = vmatpush1.bf16.msra.mxu0 %v2772
        %2829 = vmatprep.subr.bf16.mxu0 0
        %2830 = vmatpush1.bf16.msra.mxu0 %v2773
        %2831 = vmatprep.subr.bf16.mxu0 0
        %2832 = vmatpush1.bf16.msra.mxu0 %v2774
        %2833 = vmatprep.subr.bf16.mxu0 0
        %2834 = vmatpush1.bf16.msra.mxu0 %v2775
        %2835 = vmatprep.subr.bf16.mxu0 0
        %2836 = vmatpush1.bf16.msra.mxu0 %v2776
        %2837 = vmatprep.subr.bf16.mxu0 0
        %2838 = vmatpush1.bf16.msra.mxu0 %v2777
        %2839 = vmatprep.subr.bf16.mxu0 0
        %2840 = vmatpush1.bf16.msra.mxu0 %v2778
        %2841 = vmatprep.subr.bf16.mxu0 0
        %2842 = vmatpush1.bf16.msra.mxu0 %v2779
        %2843 = vmatprep.subr.bf16.mxu0 0
        %2844 = vmatpush1.bf16.msra.mxu0 %v2780
        %2845 = vmatprep.mubr.bf16.mxu0 %v2585
        %2846 = vmatmul.mubr.bf16.gmra.mrb[0].mxu0 %v2584
        %v2847 = vpop.f32.mrb[0].mxu0
        %v2848 = vadd.f32 0.0, %v2847
        %v2849 = vpop.f32.mrb[0].mxu0
        %v2850 = vpop.f32.mrb[0].mxu0
        %v2851 = vadd.f32 0.0, %v2850
        %v2852 = vpop.f32.mrb[0].mxu0
        %2853 = vmatprep.mubr.bf16.mxu0 %v2588
        %2854 = vmatmul.mubr.bf16.gmra.mrb[0].mxu0 %v2587
        %v2855 = vpop.f32.mrb[0].mxu0
        %v2856 = vadd.f32 0.0, %v2855
        %v2857 = vpop.f32.mrb[0].mxu0
        %v2858 = vpop.f32.mrb[0].mxu0
        %v2859 = vadd.f32 0.0, %v2858
        %v2860 = vpop.f32.mrb[0].mxu0
        %2861 = vmatprep.mubr.bf16.mxu0 %v2591
        %2862 = vmatmul.mubr.bf16.gmra.mrb[0].mxu0 %v2590
        %v2863 = vpop.f32.mrb[0].mxu0
        %v2864 = vadd.f32 0.0, %v2863
        %v2865 = vpop.f32.mrb[0].mxu0
        %v2866 = vpop.f32.mrb[0].mxu0
        %v2867 = vadd.f32 0.0, %v2866
        %v2868 = vpop.f32.mrb[0].mxu0
        %2869 = vmatprep.mubr.bf16.mxu0 %v2594
        %2870 = vmatmul.mubr.bf16.gmra.mrb[0].mxu0 %v2593
        %v2871 = vpop.f32.mrb[0].mxu0
        %v2872 = vadd.f32 0.0, %v2871
        %v2873 = vpop.f32.mrb[0].mxu0
        %v2874 = vpop.f32.mrb[0].mxu0
        %v2875 = vadd.f32 0.0, %v2874
        %v2876 = vpop.f32.mrb[0].mxu0
        %2877 = vmatprep.mubr.bf16.mxu0 %v2597
        %2878 = vmatmul.mubr.bf16.gmra.mrb[0].mxu0 %v2596
        %v2879 = vpop.f32.mrb[0].mxu0
        %v2880 = vadd.f32 0.0, %v2879
        %v2881 = vpop.f32.mrb[0].mxu0
        %v2882 = vpop.f32.mrb[0].mxu0
        %v2883 = vadd.f32 0.0, %v2882
        %v2884 = vpop.f32.mrb[0].mxu0
        %2885 = vmatprep.mubr.bf16.mxu0 %v2600
        %2886 = vmatmul.mubr.bf16.gmra.mrb[0].mxu0 %v2599
        %v2887 = vpop.f32.mrb[0].mxu0
        %v2888 = vadd.f32 0.0, %v2887
        %v2889 = vpop.f32.mrb[0].mxu0
        %v2890 = vpop.f32.mrb[0].mxu0
        %v2891 = vadd.f32 0.0, %v2890
        %v2892 = vpop.f32.mrb[0].mxu0
        %2893 = vmatprep.mubr.bf16.mxu0 %v2603
        %2894 = vmatmul.mubr.bf16.gmra.mrb[0].mxu0 %v2602
        %v2895 = vpop.f32.mrb[0].mxu0
        %v2896 = vadd.f32 0.0, %v2895
        %v2897 = vpop.f32.mrb[0].mxu0
        %v2898 = vpop.f32.mrb[0].mxu0
        %v2899 = vadd.f32 0.0, %v2898
        %v2900 = vpop.f32.mrb[0].mxu0
        %2901 = vmatprep.mubr.bf16.mxu0 %v2606
        %2902 = vmatmul.mubr.bf16.gmra.mrb[0].mxu0 %v2605
        %v2903 = vpop.f32.mrb[0].mxu0
        %v2904 = vadd.f32 0.0, %v2903
        %v2905 = vpop.f32.mrb[0].mxu0
        %v2906 = vpop.f32.mrb[0].mxu0
        %v2907 = vadd.f32 0.0, %v2906
        %v2908 = vpop.f32.mrb[0].mxu0
        %2909 = vmatprep.mubr.bf16.mxu0 %v2609
        %2910 = vmatmul.mubr.bf16.gmra.mrb[0].mxu0 %v2608
        %v2911 = vpop.f32.mrb[0].mxu0
        %v2912 = vadd.f32 0.0, %v2911
        %v2913 = vpop.f32.mrb[0].mxu0
        %v2914 = vpop.f32.mrb[0].mxu0
        %v2915 = vadd.f32 0.0, %v2914
        %v2916 = vpop.f32.mrb[0].mxu0
        %2917 = vmatprep.mubr.bf16.mxu0 %v2612
        %2918 = vmatmul.mubr.bf16.gmra.mrb[0].mxu0 %v2611
        %v2919 = vpop.f32.mrb[0].mxu0
        %v2920 = vadd.f32 0.0, %v2919
        %v2921 = vpop.f32.mrb[0].mxu0
        %v2922 = vpop.f32.mrb[0].mxu0
        %v2923 = vadd.f32 0.0, %v2922
        %v2924 = vpop.f32.mrb[0].mxu0
        %2925 = vmatprep.mubr.bf16.mxu0 %v2615
        %2926 = vmatmul.mubr.bf16.gmra.mrb[0].mxu0 %v2614
        %v2927 = vpop.f32.mrb[0].mxu0
        %v2928 = vadd.f32 0.0, %v2927
        %v2929 = vpop.f32.mrb[0].mxu0
        %v2930 = vpop.f32.mrb[0].mxu0
        %v2931 = vadd.f32 0.0, %v2930
        %v2932 = vpop.f32.mrb[0].mxu0
        %2933 = vmatprep.mubr.bf16.mxu0 %v2618
        %2934 = vmatmul.mubr.bf16.gmra.mrb[0].mxu0 %v2617
        %v2935 = vpop.f32.mrb[0].mxu0
        %v2936 = vadd.f32 0.0, %v2935
        %v2937 = vpop.f32.mrb[0].mxu0
        %v2938 = vpop.f32.mrb[0].mxu0
        %v2939 = vadd.f32 0.0, %v2938
        %v2940 = vpop.f32.mrb[0].mxu0
        %2941 = vdwg.mxu0
        %2942 = vmatprep.subr.bf16.mxu0 0
        %2943 = vmatpush1.bf16.msra.mxu0 %v2781
        %2944 = vmatprep.subr.bf16.mxu0 0
        %2945 = vmatpush1.bf16.msra.mxu0 %v2782
        %2946 = vmatprep.subr.bf16.mxu0 0
        %2947 = vmatpush1.bf16.msra.mxu0 %v2783
        %2948 = vmatprep.subr.bf16.mxu0 0
        %2949 = vmatpush1.bf16.msra.mxu0 %v2784
        %2950 = vmatprep.subr.bf16.mxu0 0
        %2951 = vmatpush1.bf16.msra.mxu0 %v2785
        %2952 = vmatprep.subr.bf16.mxu0 0
        %2953 = vmatpush1.bf16.msra.mxu0 %v2786
        %2954 = vmatprep.subr.bf16.mxu0 0
        %2955 = vmatpush1.bf16.msra.mxu0 %v2787
        %2956 = vmatprep.subr.bf16.mxu0 0
        %2957 = vmatpush1.bf16.msra.mxu0 %v2788
        %2958 = vmatprep.subr.bf16.mxu0 0
        %2959 = vmatpush1.bf16.msra.mxu0 0
        %2960 = vmatprep.subr.bf16.mxu0 0
        %2961 = vmatpush1.bf16.msra.mxu0 0
        %2962 = vmatprep.subr.bf16.mxu0 0
        %2963 = vmatpush1.bf16.msra.mxu0 0
        %2964 = vmatprep.subr.bf16.mxu0 0
        %2965 = vmatpush1.bf16.msra.mxu0 0
        %2966 = vmatprep.subr.bf16.mxu0 0
        %2967 = vmatpush1.bf16.msra.mxu0 0
        %2968 = vmatprep.subr.bf16.mxu0 0
        %2969 = vmatpush1.bf16.msra.mxu0 0
        %2970 = vmatprep.subr.bf16.mxu0 0
        %2971 = vmatpush1.bf16.msra.mxu0 0
        %2972 = vmatprep.subr.bf16.mxu0 0
        %2973 = vmatpush1.bf16.msra.mxu0 0
        %2974 = vmatprep.mubr.bf16.mxu0 0
        %2975 = vmatmul.mubr.bf16.gmra.mrb[0].mxu0 %v2586
        %v2976 = vpop.f32.mrb[0].mxu0
        %v2977 = vadd.f32 %v2848, %v2976
        %v2978 = vpop.f32.mrb[0].mxu0
        %v2979 = vpop.f32.mrb[0].mxu0
        %v2980 = vadd.f32 %v2851, %v2979
        %v2981 = vpop.f32.mrb[0].mxu0
        %2982 = vmatprep.mubr.bf16.mxu0 0
        %2983 = vmatmul.mubr.bf16.gmra.mrb[0].mxu0 %v2589
        %v2984 = vpop.f32.mrb[0].mxu0
        %v2985 = vadd.f32 %v2856, %v2984
        %v2986 = vpop.f32.mrb[0].mxu0
        %v2987 = vpop.f32.mrb[0].mxu0
        %v2988 = vadd.f32 %v2859, %v2987
        %v2989 = vpop.f32.mrb[0].mxu0
        %2990 = vmatprep.mubr.bf16.mxu0 0
        %2991 = vmatmul.mubr.bf16.gmra.mrb[0].mxu0 %v2592
        %v2992 = vpop.f32.mrb[0].mxu0
        %v2993 = vadd.f32 %v2864, %v2992
        %v2994 = vpop.f32.mrb[0].mxu0
        %v2995 = vpop.f32.mrb[0].mxu0
        %v2996 = vadd.f32 %v2867, %v2995
        %v2997 = vpop.f32.mrb[0].mxu0
        %2998 = vmatprep.mubr.bf16.mxu0 0
        %2999 = vmatmul.mubr.bf16.gmra.mrb[0].mxu0 %v2595
        %v3000 = vpop.f32.mrb[0].mxu0
        %v3001 = vadd.f32 %v2872, %v3000
        %v3002 = vpop.f32.mrb[0].mxu0
        %v3003 = vpop.f32.mrb[0].mxu0
        %v3004 = vadd.f32 %v2875, %v3003
        %v3005 = vpop.f32.mrb[0].mxu0
        %3006 = vmatprep.mubr.bf16.mxu0 0
        %3007 = vmatmul.mubr.bf16.gmra.mrb[0].mxu0 %v2598
        %v3008 = vpop.f32.mrb[0].mxu0
        %v3009 = vadd.f32 %v2880, %v3008
        %v3010 = vpop.f32.mrb[0].mxu0
        %v3011 = vpop.f32.mrb[0].mxu0
        %v3012 = vadd.f32 %v2883, %v3011
        %v3013 = vpop.f32.mrb[0].mxu0
        %3014 = vmatprep.mubr.bf16.mxu0 0
        %3015 = vmatmul.mubr.bf16.gmra.mrb[0].mxu0 %v2601
        %v3016 = vpop.f32.mrb[0].mxu0
        %v3017 = vadd.f32 %v2888, %v3016
        %v3018 = vpop.f32.mrb[0].mxu0
        %v3019 = vpop.f32.mrb[0].mxu0
        %v3020 = vadd.f32 %v2891, %v3019
        %v3021 = vpop.f32.mrb[0].mxu0
        %3022 = vmatprep.mubr.bf16.mxu0 0
        %3023 = vmatmul.mubr.bf16.gmra.mrb[0].mxu0 %v2604
        %v3024 = vpop.f32.mrb[0].mxu0
        %v3025 = vadd.f32 %v2896, %v3024
        %v3026 = vpop.f32.mrb[0].mxu0
        %v3027 = vpop.f32.mrb[0].mxu0
        %v3028 = vadd.f32 %v2899, %v3027
        %v3029 = vpop.f32.mrb[0].mxu0
        %3030 = vmatprep.mubr.bf16.mxu0 0
        %3031 = vmatmul.mubr.bf16.gmra.mrb[0].mxu0 %v2607
        %v3032 = vpop.f32.mrb[0].mxu0
        %v3033 = vadd.f32 %v2904, %v3032
        %v3034 = vpop.f32.mrb[0].mxu0
        %v3035 = vpop.f32.mrb[0].mxu0
        %v3036 = vadd.f32 %v2907, %v3035
        %v3037 = vpop.f32.mrb[0].mxu0
        %3038 = vmatprep.mubr.bf16.mxu0 0
        %3039 = vmatmul.mubr.bf16.gmra.mrb[0].mxu0 %v2610
        %v3040 = vpop.f32.mrb[0].mxu0
        %v3041 = vadd.f32 %v2912, %v3040
        %v3042 = vpop.f32.mrb[0].mxu0
        %v3043 = vpop.f32.mrb[0].mxu0
        %v3044 = vadd.f32 %v2915, %v3043
        %v3045 = vpop.f32.mrb[0].mxu0
        %3046 = vmatprep.mubr.bf16.mxu0 0
        %3047 = vmatmul.mubr.bf16.gmra.mrb[0].mxu0 %v2613
        %v3048 = vpop.f32.mrb[0].mxu0
        %v3049 = vadd.f32 %v2920, %v3048
        %v3050 = vpop.f32.mrb[0].mxu0
        %v3051 = vpop.f32.mrb[0].mxu0
        %v3052 = vadd.f32 %v2923, %v3051
        %v3053 = vpop.f32.mrb[0].mxu0
        %3054 = vmatprep.mubr.bf16.mxu0 0
        %3055 = vmatmul.mubr.bf16.gmra.mrb[0].mxu0 %v2616
        %v3056 = vpop.f32.mrb[0].mxu0
        %v3057 = vadd.f32 %v2928, %v3056
        %v3058 = vpop.f32.mrb[0].mxu0
        %v3059 = vpop.f32.mrb[0].mxu0
        %v3060 = vadd.f32 %v2931, %v3059
        %v3061 = vpop.f32.mrb[0].mxu0
        %3062 = vmatprep.mubr.bf16.mxu0 0
        %3063 = vmatmul.mubr.bf16.gmra.mrb[0].mxu0 %v2619
        %v3064 = vpop.f32.mrb[0].mxu0
        %v3065 = vadd.f32 %v2936, %v3064
        %v3066 = vpop.f32.mrb[0].mxu0
        %v3067 = vpop.f32.mrb[0].mxu0
        %v3068 = vadd.f32 %v2939, %v3067
        %v3069 = vpop.f32.mrb[0].mxu0
        %3070 = vdwg.mxu0
        %v3071 = vadd.f32 %v2490, %v2977
        %v3072 = vadd.f32 %v2493, %v2980
        %v3073 = vadd.f32 %v2498, %v2985
        %v3074 = vadd.f32 %v2501, %v2988
        %v3075 = vadd.f32 %v2506, %v2993
        %v3076 = vadd.f32 %v2509, %v2996
        %v3077 = vadd.f32 %v2514, %v3001
        %v3078 = vadd.f32 %v2517, %v3004
        %v3079 = vadd.f32 %v2522, %v3009
        %v3080 = vadd.f32 %v2525, %v3012
        %v3081 = vadd.f32 %v2530, %v3017
        %v3082 = vadd.f32 %v2533, %v3020
        %v3083 = vadd.f32 %v2538, %v3025
        %v3084 = vadd.f32 %v2541, %v3028
        %v3085 = vadd.f32 %v2546, %v3033
        %v3086 = vadd.f32 %v2549, %v3036
        %v3087 = vadd.f32 %v2554, %v3041
        %v3088 = vadd.f32 %v2557, %v3044
        %v3089 = vadd.f32 %v2562, %v3049
        %v3090 = vadd.f32 %v2565, %v3052
        %v3091 = vadd.f32 %v2570, %v3057
        %v3092 = vadd.f32 %v2573, %v3060
        %v3093 = vadd.f32 %v2578, %v3065
        %v3094 = vadd.f32 %v2581, %v3068
        %v3095 = vld [vmem:[%s5] sm:$0x1]
        %v3097 = vlaneseq
        %v3098 = vshrl.u32 %v3097, 7
        %v3099 = vsub.s32 0, %v3098
        %v3100 = vrot.slane %v3095, %v3099
        %v3102 = vadd.f32 %v3071, %v3100
        %v3103 = vadd.f32 %v3072, %v3100
        %v3104 = vadd.f32 %v3073, %v3100
        %v3105 = vadd.f32 %v3074, %v3100
        %v3106 = vadd.f32 %v3075, %v3100
        %v3107 = vadd.f32 %v3076, %v3100
        %v3108 = vadd.f32 %v3077, %v3100
        %v3109 = vadd.f32 %v3078, %v3100
        %v3110 = vadd.f32 %v3079, %v3100
        %v3111 = vadd.f32 %v3080, %v3100
        %v3112 = vadd.f32 %v3081, %v3100
        %v3113 = vadd.f32 %v3082, %v3100
        %v3114 = vadd.f32 %v3083, %v3100
        %v3115 = vadd.f32 %v3084, %v3100
        %v3116 = vadd.f32 %v3085, %v3100
        %v3117 = vadd.f32 %v3086, %v3100
        %v3118 = vadd.f32 %v3087, %v3100
        %v3119 = vadd.f32 %v3088, %v3100
        %v3120 = vadd.f32 %v3089, %v3100
        %v3121 = vadd.f32 %v3090, %v3100
        %v3122 = vadd.f32 %v3091, %v3100
        %v3123 = vadd.f32 %v3092, %v3100
        %v3124 = vadd.f32 %v3093, %v3100
        %v3125 = vadd.f32 %v3094, %v3100
        %vm3126 = vcmp.ge.f32.partialorder %v3102, 0.0
        %vm3127 = vcmp.ge.f32.partialorder %v3103, 0.0
        %vm3128 = vcmp.ge.f32.partialorder %v3104, 0.0
        %vm3129 = vcmp.ge.f32.partialorder %v3105, 0.0
        %vm3130 = vcmp.ge.f32.partialorder %v3106, 0.0
        %vm3131 = vcmp.ge.f32.partialorder %v3107, 0.0
        %vm3132 = vcmp.ge.f32.partialorder %v3108, 0.0
        %vm3133 = vcmp.ge.f32.partialorder %v3109, 0.0
        %vm3134 = vcmp.ge.f32.partialorder %v3110, 0.0
        %vm3135 = vcmp.ge.f32.partialorder %v3111, 0.0
        %vm3136 = vcmp.ge.f32.partialorder %v3112, 0.0
        %vm3137 = vcmp.ge.f32.partialorder %v3113, 0.0
        %vm3138 = vcmp.ge.f32.partialorder %v3114, 0.0
        %vm3139 = vcmp.ge.f32.partialorder %v3115, 0.0
        %vm3140 = vcmp.ge.f32.partialorder %v3116, 0.0
        %vm3141 = vcmp.ge.f32.partialorder %v3117, 0.0
        %vm3142 = vcmp.ge.f32.partialorder %v3118, 0.0
        %vm3143 = vcmp.ge.f32.partialorder %v3119, 0.0
        %vm3144 = vcmp.ge.f32.partialorder %v3120, 0.0
        %vm3145 = vcmp.ge.f32.partialorder %v3121, 0.0
        %vm3146 = vcmp.ge.f32.partialorder %v3122, 0.0
        %vm3147 = vcmp.ge.f32.partialorder %v3123, 0.0
        %vm3148 = vcmp.ge.f32.partialorder %v3124, 0.0
        %vm3149 = vcmp.ge.f32.partialorder %v3125, 0.0
        %v3150 = vmul.f32 %v3102, 0.1
        %v3151 = vmul.f32 %v3103, 0.1
        %v3152 = vmul.f32 %v3104, 0.1
        %v3153 = vmul.f32 %v3105, 0.1
        %v3154 = vmul.f32 %v3106, 0.1
        %v3155 = vmul.f32 %v3107, 0.1
        %v3156 = vmul.f32 %v3108, 0.1
        %v3157 = vmul.f32 %v3109, 0.1
        %v3158 = vmul.f32 %v3110, 0.1
        %v3159 = vmul.f32 %v3111, 0.1
        %v3160 = vmul.f32 %v3112, 0.1
        %v3161 = vmul.f32 %v3113, 0.1
        %v3162 = vmul.f32 %v3114, 0.1
        %v3163 = vmul.f32 %v3115, 0.1
        %v3164 = vmul.f32 %v3116, 0.1
        %v3165 = vmul.f32 %v3117, 0.1
        %v3166 = vmul.f32 %v3118, 0.1
        %v3167 = vmul.f32 %v3119, 0.1
        %v3168 = vmul.f32 %v3120, 0.1
        %v3169 = vmul.f32 %v3121, 0.1
        %v3170 = vmul.f32 %v3122, 0.1
        %v3171 = vmul.f32 %v3123, 0.1
        %v3172 = vmul.f32 %v3124, 0.1
        %v3173 = vmul.f32 %v3125, 0.1
        %v3174 = vsel %vm3126, %v3102, %v3150
        %v3175 = vsel %vm3127, %v3103, %v3151
        %v3176 = vsel %vm3128, %v3104, %v3152
        %v3177 = vsel %vm3129, %v3105, %v3153
        %v3178 = vsel %vm3130, %v3106, %v3154
        %v3179 = vsel %vm3131, %v3107, %v3155
        %v3180 = vsel %vm3132, %v3108, %v3156
        %v3181 = vsel %vm3133, %v3109, %v3157
        %v3182 = vsel %vm3134, %v3110, %v3158
        %v3183 = vsel %vm3135, %v3111, %v3159
        %v3184 = vsel %vm3136, %v3112, %v3160
        %v3185 = vsel %vm3137, %v3113, %v3161
        %v3186 = vsel %vm3138, %v3114, %v3162
        %v3187 = vsel %vm3139, %v3115, %v3163
        %v3188 = vsel %vm3140, %v3116, %v3164
        %v3189 = vsel %vm3141, %v3117, %v3165
        %v3190 = vsel %vm3142, %v3118, %v3166
        %v3191 = vsel %vm3143, %v3119, %v3167
        %v3192 = vsel %vm3144, %v3120, %v3168
        %v3193 = vsel %vm3145, %v3121, %v3169
        %v3194 = vsel %vm3146, %v3122, %v3170
        %v3195 = vsel %vm3147, %v3123, %v3171
        %v3196 = vsel %vm3148, %v3124, %v3172
        %v3197 = vsel %vm3149, %v3125, %v3173
        %v3198 = vld [vmem:[%s280 + $0xc] sm:$0xf]
        %v3199 = vld [vmem:[%s280 + $0x10] sm:$0xf]
        %v3200 = vld [vmem:[%s280 + $0x14] sm:$0xf]
        %v3201 = vld [vmem:[%s280 + $0x18] sm:$0xf]
        %v3202 = vld [vmem:[%s280 + $0x1c] sm:$0xf]
        %v3203 = vld [vmem:[%s280 + $0x20] sm:$0xf]
        %v3204 = vld [vmem:[%s280 + $0x24] sm:$0xf]
        %v3205 = vld [vmem:[%s280 + $0x28] sm:$0xf]
        %v3206 = vld [vmem:[%s280 + $0x2c] sm:$0xf]
        %v3207 = vld [vmem:[%s280 + $0x30] sm:$0xf]
        %v3208 = vld [vmem:[%s280 + $0x34] sm:$0xf]
        %v3209 = vld [vmem:[%s280 + $0x38] sm:$0xf]
        %v3210 = vld [vmem:[%s280 + $0x3c] sm:$0xf]
        %v3211 = vld [vmem:[%s280 + $0x40] sm:$0xf]
        %v3212 = vld [vmem:[%s280 + $0x44] sm:$0xf]
        %v3213 = vld [vmem:[%s280 + $0x48] sm:$0xf]
        %v3214 = vld [vmem:[%s280 + $0x4c] sm:$0xf]
        %v3215 = vld [vmem:[%s280 + $0x50] sm:$0xf]
        %v3216 = vld [vmem:[%s280 + $0x54] sm:$0xf]
        %v3217 = vld [vmem:[%s280 + $0x58] sm:$0xf]
        %v3218 = vld [vmem:[%s280 + $0x5c] sm:$0xf]
        %v3219 = vld [vmem:[%s280 + $0x60] sm:$0xf]
        %v3220 = vld [vmem:[%s280 + $0x64] sm:$0xf]
        %v3221 = vld [vmem:[%s280 + $0x68] sm:$0xf]
        %v3222 = vunpack.c.l.bf16 %v3198
        %v3223 = vunpack.c.l.bf16 %v3199
        %v3224 = vunpack.c.l.bf16 %v3200
        %v3225 = vunpack.c.l.bf16 %v3201
        %v3226 = vunpack.c.l.bf16 %v3202
        %v3227 = vunpack.c.l.bf16 %v3203
        %v3228 = vunpack.c.l.bf16 %v3204
        %v3229 = vunpack.c.l.bf16 %v3205
        %v3230 = vunpack.c.l.bf16 %v3206
        %v3231 = vunpack.c.l.bf16 %v3207
        %v3232 = vunpack.c.l.bf16 %v3208
        %v3233 = vunpack.c.l.bf16 %v3209
        %v3234 = vunpack.c.l.bf16 %v3210
        %v3235 = vunpack.c.l.bf16 %v3211
        %v3236 = vunpack.c.l.bf16 %v3212
        %v3237 = vunpack.c.l.bf16 %v3213
        %v3238 = vunpack.c.l.bf16 %v3214
        %v3239 = vunpack.c.l.bf16 %v3215
        %v3240 = vunpack.c.l.bf16 %v3216
        %v3241 = vunpack.c.l.bf16 %v3217
        %v3242 = vunpack.c.l.bf16 %v3218
        %v3243 = vunpack.c.l.bf16 %v3219
        %v3244 = vunpack.c.l.bf16 %v3220
        %v3245 = vunpack.c.l.bf16 %v3221
        %v3246 = vadd.f32 %v3174, %v3222
        %v3247 = vadd.f32 %v3175, %v3223
        %v3248 = vadd.f32 %v3176, %v3224
        %v3249 = vadd.f32 %v3177, %v3225
        %v3250 = vadd.f32 %v3178, %v3226
        %v3251 = vadd.f32 %v3179, %v3227
        %v3252 = vadd.f32 %v3180, %v3228
        %v3253 = vadd.f32 %v3181, %v3229
        %v3254 = vadd.f32 %v3182, %v3230
        %v3255 = vadd.f32 %v3183, %v3231
        %v3256 = vadd.f32 %v3184, %v3232
        %v3257 = vadd.f32 %v3185, %v3233
        %v3258 = vadd.f32 %v3186, %v3234
        %v3259 = vadd.f32 %v3187, %v3235
        %v3260 = vadd.f32 %v3188, %v3236
        %v3261 = vadd.f32 %v3189, %v3237
        %v3262 = vadd.f32 %v3190, %v3238
        %v3263 = vadd.f32 %v3191, %v3239
        %v3264 = vadd.f32 %v3192, %v3240
        %v3265 = vadd.f32 %v3193, %v3241
        %v3266 = vadd.f32 %v3194, %v3242
        %v3267 = vadd.f32 %v3195, %v3243
        %v3268 = vadd.f32 %v3196, %v3244
        %v3269 = vadd.f32 %v3197, %v3245
        %3270 = vst [vmem:[%s317] sm:$0xff] %v3246
        %3271 = vst [vmem:[%s317 + $0x8] sm:$0xff] %v3247
        %3272 = vst [vmem:[%s317 + $0x10] sm:$0xff] %v3248
        %3273 = vst [vmem:[%s317 + $0x18] sm:$0xff] %v3249
        %3274 = vst [vmem:[%s317 + $0x20] sm:$0xff] %v3250
        %3275 = vst [vmem:[%s317 + $0x28] sm:$0xff] %v3251
        %3276 = vst [vmem:[%s317 + $0x30] sm:$0xff] %v3252
        %3277 = vst [vmem:[%s317 + $0x38] sm:$0xff] %v3253
        %3278 = vst [vmem:[%s317 + $0x40] sm:$0xff] %v3254
        %3279 = vst [vmem:[%s317 + $0x48] sm:$0xff] %v3255
        %3280 = vst [vmem:[%s317 + $0x50] sm:$0xff] %v3256
        %3281 = vst [vmem:[%s317 + $0x58] sm:$0xff] %v3257
        %3282 = vst [vmem:[%s317 + $0x60] sm:$0xff] %v3258
        %3283 = vst [vmem:[%s317 + $0x68] sm:$0xff] %v3259
        %3284 = vst [vmem:[%s317 + $0x70] sm:$0xff] %v3260
        %3285 = vst [vmem:[%s317 + $0x78] sm:$0xff] %v3261
        %3286 = vst [vmem:[%s317 + $0x80] sm:$0xff] %v3262
        %3287 = vst [vmem:[%s317 + $0x88] sm:$0xff] %v3263
        %3288 = vst [vmem:[%s317 + $0x90] sm:$0xff] %v3264
        %3289 = vst [vmem:[%s317 + $0x98] sm:$0xff] %v3265
        %3290 = vst [vmem:[%s317 + $0xa0] sm:$0xff] %v3266
        %3291 = vst [vmem:[%s317 + $0xa8] sm:$0xff] %v3267
        %3292 = vst [vmem:[%s317 + $0xb0] sm:$0xff] %v3268
        %3293 = vst [vmem:[%s317 + $0xb8] sm:$0xff] %v3269
        %s3294 = sand.u32 %s184, 1
        %s3295 = scalar_lea.sflag [#allocation6], %s3294
        %s3296 = sand.u32 %s184, 1
        %s3297 = smul.addr %s3296, 192
        %s3298 = scalar_lea.vmem [#allocation9], %s3297
        // Predicated region
        $region53: #{tpu_custom_call.1} parent=43 // pred_check
          %p3299 = pneg %p194
        $region54: #{tpu_custom_call.1} parent=43 // pred_check_branch
          %3301 = sbr.rel (%p3299) target = $region56
        $region55: #{tpu_custom_call.1} parent=43 // pred_region
          %s3302 = smul.u32 24, %s29
          %s3304 = ssub.s32 3072, 3072
          %3305 = vsyncadd %s3295, %s3304
          %s3306 = smul.addr %s28, 48
          %s3307 = sadd.s32 %s3302, %s3306
          %s3308 = smul.addr %s3307, 128
          %s3309 = scalar_lea.hbm %s6, %s3308
          %s3310 = sshll.u32 %s3298, 4
          %s3311 = int_to_ptr.vmem [resolvable:$true] %s3310
          %3316 = dma.vmem_to_hbm [thread:$0]  %s3311, 3072, %s3309, %s3295, 128, 128, 8
        $region56: #{tpu_custom_call.1} parent=43 // pred_fallthru
          _
      $region44: #{tpu_custom_call.1} parent=5 // pred_fallthru
        _
      %p3317 = scmp.le.s32.totalorder 2, %s19
      // Predicated region
      $region57: #{tpu_custom_call.1} parent=5 // pred_check
        %p3318 = pneg %p3317
      $region58: #{tpu_custom_call.1} parent=5 // pred_check_branch
        %3320 = sbr.rel (%p3318) target = $region60
      $region59: #{tpu_custom_call.1} parent=5 // pred_region
        %s3321 = ssub.s32 %s19, 2
        // Predicated region
        $region61: #{tpu_custom_call.1} parent=59 // pred_check
          %p3322 = pneg %p200
        $region62: #{tpu_custom_call.1} parent=59 // pred_check_branch
          %3324 = sbr.rel (%p3322) target = $region64
        $region63: #{tpu_custom_call.1} parent=59 // pred_region
          %s3325 = sand.u32 %s185, 1
          %s3326 = scalar_lea.sflag [#allocation6], %s3325
          %s3327 = sand.u32 %s185, 1
          %s3328 = smul.addr %s3327, 192
          %s3329 = scalar_lea.vmem [#allocation9], %s3328
          %3330 = dma.done %s3326, 3072
        $region64: #{tpu_custom_call.1} parent=59 // pred_fallthru
          _
      $region60: #{tpu_custom_call.1} parent=5 // pred_fallthru
        _
    $region6: #{tpu_custom_call.1} parent=1 // loop_footer
      %s23 = sadd.s32 1, %s19
    $region7: #{tpu_custom_call.1} parent=1 // loop_footer_branch
      %18 = sbr.rel target = $region3
    $region8: #{tpu_custom_call.1} parent=1 // loop_exit
      _
    %3331 = vsyncpa [#allocation5], 1
    %s3332 = scalar_lea.sflag [#allocation5], 1
    %3333 = vsyncpa %s3332, 1
    %3334 = vsyncpa [#allocation8], 1
    %3335 = vsyncpa [#allocation6], 1
    %s3336 = scalar_lea.sflag [#allocation6], 1
    %3337 = vsyncpa %s3336, 1

</llo_original>
